<compile_context>
chip_gen: v7x
topology: tpu7x:2x2x1
jax: 0.10.0
libtpu: 0.0.40
codegen_flags: <defaults>
</compile_context>

<pallas_src>
import functools

import jax
import jax.numpy as jnp
from jax import lax
from jax.experimental import pallas as pl
from jax.experimental.pallas import tpu as pltpu


# ---------------------------------------------------------------------------
# Fused Pallas kernel: Conv3 (conv->GN->ReLU, conv->GN->ReLU) + MaxPool2d(2)
# ---------------------------------------------------------------------------
def unet_down_kernel(x_ref, w1_ref, w2_ref, pv_ref, mask_ref, esel_ref, eselt_ref,
                     gm_ref, pool_ref, out_ref, *, H, W, Btile, eps):
    HW = H * W
    L = Btile * HW

    masks = mask_ref[...]            # (9, L) f32: per-tap border validity, per image
    esel = esel_ref[...]             # (L, Btile) f32: lane -> image selector
    eselt = eselt_ref[...]           # (Btile, L) f32: image -> lane broadcaster
    gm = gm_ref[...]                 # (C, C) f32: 1/(Gc*HW) within group else 0
    pv = pv_ref[...]                 # (C, 8) f32: [b1, g1, bt1, b2, g2, bt2, 0, 0]
    b1, g1, bt1 = pv[:, 0:1], pv[:, 1:2], pv[:, 2:3]
    b2, g2, bt2 = pv[:, 3:4], pv[:, 4:5], pv[:, 5:6]

    # batch-on-lanes: (Btile, C_in, HW) -> (C_in, Btile*HW), image b on lanes [b*HW, (b+1)*HW)
    x = jnp.concatenate([x_ref[b] for b in range(Btile)], axis=-1)

    def conv3x3(inp, w_bf16):
        # inp: (Cin, L) f32 ; w_bf16: (Cout, 9*Cin) bf16 ; returns (Cout, L) f32
        pieces = []
        for k in range(9):
            dy, dx = k // 3 - 1, k % 3 - 1
            s = dy * W + dx                         # flattened spatial shift
            if s == 0:
                pieces.append(inp)
            else:
                # shifted[p] = inp[p + s] (lane roll); masks zero every position whose
                # source crosses its own image's border (also kills cross-image wrap).
                shifted = pltpu.roll(inp, shift=(-s) % L, axis=1)
                pieces.append(shifted * masks[k:k + 1, :])
        stacked = jnp.concatenate(pieces, axis=0).astype(jnp.bfloat16)   # (9*Cin, L)
        return jnp.dot(w_bf16, stacked, preferred_element_type=jnp.float32)

    def group_norm_relu(h, bias, gamma, beta):
        # h: (C, L) f32 (pre-bias conv output); stats are per (group, image), f32.
        h = h + bias
        s1 = jnp.dot(h, esel, preferred_element_type=jnp.float32)        # (C, Btile)
        s2 = jnp.dot(h * h, esel, preferred_element_type=jnp.float32)    # (C, Btile)
        mean = jnp.dot(gm, s1, preferred_element_type=jnp.float32)       # group mean
        ex2 = jnp.dot(gm, s2, preferred_element_type=jnp.float32)        # group E[x^2]
        var = ex2 - mean * mean
        rstd = lax.rsqrt(var + eps)
        scale = rstd * gamma                                             # (C, Btile)
        shift = beta - mean * scale                                      # (C, Btile)
        scale_f = jnp.dot(scale, eselt, preferred_element_type=jnp.float32)  # (C, L)
        shift_f = jnp.dot(shift, eselt, preferred_element_type=jnp.float32)  # (C, L)
        return jnp.maximum(h * scale_f + shift_f, 0.0)

    h1 = group_norm_relu(conv3x3(x, w1_ref[...]), b1, g1, bt1)           # (C, L)
    h2 = group_norm_relu(conv3x3(h1, w2_ref[...]), b2, g2, bt2)          # (C, L)

    # MaxPool2d(2): 2x2 window max at every position via two lane rolls; lanes that
    # picked up cross-row / cross-image values are never (even row, even col) corners,
    # and only corners are selected below.
    t = jnp.maximum(h2, pltpu.roll(h2, shift=L - 1, axis=1))             # max(x, x+1)
    t = jnp.maximum(t, pltpu.roll(t, shift=L - W, axis=1))               # max over 2x2
    t = t.astype(jnp.bfloat16)

    pool = pool_ref[...]                                                 # (HW, HWo) bf16
    pooled = jnp.concatenate(
        [jnp.dot(t[:, b * HW:(b + 1) * HW], pool, preferred_element_type=jnp.float32)
         for b in range(Btile)], axis=1)                                 # (C, Btile*HWo)
    out_ref[0] = pooled.astype(out_ref.dtype)


# ---------------------------------------------------------------------------
# Wrapper: layout plumbing + constant helper blocks
# ---------------------------------------------------------------------------
def unet_down_forward(x_nchw, params, *, batch_tile=None, groups=8, eps=1e-5):
    B, C_in, H, W = x_nchw.shape
    C_out = params["w1"].shape[0]
    HW, Ho, Wo = H * W, H // 2, W // 2
    HWo = Ho * Wo
    Gc = C_out // groups

    if batch_tile is None:
        batch_tile = 2 if B % 2 == 0 else 1
    Btile = batch_tile
    assert B % Btile == 0
    NB = B // Btile
    L = Btile * HW

    # NCHW -> (B, C, H*W): pure reshape, zero data movement.
    x = x_nchw.reshape(B, C_in, HW).astype(jnp.float32)

    # conv weights (Cout, Cin, 3, 3) -> im2col (Cout, 9*Cin), K ordered (tap, cin), bf16.
    w1 = jnp.transpose(params["w1"], (0, 2, 3, 1)).reshape(C_out, 9 * C_in).astype(jnp.bfloat16)
    w2 = jnp.transpose(params["w2"], (0, 2, 3, 1)).reshape(C_out, 9 * C_out).astype(jnp.bfloat16)

    # merged per-channel parameter vectors: (C_out, 8)
    zero = jnp.zeros((C_out,), jnp.float32)
    pv = jnp.stack([params["b1"], params["gn1_w"], params["gn1_b"],
                    params["b2"], params["gn2_w"], params["gn2_b"], zero, zero],
                   axis=1).astype(jnp.float32)

    # per-tap border validity masks, replicated per image in the lane-batched tile.
    yy = jnp.arange(HW) // W
    xx = jnp.arange(HW) % W
    mrows = []
    for k in range(9):
        dy, dx = k // 3 - 1, k % 3 - 1
        ok = (yy + dy >= 0) & (yy + dy < H) & (xx + dx >= 0) & (xx + dx < W)
        mrows.append(ok)
    masks = jnp.tile(jnp.stack(mrows).astype(jnp.float32), (1, Btile))      # (9, L)

    # lane <-> image selection / broadcast matrices (0/1).
    img = jnp.arange(L) // HW
    esel = (img[:, None] == jnp.arange(Btile)[None, :]).astype(jnp.float32)  # (L, Btile)
    eselt = jnp.transpose(esel)                                              # (Btile, L)

    # GroupNorm group-averaging matrix (per-image normalization: 1/(Gc*HW)).
    cgrp = jnp.arange(C_out) // Gc
    gm = (cgrp[:, None] == cgrp[None, :]).astype(jnp.float32) / float(Gc * HW)

    # MaxPool "select top-left corner of each 2x2 block" matrix, per image, bf16.
    # TODO(synk): replace with a strided-gather pool at large H*W (O(HW^2/4) VMEM).
    q = jnp.arange(HWo)
    src = 2 * (q // Wo) * W + 2 * (q % Wo)
    pool_sel = (jnp.arange(HW)[:, None] == src[None, :]).astype(jnp.bfloat16)  # (HW, HWo)

    kernel = functools.partial(unet_down_kernel, H=H, W=W, Btile=Btile, eps=eps)

    out = pl.pallas_call(
        kernel,
        out_shape=jax.ShapeDtypeStruct((NB, C_out, Btile * HWo), jnp.float32),
        grid=(NB,),
        in_specs=[
            pl.BlockSpec((Btile, C_in, HW), lambda i: (i, 0, 0)),       # x (Btile images)
            pl.BlockSpec((C_out, 9 * C_in), lambda i: (0, 0)),          # conv1 im2col wts
            pl.BlockSpec((C_out, 9 * C_out), lambda i: (0, 0)),         # conv2 im2col wts
            pl.BlockSpec((C_out, 8), lambda i: (0, 0)),                 # merged params
            pl.BlockSpec((9, L), lambda i: (0, 0)),                     # tap masks
            pl.BlockSpec((L, Btile), lambda i: (0, 0)),                 # lane->image sel
            pl.BlockSpec((Btile, L), lambda i: (0, 0)),                 # image->lane bcast
            pl.BlockSpec((C_out, C_out), lambda i: (0, 0)),             # group-mean mat
            pl.BlockSpec((HW, HWo), lambda i: (0, 0)),                  # pool selector
        ],
        out_specs=pl.BlockSpec((1, C_out, Btile * HWo), lambda i: (i, 0, 0)),
        compiler_params=pltpu.CompilerParams(
            dimension_semantics=("parallel",)),
    )(x, w1, w2, pv, masks, esel, eselt, gm, pool_sel)

    # (NB, C, Btile*HWo) -> NCHW; small pooled output, wrapper-side layout plumbing.
    out = out.reshape(NB, C_out, Btile, Ho, Wo)
    out = jnp.transpose(out, (0, 2, 1, 3, 4)).reshape(B, C_out, Ho, Wo)
    return out


# ---------------------------------------------------------------------------
# Pure-JAX reference (independent code path) for correctness checking
# ---------------------------------------------------------------------------
def unet_down_ref(x, params):
    eps = 1e-5

    def conv_gn_relu(inp, w, b, gamma, beta):
        y = lax.conv_general_dilated(
            inp, w, window_strides=(1, 1), padding=((1, 1), (1, 1)),
            dimension_numbers=("NCHW", "OIHW", "NCHW"),
            precision=lax.Precision.HIGHEST)
        y = y + b[None, :, None, None]
        B, C, H, W = y.shape
        yg = y.reshape(B, 8, C // 8, H, W)
        mean = jnp.mean(yg, axis=(2, 3, 4), keepdims=True)
        var = jnp.var(yg, axis=(2, 3, 4), keepdims=True)
        yn = ((yg - mean) / jnp.sqrt(var + eps)).reshape(B, C, H, W)
        return jnp.maximum(yn * gamma[None, :, None, None]
                           + beta[None, :, None, None], 0.0)

    h1 = conv_gn_relu(x, params["w1"], params["b1"],
                      params["gn1_w"], params["gn1_b"])
    h2 = conv_gn_relu(h1, params["w2"], params["b2"],
                      params["gn2_w"], params["gn2_b"])
    B, C, H, W = h2.shape
    return h2.reshape(B, C, H // 2, 2, W // 2, 2).max(axis=(3, 5))


# ---------------------------------------------------------------------------
if __name__ == "__main__":
    B, C_in, H, W = 2, 4, 16, 16
    C_out = 32          # GroupNorm(8, C_out) requires C_out % 8 == 0

    key = jax.random.PRNGKey(0)
    ks = jax.random.split(key, 9)

    x = jax.random.normal(ks[0], (B, C_in, H, W), dtype=jnp.float32)
    params = {
        "w1": 0.2 * jax.random.normal(ks[1], (C_out, C_in, 3, 3), jnp.float32),
        "b1": 0.1 * jax.random.normal(ks[2], (C_out,), jnp.float32),
        "gn1_w": 1.0 + 0.1 * jax.random.normal(ks[3], (C_out,), jnp.float32),
        "gn1_b": 0.1 * jax.random.normal(ks[4], (C_out,), jnp.float32),
        "w2": 0.1 * jax.random.normal(ks[5], (C_out, C_out, 3, 3), jnp.float32),
        "b2": 0.1 * jax.random.normal(ks[6], (C_out,), jnp.float32),
        "gn2_w": 1.0 + 0.1 * jax.random.normal(ks[7], (C_out,), jnp.float32),
        "gn2_b": 0.1 * jax.random.normal(ks[8], (C_out,), jnp.float32),
    }

    out = unet_down_forward(x, params)
    out = jax.block_until_ready(out)

    out_ref = unet_down_ref(x, params)
    out_ref = jax.block_until_ready(out_ref)

    assert out.shape == (B, C_out, H // 2, W // 2), out.shape
    # bf16 MXU operands (per perf review) vs. f32 HIGHEST-precision reference:
    # allow ~2% tolerance.
    max_err = float(jnp.max(jnp.abs(out - out_ref)))
    assert jnp.allclose(out, out_ref, rtol=2e-2, atol=2e-2), max_err
    print("KERNEL_OK")
</pallas_src>

<mosaic_0001>
module attributes {stable_mosaic.version = 11 : i64} {
  func.func @unet_down_kernel(%arg0: i32, %arg1: memref<2x4x256xf32, #tpu.memory_space<vmem>>, %arg2: memref<32x36xbf16, #tpu.memory_space<vmem>>, %arg3: memref<32x288xbf16, #tpu.memory_space<vmem>>, %arg4: memref<32x8xf32, #tpu.memory_space<vmem>>, %arg5: memref<9x512xf32, #tpu.memory_space<vmem>>, %arg6: memref<512x2xf32, #tpu.memory_space<vmem>>, %arg7: memref<2x512xf32, #tpu.memory_space<vmem>>, %arg8: memref<32x32xf32, #tpu.memory_space<vmem>>, %arg9: memref<256x64xbf16, #tpu.memory_space<vmem>>, %arg10: memref<1x32x128xf32, #tpu.memory_space<vmem>>) attributes {dimension_semantics = [#tpu.dimension_semantics<parallel>], iteration_bounds = array<i64: 1>, scalar_prefetch = 0 : i64, scratch_operands = 0 : i64, tpu.core_type = #tpu.core_type<tc>, window_params = [{transform_indices = @transform_0, window_bounds = array<i64: 2, 4, 256>}, {pipeline_mode = #tpu.pipeline_mode<synchronous>, transform_indices = @transform_1, window_bounds = array<i64: 32, 36>}, {pipeline_mode = #tpu.pipeline_mode<synchronous>, transform_indices = @transform_2, window_bounds = array<i64: 32, 288>}, {pipeline_mode = #tpu.pipeline_mode<synchronous>, transform_indices = @transform_3, window_bounds = array<i64: 32, 8>}, {pipeline_mode = #tpu.pipeline_mode<synchronous>, transform_indices = @transform_4, window_bounds = array<i64: 9, 512>}, {pipeline_mode = #tpu.pipeline_mode<synchronous>, transform_indices = @transform_5, window_bounds = array<i64: 512, 2>}, {pipeline_mode = #tpu.pipeline_mode<synchronous>, transform_indices = @transform_6, window_bounds = array<i64: 2, 512>}, {pipeline_mode = #tpu.pipeline_mode<synchronous>, transform_indices = @transform_7, window_bounds = array<i64: 32, 32>}, {pipeline_mode = #tpu.pipeline_mode<synchronous>, transform_indices = @transform_8, window_bounds = array<i64: 256, 64>}, {transform_indices = @transform_9, window_bounds = array<i64: 1, 32, 128>}]} {
    %c0 = arith.constant 0 : index
    %c0_0 = arith.constant 0 : index
    %0 = vector.load %arg5[%c0, %c0_0] : memref<9x512xf32, #tpu.memory_space<vmem>>, vector<9x512xf32>
    %c0_1 = arith.constant 0 : index
    %c0_2 = arith.constant 0 : index
    %1 = vector.load %arg6[%c0_1, %c0_2] : memref<512x2xf32, #tpu.memory_space<vmem>>, vector<512x2xf32>
    %c0_3 = arith.constant 0 : index
    %c0_4 = arith.constant 0 : index
    %2 = vector.load %arg7[%c0_3, %c0_4] : memref<2x512xf32, #tpu.memory_space<vmem>>, vector<2x512xf32>
    %c0_5 = arith.constant 0 : index
    %c0_6 = arith.constant 0 : index
    %3 = vector.load %arg8[%c0_5, %c0_6] : memref<32x32xf32, #tpu.memory_space<vmem>>, vector<32x32xf32>
    %c0_7 = arith.constant 0 : index
    %c0_8 = arith.constant 0 : index
    %4 = vector.load %arg4[%c0_7, %c0_8] : memref<32x8xf32, #tpu.memory_space<vmem>>, vector<32x8xf32>
    %5 = vector.extract_strided_slice %4 {offsets = [0, 0], sizes = [32, 1], strides = [1, 1]} : vector<32x8xf32> to vector<32x1xf32>
    %6 = vector.extract_strided_slice %4 {offsets = [0, 1], sizes = [32, 1], strides = [1, 1]} : vector<32x8xf32> to vector<32x1xf32>
    %7 = vector.extract_strided_slice %4 {offsets = [0, 2], sizes = [32, 1], strides = [1, 1]} : vector<32x8xf32> to vector<32x1xf32>
    %8 = vector.extract_strided_slice %4 {offsets = [0, 3], sizes = [32, 1], strides = [1, 1]} : vector<32x8xf32> to vector<32x1xf32>
    %9 = vector.extract_strided_slice %4 {offsets = [0, 4], sizes = [32, 1], strides = [1, 1]} : vector<32x8xf32> to vector<32x1xf32>
    %10 = vector.extract_strided_slice %4 {offsets = [0, 5], sizes = [32, 1], strides = [1, 1]} : vector<32x8xf32> to vector<32x1xf32>
    %c0_9 = arith.constant 0 : index
    %c0_10 = arith.constant 0 : index
    %c0_11 = arith.constant 0 : index
    %11 = vector.load %arg1[%c0_9, %c0_10, %c0_11] : memref<2x4x256xf32, #tpu.memory_space<vmem>>, vector<1x4x256xf32>
    %12 = vector.shape_cast %11 : vector<1x4x256xf32> to vector<4x256xf32>
    %c1 = arith.constant 1 : index
    %c0_12 = arith.constant 0 : index
    %c0_13 = arith.constant 0 : index
    %13 = vector.load %arg1[%c1, %c0_12, %c0_13] : memref<2x4x256xf32, #tpu.memory_space<vmem>>, vector<1x4x256xf32>
    %14 = vector.shape_cast %13 : vector<1x4x256xf32> to vector<4x256xf32>
    %15 = tpu.concatenate %12, %14 in 1 : vector<4x256xf32>, vector<4x256xf32> -> vector<4x512xf32>
    %c0_14 = arith.constant 0 : index
    %c0_15 = arith.constant 0 : index
    %16 = vector.load %arg2[%c0_14, %c0_15] : memref<32x36xbf16, #tpu.memory_space<vmem>>, vector<32x36xbf16>
    %c17_i32 = arith.constant 17 : i32
    %17 = tpu.dynamic_rotate %15 by %c17_i32 dim 1 : vector<4x512xf32>, i32 -> vector<4x512xf32>
    %18 = vector.extract_strided_slice %0 {offsets = [0, 0], sizes = [1, 512], strides = [1, 1]} : vector<9x512xf32> to vector<1x512xf32>
    %19 = vector.broadcast %18 : vector<1x512xf32> to vector<4x512xf32>
    %20 = arith.mulf %17, %19 : vector<4x512xf32>
    %c16_i32 = arith.constant 16 : i32
    %21 = tpu.dynamic_rotate %15 by %c16_i32 dim 1 : vector<4x512xf32>, i32 -> vector<4x512xf32>
    %22 = vector.extract_strided_slice %0 {offsets = [1, 0], sizes = [1, 512], strides = [1, 1]} : vector<9x512xf32> to vector<1x512xf32>
    %23 = vector.broadcast %22 : vector<1x512xf32> to vector<4x512xf32>
    %24 = arith.mulf %21, %23 : vector<4x512xf32>
    %c15_i32 = arith.constant 15 : i32
    %25 = tpu.dynamic_rotate %15 by %c15_i32 dim 1 : vector<4x512xf32>, i32 -> vector<4x512xf32>
    %26 = vector.extract_strided_slice %0 {offsets = [2, 0], sizes = [1, 512], strides = [1, 1]} : vector<9x512xf32> to vector<1x512xf32>
    %27 = vector.broadcast %26 : vector<1x512xf32> to vector<4x512xf32>
    %28 = arith.mulf %25, %27 : vector<4x512xf32>
    %c1_i32 = arith.constant 1 : i32
    %29 = tpu.dynamic_rotate %15 by %c1_i32 dim 1 : vector<4x512xf32>, i32 -> vector<4x512xf32>
    %30 = vector.extract_strided_slice %0 {offsets = [3, 0], sizes = [1, 512], strides = [1, 1]} : vector<9x512xf32> to vector<1x512xf32>
    %31 = vector.broadcast %30 : vector<1x512xf32> to vector<4x512xf32>
    %32 = arith.mulf %29, %31 : vector<4x512xf32>
    %c511_i32 = arith.constant 511 : i32
    %33 = tpu.dynamic_rotate %15 by %c511_i32 dim 1 : vector<4x512xf32>, i32 -> vector<4x512xf32>
    %34 = vector.extract_strided_slice %0 {offsets = [5, 0], sizes = [1, 512], strides = [1, 1]} : vector<9x512xf32> to vector<1x512xf32>
    %35 = vector.broadcast %34 : vector<1x512xf32> to vector<4x512xf32>
    %36 = arith.mulf %33, %35 : vector<4x512xf32>
    %c497_i32 = arith.constant 497 : i32
    %37 = tpu.dynamic_rotate %15 by %c497_i32 dim 1 : vector<4x512xf32>, i32 -> vector<4x512xf32>
    %38 = vector.extract_strided_slice %0 {offsets = [6, 0], sizes = [1, 512], strides = [1, 1]} : vector<9x512xf32> to vector<1x512xf32>
    %39 = vector.broadcast %38 : vector<1x512xf32> to vector<4x512xf32>
    %40 = arith.mulf %37, %39 : vector<4x512xf32>
    %c496_i32 = arith.constant 496 : i32
    %41 = tpu.dynamic_rotate %15 by %c496_i32 dim 1 : vector<4x512xf32>, i32 -> vector<4x512xf32>
    %42 = vector.extract_strided_slice %0 {offsets = [7, 0], sizes = [1, 512], strides = [1, 1]} : vector<9x512xf32> to vector<1x512xf32>
    %43 = vector.broadcast %42 : vector<1x512xf32> to vector<4x512xf32>
    %44 = arith.mulf %41, %43 : vector<4x512xf32>
    %c495_i32 = arith.constant 495 : i32
    %45 = tpu.dynamic_rotate %15 by %c495_i32 dim 1 : vector<4x512xf32>, i32 -> vector<4x512xf32>
    %46 = vector.extract_strided_slice %0 {offsets = [8, 0], sizes = [1, 512], strides = [1, 1]} : vector<9x512xf32> to vector<1x512xf32>
    %47 = vector.broadcast %46 : vector<1x512xf32> to vector<4x512xf32>
    %48 = arith.mulf %45, %47 : vector<4x512xf32>
    %49 = tpu.concatenate %20, %24, %28, %32, %15, %36, %40, %44, %48 in 0 : vector<4x512xf32>, vector<4x512xf32>, vector<4x512xf32>, vector<4x512xf32>, vector<4x512xf32>, vector<4x512xf32>, vector<4x512xf32>, vector<4x512xf32>, vector<4x512xf32> -> vector<36x512xf32>
    %50 = arith.truncf %49 : vector<36x512xf32> to vector<36x512xbf16>
    %cst = arith.constant dense<0.000000e+00> : vector<32x512xf32>
    %51 = tpu.matmul %16, %50, %cst {dimension_numbers = #tpu.dot_dimension_numbers<[1], [0], [0], [1], [0, 0, 1, 1], [], []>} : vector<32x36xbf16>, vector<36x512xbf16>, vector<32x512xf32> -> vector<32x512xf32>
    %52 = vector.broadcast %5 : vector<32x1xf32> to vector<32x512xf32>
    %53 = arith.addf %51, %52 : vector<32x512xf32>
    %cst_16 = arith.constant dense<0.000000e+00> : vector<32x2xf32>
    %54 = tpu.matmul %53, %1, %cst_16 {dimension_numbers = #tpu.dot_dimension_numbers<[1], [0], [0], [1], [0, 0, 1, 1], [], []>} : vector<32x512xf32>, vector<512x2xf32>, vector<32x2xf32> -> vector<32x2xf32>
    %55 = arith.mulf %53, %53 : vector<32x512xf32>
    %cst_17 = arith.constant dense<0.000000e+00> : vector<32x2xf32>
    %56 = tpu.matmul %55, %1, %cst_17 {dimension_numbers = #tpu.dot_dimension_numbers<[1], [0], [0], [1], [0, 0, 1, 1], [], []>} : vector<32x512xf32>, vector<512x2xf32>, vector<32x2xf32> -> vector<32x2xf32>
    %cst_18 = arith.constant dense<0.000000e+00> : vector<32x2xf32>
    %57 = tpu.matmul %3, %54, %cst_18 {dimension_numbers = #tpu.dot_dimension_numbers<[1], [0], [0], [1], [0, 0, 1, 1], [], []>} : vector<32x32xf32>, vector<32x2xf32>, vector<32x2xf32> -> vector<32x2xf32>
    %cst_19 = arith.constant dense<0.000000e+00> : vector<32x2xf32>
    %58 = tpu.matmul %3, %56, %cst_19 {dimension_numbers = #tpu.dot_dimension_numbers<[1], [0], [0], [1], [0, 0, 1, 1], [], []>} : vector<32x32xf32>, vector<32x2xf32>, vector<32x2xf32> -> vector<32x2xf32>
    %59 = arith.mulf %57, %57 : vector<32x2xf32>
    %60 = arith.subf %58, %59 : vector<32x2xf32>
    %cst_20 = arith.constant 9.99999974E-6 : f32
    %61 = vector.broadcast %cst_20 : f32 to vector<32x2xf32>
    %62 = arith.addf %60, %61 : vector<32x2xf32>
    %63 = math.rsqrt %62 : vector<32x2xf32>
    %64 = vector.broadcast %6 : vector<32x1xf32> to vector<32x2xf32>
    %65 = arith.mulf %63, %64 : vector<32x2xf32>
    %66 = arith.mulf %57, %65 : vector<32x2xf32>
    %67 = vector.broadcast %7 : vector<32x1xf32> to vector<32x2xf32>
    %68 = arith.subf %67, %66 : vector<32x2xf32>
    %cst_21 = arith.constant dense<0.000000e+00> : vector<32x512xf32>
    %69 = tpu.matmul %65, %2, %cst_21 {dimension_numbers = #tpu.dot_dimension_numbers<[1], [0], [0], [1], [0, 0, 1, 1], [], []>} : vector<32x2xf32>, vector<2x512xf32>, vector<32x512xf32> -> vector<32x512xf32>
    %cst_22 = arith.constant dense<0.000000e+00> : vector<32x512xf32>
    %70 = tpu.matmul %68, %2, %cst_22 {dimension_numbers = #tpu.dot_dimension_numbers<[1], [0], [0], [1], [0, 0, 1, 1], [], []>} : vector<32x2xf32>, vector<2x512xf32>, vector<32x512xf32> -> vector<32x512xf32>
    %71 = arith.mulf %53, %69 : vector<32x512xf32>
    %72 = arith.addf %71, %70 : vector<32x512xf32>
    %cst_23 = arith.constant 0.000000e+00 : f32
    %73 = vector.broadcast %cst_23 : f32 to vector<32x512xf32>
    %74 = arith.maximumf %72, %73 : vector<32x512xf32>
    %c0_24 = arith.constant 0 : index
    %c0_25 = arith.constant 0 : index
    %75 = vector.load %arg3[%c0_24, %c0_25] : memref<32x288xbf16, #tpu.memory_space<vmem>>, vector<32x288xbf16>
    %c17_i32_26 = arith.constant 17 : i32
    %76 = tpu.dynamic_rotate %74 by %c17_i32_26 dim 1 : vector<32x512xf32>, i32 -> vector<32x512xf32>
    %77 = vector.extract_strided_slice %0 {offsets = [0, 0], sizes = [1, 512], strides = [1, 1]} : vector<9x512xf32> to vector<1x512xf32>
    %78 = vector.broadcast %77 : vector<1x512xf32> to vector<32x512xf32>
    %79 = arith.mulf %76, %78 : vector<32x512xf32>
    %c16_i32_27 = arith.constant 16 : i32
    %80 = tpu.dynamic_rotate %74 by %c16_i32_27 dim 1 : vector<32x512xf32>, i32 -> vector<32x512xf32>
    %81 = vector.extract_strided_slice %0 {offsets = [1, 0], sizes = [1, 512], strides = [1, 1]} : vector<9x512xf32> to vector<1x512xf32>
    %82 = vector.broadcast %81 : vector<1x512xf32> to vector<32x512xf32>
    %83 = arith.mulf %80, %82 : vector<32x512xf32>
    %c15_i32_28 = arith.constant 15 : i32
    %84 = tpu.dynamic_rotate %74 by %c15_i32_28 dim 1 : vector<32x512xf32>, i32 -> vector<32x512xf32>
    %85 = vector.extract_strided_slice %0 {offsets = [2, 0], sizes = [1, 512], strides = [1, 1]} : vector<9x512xf32> to vector<1x512xf32>
    %86 = vector.broadcast %85 : vector<1x512xf32> to vector<32x512xf32>
    %87 = arith.mulf %84, %86 : vector<32x512xf32>
    %c1_i32_29 = arith.constant 1 : i32
    %88 = tpu.dynamic_rotate %74 by %c1_i32_29 dim 1 : vector<32x512xf32>, i32 -> vector<32x512xf32>
    %89 = vector.extract_strided_slice %0 {offsets = [3, 0], sizes = [1, 512], strides = [1, 1]} : vector<9x512xf32> to vector<1x512xf32>
    %90 = vector.broadcast %89 : vector<1x512xf32> to vector<32x512xf32>
    %91 = arith.mulf %88, %90 : vector<32x512xf32>
    %c511_i32_30 = arith.constant 511 : i32
    %92 = tpu.dynamic_rotate %74 by %c511_i32_30 dim 1 : vector<32x512xf32>, i32 -> vector<32x512xf32>
    %93 = vector.extract_strided_slice %0 {offsets = [5, 0], sizes = [1, 512], strides = [1, 1]} : vector<9x512xf32> to vector<1x512xf32>
    %94 = vector.broadcast %93 : vector<1x512xf32> to vector<32x512xf32>
    %95 = arith.mulf %92, %94 : vector<32x512xf32>
    %c497_i32_31 = arith.constant 497 : i32
    %96 = tpu.dynamic_rotate %74 by %c497_i32_31 dim 1 : vector<32x512xf32>, i32 -> vector<32x512xf32>
    %97 = vector.extract_strided_slice %0 {offsets = [6, 0], sizes = [1, 512], strides = [1, 1]} : vector<9x512xf32> to vector<1x512xf32>
    %98 = vector.broadcast %97 : vector<1x512xf32> to vector<32x512xf32>
    %99 = arith.mulf %96, %98 : vector<32x512xf32>
    %c496_i32_32 = arith.constant 496 : i32
    %100 = tpu.dynamic_rotate %74 by %c496_i32_32 dim 1 : vector<32x512xf32>, i32 -> vector<32x512xf32>
    %101 = vector.extract_strided_slice %0 {offsets = [7, 0], sizes = [1, 512], strides = [1, 1]} : vector<9x512xf32> to vector<1x512xf32>
    %102 = vector.broadcast %101 : vector<1x512xf32> to vector<32x512xf32>
    %103 = arith.mulf %100, %102 : vector<32x512xf32>
    %c495_i32_33 = arith.constant 495 : i32
    %104 = tpu.dynamic_rotate %74 by %c495_i32_33 dim 1 : vector<32x512xf32>, i32 -> vector<32x512xf32>
    %105 = vector.extract_strided_slice %0 {offsets = [8, 0], sizes = [1, 512], strides = [1, 1]} : vector<9x512xf32> to vector<1x512xf32>
    %106 = vector.broadcast %105 : vector<1x512xf32> to vector<32x512xf32>
    %107 = arith.mulf %104, %106 : vector<32x512xf32>
    %108 = tpu.concatenate %79, %83, %87, %91, %74, %95, %99, %103, %107 in 0 : vector<32x512xf32>, vector<32x512xf32>, vector<32x512xf32>, vector<32x512xf32>, vector<32x512xf32>, vector<32x512xf32>, vector<32x512xf32>, vector<32x512xf32>, vector<32x512xf32> -> vector<288x512xf32>
    %109 = arith.truncf %108 : vector<288x512xf32> to vector<288x512xbf16>
    %cst_34 = arith.constant dense<0.000000e+00> : vector<32x512xf32>
    %110 = tpu.matmul %75, %109, %cst_34 {dimension_numbers = #tpu.dot_dimension_numbers<[1], [0], [0], [1], [0, 0, 1, 1], [], []>} : vector<32x288xbf16>, vector<288x512xbf16>, vector<32x512xf32> -> vector<32x512xf32>
    %111 = vector.broadcast %8 : vector<32x1xf32> to vector<32x512xf32>
    %112 = arith.addf %110, %111 : vector<32x512xf32>
    %cst_35 = arith.constant dense<0.000000e+00> : vector<32x2xf32>
    %113 = tpu.matmul %112, %1, %cst_35 {dimension_numbers = #tpu.dot_dimension_numbers<[1], [0], [0], [1], [0, 0, 1, 1], [], []>} : vector<32x512xf32>, vector<512x2xf32>, vector<32x2xf32> -> vector<32x2xf32>
    %114 = arith.mulf %112, %112 : vector<32x512xf32>
    %cst_36 = arith.constant dense<0.000000e+00> : vector<32x2xf32>
    %115 = tpu.matmul %114, %1, %cst_36 {dimension_numbers = #tpu.dot_dimension_numbers<[1], [0], [0], [1], [0, 0, 1, 1], [], []>} : vector<32x512xf32>, vector<512x2xf32>, vector<32x2xf32> -> vector<32x2xf32>
    %cst_37 = arith.constant dense<0.000000e+00> : vector<32x2xf32>
    %116 = tpu.matmul %3, %113, %cst_37 {dimension_numbers = #tpu.dot_dimension_numbers<[1], [0], [0], [1], [0, 0, 1, 1], [], []>} : vector<32x32xf32>, vector<32x2xf32>, vector<32x2xf32> -> vector<32x2xf32>
    %cst_38 = arith.constant dense<0.000000e+00> : vector<32x2xf32>
    %117 = tpu.matmul %3, %115, %cst_38 {dimension_numbers = #tpu.dot_dimension_numbers<[1], [0], [0], [1], [0, 0, 1, 1], [], []>} : vector<32x32xf32>, vector<32x2xf32>, vector<32x2xf32> -> vector<32x2xf32>
    %118 = arith.mulf %116, %116 : vector<32x2xf32>
    %119 = arith.subf %117, %118 : vector<32x2xf32>
    %cst_39 = arith.constant 9.99999974E-6 : f32
    %120 = vector.broadcast %cst_39 : f32 to vector<32x2xf32>
    %121 = arith.addf %119, %120 : vector<32x2xf32>
    %122 = math.rsqrt %121 : vector<32x2xf32>
    %123 = vector.broadcast %9 : vector<32x1xf32> to vector<32x2xf32>
    %124 = arith.mulf %122, %123 : vector<32x2xf32>
    %125 = arith.mulf %116, %124 : vector<32x2xf32>
    %126 = vector.broadcast %10 : vector<32x1xf32> to vector<32x2xf32>
    %127 = arith.subf %126, %125 : vector<32x2xf32>
    %cst_40 = arith.constant dense<0.000000e+00> : vector<32x512xf32>
    %128 = tpu.matmul %124, %2, %cst_40 {dimension_numbers = #tpu.dot_dimension_numbers<[1], [0], [0], [1], [0, 0, 1, 1], [], []>} : vector<32x2xf32>, vector<2x512xf32>, vector<32x512xf32> -> vector<32x512xf32>
    %cst_41 = arith.constant dense<0.000000e+00> : vector<32x512xf32>
    %129 = tpu.matmul %127, %2, %cst_41 {dimension_numbers = #tpu.dot_dimension_numbers<[1], [0], [0], [1], [0, 0, 1, 1], [], []>} : vector<32x2xf32>, vector<2x512xf32>, vector<32x512xf32> -> vector<32x512xf32>
    %130 = arith.mulf %112, %128 : vector<32x512xf32>
    %131 = arith.addf %130, %129 : vector<32x512xf32>
    %cst_42 = arith.constant 0.000000e+00 : f32
    %132 = vector.broadcast %cst_42 : f32 to vector<32x512xf32>
    %133 = arith.maximumf %131, %132 : vector<32x512xf32>
    %c511_i32_43 = arith.constant 511 : i32
    %134 = tpu.dynamic_rotate %133 by %c511_i32_43 dim 1 : vector<32x512xf32>, i32 -> vector<32x512xf32>
    %135 = arith.maximumf %133, %134 : vector<32x512xf32>
    %c496_i32_44 = arith.constant 496 : i32
    %136 = tpu.dynamic_rotate %135 by %c496_i32_44 dim 1 : vector<32x512xf32>, i32 -> vector<32x512xf32>
    %137 = arith.maximumf %135, %136 : vector<32x512xf32>
    %138 = arith.truncf %137 : vector<32x512xf32> to vector<32x512xbf16>
    %c0_45 = arith.constant 0 : index
    %c0_46 = arith.constant 0 : index
    %139 = vector.load %arg9[%c0_45, %c0_46] : memref<256x64xbf16, #tpu.memory_space<vmem>>, vector<256x64xbf16>
    %140 = vector.extract_strided_slice %138 {offsets = [0, 0], sizes = [32, 256], strides = [1, 1]} : vector<32x512xbf16> to vector<32x256xbf16>
    %cst_47 = arith.constant dense<0.000000e+00> : vector<32x64xf32>
    %141 = tpu.matmul %140, %139, %cst_47 {dimension_numbers = #tpu.dot_dimension_numbers<[1], [0], [0], [1], [0, 0, 1, 1], [], []>} : vector<32x256xbf16>, vector<256x64xbf16>, vector<32x64xf32> -> vector<32x64xf32>
    %142 = vector.extract_strided_slice %138 {offsets = [0, 256], sizes = [32, 256], strides = [1, 1]} : vector<32x512xbf16> to vector<32x256xbf16>
    %cst_48 = arith.constant dense<0.000000e+00> : vector<32x64xf32>
    %143 = tpu.matmul %142, %139, %cst_48 {dimension_numbers = #tpu.dot_dimension_numbers<[1], [0], [0], [1], [0, 0, 1, 1], [], []>} : vector<32x256xbf16>, vector<256x64xbf16>, vector<32x64xf32> -> vector<32x64xf32>
    %144 = tpu.concatenate %141, %143 in 1 : vector<32x64xf32>, vector<32x64xf32> -> vector<32x128xf32>
    %c0_49 = arith.constant 0 : index
    %c0_50 = arith.constant 0 : index
    %c0_51 = arith.constant 0 : index
    %145 = vector.load %arg10[%c0_49, %c0_50, %c0_51] : memref<1x32x128xf32, #tpu.memory_space<vmem>>, vector<1x32x128xf32>
    %146 = vector.shape_cast %145 : vector<1x32x128xf32> to vector<32x128xf32>
    %147 = vector.shape_cast %144 : vector<32x128xf32> to vector<1x32x128xf32>
    tpu.vector_store %arg10[%c0_49, %c0_50, %c0_51], %147 {strides = array<i32>} : memref<1x32x128xf32, #tpu.memory_space<vmem>>, vector<1x32x128xf32>,
    return
  }
  func.func @transform_0(%arg0: i32) -> (i32, i32, i32) {
    %c0_i32 = arith.constant 0 : i32
    %c0_i32_0 = arith.constant 0 : i32
    %c0_i32_1 = arith.constant 0 : i32
    return %arg0, %c0_i32, %c0_i32_0 : i32, i32, i32
  }
  func.func @transform_1(%arg0: i32) -> (i32, i32) {
    %c0_i32 = arith.constant 0 : i32
    %c0_i32_0 = arith.constant 0 : i32
    %c0_i32_1 = arith.constant 0 : i32
    return %c0_i32, %c0_i32_0 : i32, i32
  }
  func.func @transform_2(%arg0: i32) -> (i32, i32) {
    %c0_i32 = arith.constant 0 : i32
    %c0_i32_0 = arith.constant 0 : i32
    %c0_i32_1 = arith.constant 0 : i32
    return %c0_i32, %c0_i32_0 : i32, i32
  }
  func.func @transform_3(%arg0: i32) -> (i32, i32) {
    %c0_i32 = arith.constant 0 : i32
    %c0_i32_0 = arith.constant 0 : i32
    %c0_i32_1 = arith.constant 0 : i32
    return %c0_i32, %c0_i32_0 : i32, i32
  }
  func.func @transform_4(%arg0: i32) -> (i32, i32) {
    %c0_i32 = arith.constant 0 : i32
    %c0_i32_0 = arith.constant 0 : i32
    %c0_i32_1 = arith.constant 0 : i32
    return %c0_i32, %c0_i32_0 : i32, i32
  }
  func.func @transform_5(%arg0: i32) -> (i32, i32) {
    %c0_i32 = arith.constant 0 : i32
    %c0_i32_0 = arith.constant 0 : i32
    %c0_i32_1 = arith.constant 0 : i32
    return %c0_i32, %c0_i32_0 : i32, i32
  }
  func.func @transform_6(%arg0: i32) -> (i32, i32) {
    %c0_i32 = arith.constant 0 : i32
    %c0_i32_0 = arith.constant 0 : i32
    %c0_i32_1 = arith.constant 0 : i32
    return %c0_i32, %c0_i32_0 : i32, i32
  }
  func.func @transform_7(%arg0: i32) -> (i32, i32) {
    %c0_i32 = arith.constant 0 : i32
    %c0_i32_0 = arith.constant 0 : i32
    %c0_i32_1 = arith.constant 0 : i32
    return %c0_i32, %c0_i32_0 : i32, i32
  }
  func.func @transform_8(%arg0: i32) -> (i32, i32) {
    %c0_i32 = arith.constant 0 : i32
    %c0_i32_0 = arith.constant 0 : i32
    %c0_i32_1 = arith.constant 0 : i32
    return %c0_i32, %c0_i32_0 : i32, i32
  }
  func.func @transform_9(%arg0: i32) -> (i32, i32, i32) {
    %c0_i32 = arith.constant 0 : i32
    %c0_i32_0 = arith.constant 0 : i32
    %c0_i32_1 = arith.constant 0 : i32
    return %arg0, %c0_i32, %c0_i32_0 : i32, i32, i32
  }
}

</mosaic_0001>

<llo_original>
// kernel: tpu_custom_call.1
$region0: #{tpu_custom_call.1}
  #allocation0 [shape = 'u32[]', space=smem, size = 0x4, offset = 0x4, fixed_abs, tag = 'smem constant byte address 0x4 - core index']
  #allocation1 [shape = 'u32[144,128]{1,0:T(1,128)}', space=vmem, size = 0x12000, scoped, tag = 'internal scratch']
  %s0 = inlined_call_operand.vmem [shape: f32[2,4,256], index: 0, kind: input, shape index: {}]
  %s1 = inlined_call_operand.vmem [shape: bf16[32,36], index: 1, kind: input, shape index: {}]
  %s2 = inlined_call_operand.vmem [shape: bf16[32,288], index: 2, kind: input, shape index: {}]
  %s3 = inlined_call_operand.vmem [shape: f32[32,8], index: 3, kind: input, shape index: {}]
  %s4 = inlined_call_operand.vmem [shape: f32[9,512], index: 4, kind: input, shape index: {}]
  %s5 = inlined_call_operand.vmem [shape: f32[512,2], index: 5, kind: input, shape index: {}]
  %s6 = inlined_call_operand.vmem [shape: f32[2,512], index: 6, kind: input, shape index: {}]
  %s7 = inlined_call_operand.vmem [shape: f32[32,32], index: 7, kind: input, shape index: {}]
  %s8 = inlined_call_operand.vmem [shape: bf16[256,64], index: 8, kind: input, shape index: {}]
  %s9 = inlined_call_operand.hbm [shape: f32[1,32,128], index: 9, kind: output, shape index: {}]
  %s10 = sld [smem:[#allocation0]]
  $region46: #{tpu_custom_call.1} parent=0
    _
  %s12 = ssub.s32 1, %s10
  %s13 = scalar_select 0, %s12, %s10
  $region1: #{tpu_custom_call.1} parent=0
    #allocation2 [shape = 'u8[16384]{0}', space=vmem, size = 0x4000, scoped, tag = 'output window, operand 0, single buffered']
    #allocation3 [shape = 's32[1]{0}', space=sflag, size = 0x4, scoped, tag = 'scoped memory for tpu_custom_call.1']
    %14 = vsyncpa [#allocation3], 0
    // Predicated region
    $region2: #{tpu_custom_call.1} parent=1 // pred_check
      _
    $region3: #{tpu_custom_call.1} parent=1 // pred_check_branch
      %16 = sbr.rel (0) target = $region5
    $region4: #{tpu_custom_call.1} parent=1 // pred_region
      _
    $region5: #{tpu_custom_call.1} parent=1 // pred_fallthru
      _
    // Predicated region
    $region6: #{tpu_custom_call.1} parent=1 // pred_check
      _
    $region7: #{tpu_custom_call.1} parent=1 // pred_check_branch
      %18 = sbr.rel (0) target = $region9
    $region8: #{tpu_custom_call.1} parent=1 // pred_region
      _
    $region9: #{tpu_custom_call.1} parent=1 // pred_fallthru
      _
    // Predicated region
    $region10: #{tpu_custom_call.1} parent=1 // pred_check
      _
    $region11: #{tpu_custom_call.1} parent=1 // pred_check_branch
      %20 = sbr.rel (0) target = $region13
    $region12: #{tpu_custom_call.1} parent=1 // pred_region
      _
    $region13: #{tpu_custom_call.1} parent=1 // pred_fallthru
      _
    // Predicated region
    $region14: #{tpu_custom_call.1} parent=1 // pred_check
      _
    $region15: #{tpu_custom_call.1} parent=1 // pred_check_branch
      %22 = sbr.rel (0) target = $region17
    $region16: #{tpu_custom_call.1} parent=1 // pred_region
      _
    $region17: #{tpu_custom_call.1} parent=1 // pred_fallthru
      _
    // Predicated region
    $region18: #{tpu_custom_call.1} parent=1 // pred_check
      _
    $region19: #{tpu_custom_call.1} parent=1 // pred_check_branch
      %24 = sbr.rel (0) target = $region21
    $region20: #{tpu_custom_call.1} parent=1 // pred_region
      _
    $region21: #{tpu_custom_call.1} parent=1 // pred_fallthru
      _
    // Predicated region
    $region22: #{tpu_custom_call.1} parent=1 // pred_check
      _
    $region23: #{tpu_custom_call.1} parent=1 // pred_check_branch
      %26 = sbr.rel (0) target = $region25
    $region24: #{tpu_custom_call.1} parent=1 // pred_region
      _
    $region25: #{tpu_custom_call.1} parent=1 // pred_fallthru
      _
    // Predicated region
    $region26: #{tpu_custom_call.1} parent=1 // pred_check
      _
    $region27: #{tpu_custom_call.1} parent=1 // pred_check_branch
      %28 = sbr.rel (0) target = $region29
    $region28: #{tpu_custom_call.1} parent=1 // pred_region
      _
    $region29: #{tpu_custom_call.1} parent=1 // pred_fallthru
      _
    // Predicated region
    $region30: #{tpu_custom_call.1} parent=1 // pred_check
      _
    $region31: #{tpu_custom_call.1} parent=1 // pred_check_branch
      %30 = sbr.rel (0) target = $region33
    $region32: #{tpu_custom_call.1} parent=1 // pred_region
      _
    $region33: #{tpu_custom_call.1} parent=1 // pred_fallthru
      _
    // Predicated region
    $region34: #{tpu_custom_call.1} parent=1 // pred_check
      _
    $region35: #{tpu_custom_call.1} parent=1 // pred_check_branch
      %32 = sbr.rel (0) target = $region37
    $region36: #{tpu_custom_call.1} parent=1 // pred_region
      _
    $region37: #{tpu_custom_call.1} parent=1 // pred_fallthru
      _
    %v34 = vld [vmem:[%s4] sm:$0xff]
    %v35 = vld [vmem:[%s4 + $0x8] sm:$0xff]
    %v36 = vld [vmem:[%s4 + $0x10] sm:$0xff]
    %v37 = vld [vmem:[%s4 + $0x18] sm:$0xff]
    %v38 = vld [vmem:[%s4 + $0x20] sm:$0x1]
    %v39 = vld [vmem:[%s4 + $0x28] sm:$0x1]
    %v40 = vld [vmem:[%s4 + $0x30] sm:$0x1]
    %v41 = vld [vmem:[%s4 + $0x38] sm:$0x1]
    %v42 = vld [vmem:[%s5] sm:$0xff]
    %v43 = vld [vmem:[%s5 + $0x8] sm:$0xff]
    %v44 = vld [vmem:[%s5 + $0x10] sm:$0xff]
    %v45 = vld [vmem:[%s5 + $0x18] sm:$0xff]
    %v46 = vld [vmem:[%s5 + $0x20] sm:$0xff]
    %v47 = vld [vmem:[%s5 + $0x28] sm:$0xff]
    %v48 = vld [vmem:[%s5 + $0x30] sm:$0xff]
    %v49 = vld [vmem:[%s5 + $0x38] sm:$0xff]
    %v50 = vld [vmem:[%s5 + $0x40] sm:$0xff]
    %v51 = vld [vmem:[%s5 + $0x48] sm:$0xff]
    %v52 = vld [vmem:[%s5 + $0x50] sm:$0xff]
    %v53 = vld [vmem:[%s5 + $0x58] sm:$0xff]
    %v54 = vld [vmem:[%s5 + $0x60] sm:$0xff]
    %v55 = vld [vmem:[%s5 + $0x68] sm:$0xff]
    %v56 = vld [vmem:[%s5 + $0x70] sm:$0xff]
    %v57 = vld [vmem:[%s5 + $0x78] sm:$0xff]
    %v58 = vld [vmem:[%s5 + $0x80] sm:$0xff]
    %v59 = vld [vmem:[%s5 + $0x88] sm:$0xff]
    %v60 = vld [vmem:[%s5 + $0x90] sm:$0xff]
    %v61 = vld [vmem:[%s5 + $0x98] sm:$0xff]
    %v62 = vld [vmem:[%s5 + $0xa0] sm:$0xff]
    %v63 = vld [vmem:[%s5 + $0xa8] sm:$0xff]
    %v64 = vld [vmem:[%s5 + $0xb0] sm:$0xff]
    %v65 = vld [vmem:[%s5 + $0xb8] sm:$0xff]
    %v66 = vld [vmem:[%s5 + $0xc0] sm:$0xff]
    %v67 = vld [vmem:[%s5 + $0xc8] sm:$0xff]
    %v68 = vld [vmem:[%s5 + $0xd0] sm:$0xff]
    %v69 = vld [vmem:[%s5 + $0xd8] sm:$0xff]
    %v70 = vld [vmem:[%s5 + $0xe0] sm:$0xff]
    %v71 = vld [vmem:[%s5 + $0xe8] sm:$0xff]
    %v72 = vld [vmem:[%s5 + $0xf0] sm:$0xff]
    %v73 = vld [vmem:[%s5 + $0xf8] sm:$0xff]
    %v74 = vld [vmem:[%s5 + $0x100] sm:$0xff]
    %v75 = vld [vmem:[%s5 + $0x108] sm:$0xff]
    %v76 = vld [vmem:[%s5 + $0x110] sm:$0xff]
    %v77 = vld [vmem:[%s5 + $0x118] sm:$0xff]
    %v78 = vld [vmem:[%s5 + $0x120] sm:$0xff]
    %v79 = vld [vmem:[%s5 + $0x128] sm:$0xff]
    %v80 = vld [vmem:[%s5 + $0x130] sm:$0xff]
    %v81 = vld [vmem:[%s5 + $0x138] sm:$0xff]
    %v82 = vld [vmem:[%s5 + $0x140] sm:$0xff]
    %v83 = vld [vmem:[%s5 + $0x148] sm:$0xff]
    %v84 = vld [vmem:[%s5 + $0x150] sm:$0xff]
    %v85 = vld [vmem:[%s5 + $0x158] sm:$0xff]
    %v86 = vld [vmem:[%s5 + $0x160] sm:$0xff]
    %v87 = vld [vmem:[%s5 + $0x168] sm:$0xff]
    %v88 = vld [vmem:[%s5 + $0x170] sm:$0xff]
    %v89 = vld [vmem:[%s5 + $0x178] sm:$0xff]
    %v90 = vld [vmem:[%s5 + $0x180] sm:$0xff]
    %v91 = vld [vmem:[%s5 + $0x188] sm:$0xff]
    %v92 = vld [vmem:[%s5 + $0x190] sm:$0xff]
    %v93 = vld [vmem:[%s5 + $0x198] sm:$0xff]
    %v94 = vld [vmem:[%s5 + $0x1a0] sm:$0xff]
    %v95 = vld [vmem:[%s5 + $0x1a8] sm:$0xff]
    %v96 = vld [vmem:[%s5 + $0x1b0] sm:$0xff]
    %v97 = vld [vmem:[%s5 + $0x1b8] sm:$0xff]
    %v98 = vld [vmem:[%s5 + $0x1c0] sm:$0xff]
    %v99 = vld [vmem:[%s5 + $0x1c8] sm:$0xff]
    %v100 = vld [vmem:[%s5 + $0x1d0] sm:$0xff]
    %v101 = vld [vmem:[%s5 + $0x1d8] sm:$0xff]
    %v102 = vld [vmem:[%s5 + $0x1e0] sm:$0xff]
    %v103 = vld [vmem:[%s5 + $0x1e8] sm:$0xff]
    %v104 = vld [vmem:[%s5 + $0x1f0] sm:$0xff]
    %v105 = vld [vmem:[%s5 + $0x1f8] sm:$0xff]
    %v106 = vld [vmem:[%s6] sm:$0xff]
    %v107 = vld [vmem:[%s7] sm:$0xff]
    %v108 = vld [vmem:[%s7 + $0x8] sm:$0xff]
    %v109 = vld [vmem:[%s7 + $0x10] sm:$0xff]
    %v110 = vld [vmem:[%s7 + $0x18] sm:$0xff]
    %v111 = vld [vmem:[%s3] sm:$0xff]
    %v112 = vld [vmem:[%s3 + $0x8] sm:$0xff]
    %v113 = vld [vmem:[%s3 + $0x10] sm:$0xff]
    %v114 = vld [vmem:[%s3 + $0x18] sm:$0xff]
    %v115 = vld [vmem:[%s0] sm:$0xff]
    %s116 = scalar_lea.vmem %s0, 8
    %v117 = vld [vmem:[%s116] sm:$0xff]
    %v119 = vcombine.high %v115, %v115
    %v122 = vcombine.high %v117, %v117
    %v124 = vld [vmem:[%s1] sm:$0xf]
    %v125 = vld [vmem:[%s1 + $0x4] sm:$0xf]
    %v126 = vld [vmem:[%s1 + $0x8] sm:$0xf]
    %v127 = vld [vmem:[%s1 + $0xc] sm:$0xf]
    %128 = vrot.lane.b32.xlu0 %v115, 17
    %v129 = vpop.permute.xlu0 %128
    %130 = vrot.lane.b32.xlu0 %v119, 17
    %v131 = vpop.permute.xlu0 %130
    %132 = vrot.lane.b32.xlu0 %v117, 17
    %v133 = vpop.permute.xlu0 %132
    %134 = vrot.lane.b32.xlu0 %v122, 17
    %v135 = vpop.permute.xlu0 %134
    %v136 = vlaneseq
    %v137 = vand.u32 %v136, 127
    %vm138 = vcmp.lt.s32.totalorder %v137, 17
    %v139 = vsel %vm138, %v133, %v135
    %v140 = vsel %vm138, %v131, %v133
    %v141 = vsel %vm138, %v129, %v131
    %v142 = vsel %vm138, %v135, %v129
    %v143 = vlaneseq
    %v144 = vshrl.u32 %v143, 7
    %v145 = vsub.s32 0, %v144
    %v146 = vrot.slane %v34, %v145
    %v147 = vlaneseq
    %v148 = vshrl.u32 %v147, 7
    %v149 = vsub.s32 0, %v148
    %v150 = vrot.slane %v35, %v149
    %v151 = vlaneseq
    %v152 = vshrl.u32 %v151, 7
    %v153 = vsub.s32 0, %v152
    %v154 = vrot.slane %v36, %v153
    %v155 = vlaneseq
    %v156 = vshrl.u32 %v155, 7
    %v157 = vsub.s32 0, %v156
    %v158 = vrot.slane %v37, %v157
    %v159 = vmul.f32 %v142, %v146
    %v160 = vmul.f32 %v141, %v150
    %v161 = vmul.f32 %v140, %v154
    %v162 = vmul.f32 %v139, %v158
    %163 = vrot.lane.b32.xlu0 %v115, 16
    %v164 = vpop.permute.xlu0 %163
    %165 = vrot.lane.b32.xlu0 %v119, 16
    %v166 = vpop.permute.xlu0 %165
    %167 = vrot.lane.b32.xlu0 %v117, 16
    %v168 = vpop.permute.xlu0 %167
    %169 = vrot.lane.b32.xlu0 %v122, 16
    %v170 = vpop.permute.xlu0 %169
    %vm171 = vcmp.lt.s32.totalorder %v137, 16
    %v172 = vsel %vm171, %v168, %v170
    %v173 = vsel %vm171, %v166, %v168
    %v174 = vsel %vm171, %v164, %v166
    %v175 = vsel %vm171, %v170, %v164
    %v176 = vlaneseq
    %v177 = vshrl.u32 %v176, 7
    %v178 = vsub.s32 1, %v177
    %v179 = vrot.slane %v34, %v178
    %v180 = vlaneseq
    %v181 = vshrl.u32 %v180, 7
    %v182 = vsub.s32 1, %v181
    %v183 = vrot.slane %v35, %v182
    %v184 = vlaneseq
    %v185 = vshrl.u32 %v184, 7
    %v186 = vsub.s32 1, %v185
    %v187 = vrot.slane %v36, %v186
    %v188 = vlaneseq
    %v189 = vshrl.u32 %v188, 7
    %v190 = vsub.s32 1, %v189
    %v191 = vrot.slane %v37, %v190
    %v192 = vmul.f32 %v175, %v179
    %v193 = vmul.f32 %v174, %v183
    %v194 = vmul.f32 %v173, %v187
    %v195 = vmul.f32 %v172, %v191
    %196 = vrot.lane.b32.xlu0 %v115, 15
    %v197 = vpop.permute.xlu0 %196
    %198 = vrot.lane.b32.xlu0 %v119, 15
    %v199 = vpop.permute.xlu0 %198
    %200 = vrot.lane.b32.xlu0 %v117, 15
    %v201 = vpop.permute.xlu0 %200
    %202 = vrot.lane.b32.xlu0 %v122, 15
    %v203 = vpop.permute.xlu0 %202
    %vm204 = vcmp.lt.s32.totalorder %v137, 15
    %v205 = vsel %vm204, %v201, %v203
    %v206 = vsel %vm204, %v199, %v201
    %v207 = vsel %vm204, %v197, %v199
    %v208 = vsel %vm204, %v203, %v197
    %v209 = vlaneseq
    %v210 = vshrl.u32 %v209, 7
    %v211 = vsub.s32 2, %v210
    %v212 = vrot.slane %v34, %v211
    %v213 = vlaneseq
    %v214 = vshrl.u32 %v213, 7
    %v215 = vsub.s32 2, %v214
    %v216 = vrot.slane %v35, %v215
    %v217 = vlaneseq
    %v218 = vshrl.u32 %v217, 7
    %v219 = vsub.s32 2, %v218
    %v220 = vrot.slane %v36, %v219
    %v221 = vlaneseq
    %v222 = vshrl.u32 %v221, 7
    %v223 = vsub.s32 2, %v222
    %v224 = vrot.slane %v37, %v223
    %v225 = vmul.f32 %v208, %v212
    %v226 = vmul.f32 %v207, %v216
    %v227 = vmul.f32 %v206, %v220
    %v228 = vmul.f32 %v205, %v224
    %229 = vrot.lane.b32.xlu0 %v115, 1
    %v230 = vpop.permute.xlu0 %229
    %231 = vrot.lane.b32.xlu0 %v119, 1
    %v232 = vpop.permute.xlu0 %231
    %233 = vrot.lane.b32.xlu0 %v117, 1
    %v234 = vpop.permute.xlu0 %233
    %235 = vrot.lane.b32.xlu0 %v122, 1
    %v236 = vpop.permute.xlu0 %235
    %vm237 = vcmp.lt.s32.totalorder %v137, 1
    %v238 = vsel %vm237, %v234, %v236
    %v239 = vsel %vm237, %v232, %v234
    %v240 = vsel %vm237, %v230, %v232
    %v241 = vsel %vm237, %v236, %v230
    %v242 = vlaneseq
    %v243 = vshrl.u32 %v242, 7
    %v244 = vsub.s32 3, %v243
    %v245 = vrot.slane %v34, %v244
    %v246 = vlaneseq
    %v247 = vshrl.u32 %v246, 7
    %v248 = vsub.s32 3, %v247
    %v249 = vrot.slane %v35, %v248
    %v250 = vlaneseq
    %v251 = vshrl.u32 %v250, 7
    %v252 = vsub.s32 3, %v251
    %v253 = vrot.slane %v36, %v252
    %v254 = vlaneseq
    %v255 = vshrl.u32 %v254, 7
    %v256 = vsub.s32 3, %v255
    %v257 = vrot.slane %v37, %v256
    %v258 = vmul.f32 %v241, %v245
    %v259 = vmul.f32 %v240, %v249
    %v260 = vmul.f32 %v239, %v253
    %v261 = vmul.f32 %v238, %v257
    %262 = vrot.lane.b32.xlu0 %v115, 127
    %v263 = vpop.permute.xlu0 %262
    %264 = vrot.lane.b32.xlu0 %v119, 127
    %v265 = vpop.permute.xlu0 %264
    %266 = vrot.lane.b32.xlu0 %v117, 127
    %v267 = vpop.permute.xlu0 %266
    %268 = vrot.lane.b32.xlu0 %v122, 127
    %v269 = vpop.permute.xlu0 %268
    %vm270 = vcmp.lt.s32.totalorder %v137, 127
    %v271 = vsel %vm270, %v267, %v269
    %v272 = vsel %vm270, %v265, %v267
    %v273 = vsel %vm270, %v263, %v265
    %v274 = vsel %vm270, %v269, %v263
    %v275 = vlaneseq
    %v276 = vshrl.u32 %v275, 7
    %v277 = vsub.s32 5, %v276
    %v278 = vrot.slane %v34, %v277
    %v279 = vlaneseq
    %v280 = vshrl.u32 %v279, 7
    %v281 = vsub.s32 5, %v280
    %v282 = vrot.slane %v35, %v281
    %v283 = vlaneseq
    %v284 = vshrl.u32 %v283, 7
    %v285 = vsub.s32 5, %v284
    %v286 = vrot.slane %v36, %v285
    %v287 = vlaneseq
    %v288 = vshrl.u32 %v287, 7
    %v289 = vsub.s32 5, %v288
    %v290 = vrot.slane %v37, %v289
    %v291 = vmul.f32 %v273, %v278
    %v292 = vmul.f32 %v272, %v282
    %v293 = vmul.f32 %v271, %v286
    %v294 = vmul.f32 %v274, %v290
    %295 = vrot.lane.b32.xlu0 %v115, 113
    %v296 = vpop.permute.xlu0 %295
    %297 = vrot.lane.b32.xlu0 %v119, 113
    %v298 = vpop.permute.xlu0 %297
    %299 = vrot.lane.b32.xlu0 %v117, 113
    %v300 = vpop.permute.xlu0 %299
    %301 = vrot.lane.b32.xlu0 %v122, 113
    %v302 = vpop.permute.xlu0 %301
    %vm303 = vcmp.lt.s32.totalorder %v137, 113
    %v304 = vsel %vm303, %v300, %v302
    %v305 = vsel %vm303, %v298, %v300
    %v306 = vsel %vm303, %v296, %v298
    %v307 = vsel %vm303, %v302, %v296
    %v308 = vlaneseq
    %v309 = vshrl.u32 %v308, 7
    %v310 = vsub.s32 6, %v309
    %v311 = vrot.slane %v34, %v310
    %v312 = vlaneseq
    %v313 = vshrl.u32 %v312, 7
    %v314 = vsub.s32 6, %v313
    %v315 = vrot.slane %v35, %v314
    %v316 = vlaneseq
    %v317 = vshrl.u32 %v316, 7
    %v318 = vsub.s32 6, %v317
    %v319 = vrot.slane %v36, %v318
    %v320 = vlaneseq
    %v321 = vshrl.u32 %v320, 7
    %v322 = vsub.s32 6, %v321
    %v323 = vrot.slane %v37, %v322
    %v324 = vmul.f32 %v306, %v311
    %v325 = vmul.f32 %v305, %v315
    %v326 = vmul.f32 %v304, %v319
    %v327 = vmul.f32 %v307, %v323
    %328 = vrot.lane.b32.xlu0 %v115, 112
    %v329 = vpop.permute.xlu0 %328
    %330 = vrot.lane.b32.xlu0 %v119, 112
    %v331 = vpop.permute.xlu0 %330
    %332 = vrot.lane.b32.xlu0 %v117, 112
    %v333 = vpop.permute.xlu0 %332
    %334 = vrot.lane.b32.xlu0 %v122, 112
    %v335 = vpop.permute.xlu0 %334
    %vm336 = vcmp.lt.s32.totalorder %v137, 112
    %v337 = vsel %vm336, %v333, %v335
    %v338 = vsel %vm336, %v331, %v333
    %v339 = vsel %vm336, %v329, %v331
    %v340 = vsel %vm336, %v335, %v329
    %v341 = vlaneseq
    %v342 = vshrl.u32 %v341, 7
    %v343 = vsub.s32 7, %v342
    %v344 = vrot.slane %v34, %v343
    %v345 = vlaneseq
    %v346 = vshrl.u32 %v345, 7
    %v347 = vsub.s32 7, %v346
    %v348 = vrot.slane %v35, %v347
    %v349 = vlaneseq
    %v350 = vshrl.u32 %v349, 7
    %v351 = vsub.s32 7, %v350
    %v352 = vrot.slane %v36, %v351
    %v353 = vlaneseq
    %v354 = vshrl.u32 %v353, 7
    %v355 = vsub.s32 7, %v354
    %v356 = vrot.slane %v37, %v355
    %v357 = vmul.f32 %v339, %v344
    %v358 = vmul.f32 %v338, %v348
    %v359 = vmul.f32 %v337, %v352
    %v360 = vmul.f32 %v340, %v356
    %361 = vrot.lane.b32.xlu0 %v115, 111
    %v362 = vpop.permute.xlu0 %361
    %363 = vrot.lane.b32.xlu0 %v119, 111
    %v364 = vpop.permute.xlu0 %363
    %365 = vrot.lane.b32.xlu0 %v117, 111
    %v366 = vpop.permute.xlu0 %365
    %367 = vrot.lane.b32.xlu0 %v122, 111
    %v368 = vpop.permute.xlu0 %367
    %vm369 = vcmp.lt.s32.totalorder %v137, 111
    %v370 = vsel %vm369, %v366, %v368
    %v371 = vsel %vm369, %v364, %v366
    %v372 = vsel %vm369, %v362, %v364
    %v373 = vsel %vm369, %v368, %v362
    %v374 = vlaneseq
    %v375 = vshrl.u32 %v374, 7
    %v376 = vsub.s32 0, %v375
    %v377 = vrot.slane %v38, %v376
    %v378 = vlaneseq
    %v379 = vshrl.u32 %v378, 7
    %v380 = vsub.s32 0, %v379
    %v381 = vrot.slane %v39, %v380
    %v382 = vlaneseq
    %v383 = vshrl.u32 %v382, 7
    %v384 = vsub.s32 0, %v383
    %v385 = vrot.slane %v40, %v384
    %v386 = vlaneseq
    %v387 = vshrl.u32 %v386, 7
    %v388 = vsub.s32 0, %v387
    %v389 = vrot.slane %v41, %v388
    %v390 = vmul.f32 %v372, %v377
    %v391 = vmul.f32 %v371, %v381
    %v392 = vmul.f32 %v370, %v385
    %v393 = vmul.f32 %v373, %v389
    %v398 = vrot.slane %v192, 4
    %v399 = vrot.slane %v193, 4
    %v400 = vrot.slane %v194, 4
    %v401 = vrot.slane %v195, 4
    %v410 = vrot.slane %v258, 4
    %v411 = vrot.slane %v259, 4
    %v412 = vrot.slane %v260, 4
    %v413 = vrot.slane %v261, 4
    %v422 = vrot.slane %v291, 4
    %v423 = vrot.slane %v292, 4
    %v424 = vrot.slane %v293, 4
    %v425 = vrot.slane %v294, 4
    %v434 = vrot.slane %v357, 4
    %v435 = vrot.slane %v358, 4
    %v436 = vrot.slane %v359, 4
    %v437 = vrot.slane %v360, 4
    %vm442 = vcmask 1043456
    %v443 = vsel %vm442, %v159, %v398
    %v444 = vsel %vm442, %v160, %v399
    %v445 = vsel %vm442, %v161, %v400
    %v446 = vsel %vm442, %v162, %v401
    %v447 = vsel %vm442, %v225, %v410
    %v448 = vsel %vm442, %v226, %v411
    %v449 = vsel %vm442, %v227, %v412
    %v450 = vsel %vm442, %v228, %v413
    %v451 = vsel %vm442, %v115, %v422
    %v452 = vsel %vm442, %v119, %v423
    %v453 = vsel %vm442, %v117, %v424
    %v454 = vsel %vm442, %v122, %v425
    %v455 = vsel %vm442, %v324, %v434
    %v456 = vsel %vm442, %v325, %v435
    %v457 = vsel %vm442, %v326, %v436
    %v458 = vsel %vm442, %v327, %v437
    %v459 = vpack.c.bf16 %v447, %v443
    %v460 = vpack.c.bf16 %v448, %v444
    %v461 = vpack.c.bf16 %v449, %v445
    %v462 = vpack.c.bf16 %v450, %v446
    %v463 = vpack.c.bf16 %v455, %v451
    %v464 = vpack.c.bf16 %v456, %v452
    %v465 = vpack.c.bf16 %v457, %v453
    %v466 = vpack.c.bf16 %v458, %v454
    %v467 = vpack.c.bf16 %v390, %v390
    %v468 = vpack.c.bf16 %v391, %v391
    %v469 = vpack.c.bf16 %v392, %v392
    %v470 = vpack.c.bf16 %v393, %v393
    %472 = vset.pattern.permute.xlu0 0
    %473 = vperm.xlu0 %472, %v111
    %v474 = vpop.permute.xlu0 %473
    %477 = vset.pattern.permute.xlu0 0
    %478 = vperm.xlu0 %477, %v112
    %v479 = vpop.permute.xlu0 %478
    %482 = vset.pattern.permute.xlu0 0
    %483 = vperm.xlu0 %482, %v113
    %v484 = vpop.permute.xlu0 %483
    %487 = vset.pattern.permute.xlu0 0
    %488 = vperm.xlu0 %487, %v114
    %v489 = vpop.permute.xlu0 %488
    %v495 = vunpack.c.l.b16 %v124
    %v496 = vunpack.c.l.b16 %v125
    %v497 = vunpack.c.l.b16 %v126
    %v498 = vunpack.c.l.b16 %v127
    %v499 = vpack.c.b16 %v496, %v495
    %v500 = vpack.c.b16 %v498, %v497
    %vm501 = vcmask 293888
    %v503 = vsel %vm501, %v499, 0
    %v506 = vsel %vm501, %v500, 0
    %vm508 = vcmask 1041408
    %v510 = vsel %vm508, %v467, 0
    %v513 = vsel %vm508, %v468, 0
    %v516 = vsel %vm508, %v469, 0
    %v519 = vsel %vm508, %v470, 0
    %521 = vmatprep.subr.bf16.mxu0 %v460
    %522 = vmatpush1.bf16.msra.mxu0 %v459
    %523 = vmatprep.subr.bf16.mxu0 %v464
    %524 = vmatpush1.bf16.msra.mxu0 %v463
    %525 = vmatprep.subr.bf16.mxu0 %v513
    %526 = vmatpush1.bf16.msra.mxu0 %v510
    %527 = vmatprep.subr.bf16.mxu0 0
    %528 = vmatpush1.bf16.msra.mxu0 0
    %529 = vmatprep.subr.bf16.mxu0 0
    %530 = vmatpush1.bf16.msra.mxu0 0
    %531 = vmatprep.subr.bf16.mxu0 0
    %532 = vmatpush1.bf16.msra.mxu0 0
    %533 = vmatprep.subr.bf16.mxu0 0
    %534 = vmatpush1.bf16.msra.mxu0 0
    %535 = vmatprep.subr.bf16.mxu0 0
    %536 = vmatpush1.bf16.msra.mxu0 0
    %537 = vmatprep.subr.bf16.mxu0 0
    %538 = vmatpush1.bf16.msra.mxu0 0
    %539 = vmatprep.subr.bf16.mxu0 0
    %540 = vmatpush1.bf16.msra.mxu0 0
    %541 = vmatprep.subr.bf16.mxu0 0
    %542 = vmatpush1.bf16.msra.mxu0 0
    %543 = vmatprep.subr.bf16.mxu0 0
    %544 = vmatpush1.bf16.msra.mxu0 0
    %545 = vmatprep.subr.bf16.mxu0 0
    %546 = vmatpush1.bf16.msra.mxu0 0
    %547 = vmatprep.subr.bf16.mxu0 0
    %548 = vmatpush1.bf16.msra.mxu0 0
    %549 = vmatprep.subr.bf16.mxu0 0
    %550 = vmatpush1.bf16.msra.mxu0 0
    %551 = vmatprep.subr.bf16.mxu0 0
    %552 = vmatpush1.bf16.msra.mxu0 0
    %553 = vmatprep.mubr.bf16.mxu0 0
    %554 = vmatmul.mubr.bf16.gmra.mrb[0].mxu0 %v503
    %v555 = vpop.f32.mrb[0].mxu0
    %v556 = vadd.f32 %v474, %v555
    %v557 = vpop.f32.mrb[0].mxu0
    %v558 = vadd.f32 %v474, %v557
    %v559 = vpop.f32.mrb[0].mxu0
    %v560 = vadd.f32 %v479, %v559
    %v561 = vpop.f32.mrb[0].mxu0
    %v562 = vadd.f32 %v479, %v561
    %563 = vmatprep.mubr.bf16.mxu0 0
    %564 = vmatmul.mubr.bf16.gmra.mrb[0].mxu0 %v506
    %v565 = vpop.f32.mrb[0].mxu0
    %v566 = vadd.f32 %v484, %v565
    %v567 = vpop.f32.mrb[0].mxu0
    %v568 = vadd.f32 %v484, %v567
    %v569 = vpop.f32.mrb[0].mxu0
    %v570 = vadd.f32 %v489, %v569
    %v571 = vpop.f32.mrb[0].mxu0
    %v572 = vadd.f32 %v489, %v571
    %573 = vdwg.mxu0
    %574 = vmatprep.subr.bf16.mxu0 %v462
    %575 = vmatpush1.bf16.msra.mxu0 %v461
    %576 = vmatprep.subr.bf16.mxu0 %v466
    %577 = vmatpush1.bf16.msra.mxu0 %v465
    %578 = vmatprep.subr.bf16.mxu0 %v519
    %579 = vmatpush1.bf16.msra.mxu0 %v516
    %580 = vmatprep.subr.bf16.mxu0 0
    %581 = vmatpush1.bf16.msra.mxu0 0
    %582 = vmatprep.subr.bf16.mxu0 0
    %583 = vmatpush1.bf16.msra.mxu0 0
    %584 = vmatprep.subr.bf16.mxu0 0
    %585 = vmatpush1.bf16.msra.mxu0 0
    %586 = vmatprep.subr.bf16.mxu0 0
    %587 = vmatpush1.bf16.msra.mxu0 0
    %588 = vmatprep.subr.bf16.mxu0 0
    %589 = vmatpush1.bf16.msra.mxu0 0
    %590 = vmatprep.subr.bf16.mxu0 0
    %591 = vmatpush1.bf16.msra.mxu0 0
    %592 = vmatprep.subr.bf16.mxu0 0
    %593 = vmatpush1.bf16.msra.mxu0 0
    %594 = vmatprep.subr.bf16.mxu0 0
    %595 = vmatpush1.bf16.msra.mxu0 0
    %596 = vmatprep.subr.bf16.mxu0 0
    %597 = vmatpush1.bf16.msra.mxu0 0
    %598 = vmatprep.subr.bf16.mxu0 0
    %599 = vmatpush1.bf16.msra.mxu0 0
    %600 = vmatprep.subr.bf16.mxu0 0
    %601 = vmatpush1.bf16.msra.mxu0 0
    %602 = vmatprep.subr.bf16.mxu0 0
    %603 = vmatpush1.bf16.msra.mxu0 0
    %604 = vmatprep.subr.bf16.mxu0 0
    %605 = vmatpush1.bf16.msra.mxu0 0
    %606 = vmatprep.mubr.bf16.mxu0 0
    %607 = vmatmul.mubr.bf16.gmra.mrb[0].mxu0 %v503
    %v608 = vpop.f32.mrb[0].mxu0
    %v609 = vadd.f32 %v474, %v608
    %v610 = vpop.f32.mrb[0].mxu0
    %v611 = vadd.f32 %v474, %v610
    %v612 = vpop.f32.mrb[0].mxu0
    %v613 = vadd.f32 %v479, %v612
    %v614 = vpop.f32.mrb[0].mxu0
    %v615 = vadd.f32 %v479, %v614
    %616 = vmatprep.mubr.bf16.mxu0 0
    %617 = vmatmul.mubr.bf16.gmra.mrb[0].mxu0 %v506
    %v618 = vpop.f32.mrb[0].mxu0
    %v619 = vadd.f32 %v484, %v618
    %v620 = vpop.f32.mrb[0].mxu0
    %v621 = vadd.f32 %v484, %v620
    %v622 = vpop.f32.mrb[0].mxu0
    %v623 = vadd.f32 %v489, %v622
    %v624 = vpop.f32.mrb[0].mxu0
    %v625 = vadd.f32 %v489, %v624
    %626 = vdwg.mxu0
    %627 = vmatprep.subr.mxu0 0.0
    %628 = vmatpush1.msra.mxu0 %v42
    %629 = vmatprep.subr.mxu0 0.0
    %630 = vmatpush1.msra.mxu0 %v43
    %631 = vmatprep.subr.mxu0 0.0
    %632 = vmatpush1.msra.mxu0 %v44
    %633 = vmatprep.subr.mxu0 0.0
    %634 = vmatpush1.msra.mxu0 %v45
    %635 = vmatprep.subr.mxu0 0.0
    %636 = vmatpush1.msra.mxu0 %v46
    %637 = vmatprep.subr.mxu0 0.0
    %638 = vmatpush1.msra.mxu0 %v47
    %639 = vmatprep.subr.mxu0 0.0
    %640 = vmatpush1.msra.mxu0 %v48
    %641 = vmatprep.subr.mxu0 0.0
    %642 = vmatpush1.msra.mxu0 %v49
    %643 = vmatprep.subr.mxu0 0.0
    %644 = vmatpush1.msra.mxu0 %v50
    %645 = vmatprep.subr.mxu0 0.0
    %646 = vmatpush1.msra.mxu0 %v51
    %647 = vmatprep.subr.mxu0 0.0
    %648 = vmatpush1.msra.mxu0 %v52
    %649 = vmatprep.subr.mxu0 0.0
    %650 = vmatpush1.msra.mxu0 %v53
    %651 = vmatprep.subr.mxu0 0.0
    %652 = vmatpush1.msra.mxu0 %v54
    %653 = vmatprep.subr.mxu0 0.0
    %654 = vmatpush1.msra.mxu0 %v55
    %655 = vmatprep.subr.mxu0 0.0
    %656 = vmatpush1.msra.mxu0 %v56
    %657 = vmatprep.subr.mxu0 0.0
    %658 = vmatpush1.msra.mxu0 %v57
    %659 = vmatprep.subr.mxu0 0.0
    %660 = vmatpush1.msra.mxu0 %v58
    %661 = vmatprep.subr.mxu0 0.0
    %662 = vmatpush1.msra.mxu0 %v59
    %663 = vmatprep.subr.mxu0 0.0
    %664 = vmatpush1.msra.mxu0 %v60
    %665 = vmatprep.subr.mxu0 0.0
    %666 = vmatpush1.msra.mxu0 %v61
    %667 = vmatprep.subr.mxu0 0.0
    %668 = vmatpush1.msra.mxu0 %v62
    %669 = vmatprep.subr.mxu0 0.0
    %670 = vmatpush1.msra.mxu0 %v63
    %671 = vmatprep.subr.mxu0 0.0
    %672 = vmatpush1.msra.mxu0 %v64
    %673 = vmatprep.subr.mxu0 0.0
    %674 = vmatpush1.msra.mxu0 %v65
    %675 = vmatprep.subr.mxu0 0.0
    %676 = vmatpush1.msra.mxu0 %v66
    %677 = vmatprep.subr.mxu0 0.0
    %678 = vmatpush1.msra.mxu0 %v67
    %679 = vmatprep.subr.mxu0 0.0
    %680 = vmatpush1.msra.mxu0 %v68
    %681 = vmatprep.subr.mxu0 0.0
    %682 = vmatpush1.msra.mxu0 %v69
    %683 = vmatprep.subr.mxu0 0.0
    %684 = vmatpush1.msra.mxu0 %v70
    %685 = vmatprep.subr.mxu0 0.0
    %686 = vmatpush1.msra.mxu0 %v71
    %687 = vmatprep.subr.mxu0 0.0
    %688 = vmatpush1.msra.mxu0 %v72
    %689 = vmatprep.subr.mxu0 0.0
    %690 = vmatpush1.msra.mxu0 %v73
    %691 = vmatprep.mubr.f32.mxu0 %v558
    %692 = vmatmul.mubr.f32.gmra.mrb[0].mxu0 %v556
    %v693 = vpop.f32.mrb[0].mxu0
    %v694 = vadd.f32 0.0, %v693
    %v695 = vpop.f32.mrb[0].mxu0
    %696 = vmatprep.mubr.f32.mxu0 %v562
    %697 = vmatmul.mubr.f32.gmra.mrb[0].mxu0 %v560
    %v698 = vpop.f32.mrb[0].mxu0
    %v699 = vadd.f32 0.0, %v698
    %v700 = vpop.f32.mrb[0].mxu0
    %701 = vmatprep.mubr.f32.mxu0 %v568
    %702 = vmatmul.mubr.f32.gmra.mrb[0].mxu0 %v566
    %v703 = vpop.f32.mrb[0].mxu0
    %v704 = vadd.f32 0.0, %v703
    %v705 = vpop.f32.mrb[0].mxu0
    %706 = vmatprep.mubr.f32.mxu0 %v572
    %707 = vmatmul.mubr.f32.gmra.mrb[0].mxu0 %v570
    %v708 = vpop.f32.mrb[0].mxu0
    %v709 = vadd.f32 0.0, %v708
    %v710 = vpop.f32.mrb[0].mxu0
    %711 = vdwg.mxu0
    %712 = vmatprep.subr.mxu0 0.0
    %713 = vmatpush1.msra.mxu0 %v74
    %714 = vmatprep.subr.mxu0 0.0
    %715 = vmatpush1.msra.mxu0 %v75
    %716 = vmatprep.subr.mxu0 0.0
    %717 = vmatpush1.msra.mxu0 %v76
    %718 = vmatprep.subr.mxu0 0.0
    %719 = vmatpush1.msra.mxu0 %v77
    %720 = vmatprep.subr.mxu0 0.0
    %721 = vmatpush1.msra.mxu0 %v78
    %722 = vmatprep.subr.mxu0 0.0
    %723 = vmatpush1.msra.mxu0 %v79
    %724 = vmatprep.subr.mxu0 0.0
    %725 = vmatpush1.msra.mxu0 %v80
    %726 = vmatprep.subr.mxu0 0.0
    %727 = vmatpush1.msra.mxu0 %v81
    %728 = vmatprep.subr.mxu0 0.0
    %729 = vmatpush1.msra.mxu0 %v82
    %730 = vmatprep.subr.mxu0 0.0
    %731 = vmatpush1.msra.mxu0 %v83
    %732 = vmatprep.subr.mxu0 0.0
    %733 = vmatpush1.msra.mxu0 %v84
    %734 = vmatprep.subr.mxu0 0.0
    %735 = vmatpush1.msra.mxu0 %v85
    %736 = vmatprep.subr.mxu0 0.0
    %737 = vmatpush1.msra.mxu0 %v86
    %738 = vmatprep.subr.mxu0 0.0
    %739 = vmatpush1.msra.mxu0 %v87
    %740 = vmatprep.subr.mxu0 0.0
    %741 = vmatpush1.msra.mxu0 %v88
    %742 = vmatprep.subr.mxu0 0.0
    %743 = vmatpush1.msra.mxu0 %v89
    %744 = vmatprep.subr.mxu0 0.0
    %745 = vmatpush1.msra.mxu0 %v90
    %746 = vmatprep.subr.mxu0 0.0
    %747 = vmatpush1.msra.mxu0 %v91
    %748 = vmatprep.subr.mxu0 0.0
    %749 = vmatpush1.msra.mxu0 %v92
    %750 = vmatprep.subr.mxu0 0.0
    %751 = vmatpush1.msra.mxu0 %v93
    %752 = vmatprep.subr.mxu0 0.0
    %753 = vmatpush1.msra.mxu0 %v94
    %754 = vmatprep.subr.mxu0 0.0
    %755 = vmatpush1.msra.mxu0 %v95
    %756 = vmatprep.subr.mxu0 0.0
    %757 = vmatpush1.msra.mxu0 %v96
    %758 = vmatprep.subr.mxu0 0.0
    %759 = vmatpush1.msra.mxu0 %v97
    %760 = vmatprep.subr.mxu0 0.0
    %761 = vmatpush1.msra.mxu0 %v98
    %762 = vmatprep.subr.mxu0 0.0
    %763 = vmatpush1.msra.mxu0 %v99
    %764 = vmatprep.subr.mxu0 0.0
    %765 = vmatpush1.msra.mxu0 %v100
    %766 = vmatprep.subr.mxu0 0.0
    %767 = vmatpush1.msra.mxu0 %v101
    %768 = vmatprep.subr.mxu0 0.0
    %769 = vmatpush1.msra.mxu0 %v102
    %770 = vmatprep.subr.mxu0 0.0
    %771 = vmatpush1.msra.mxu0 %v103
    %772 = vmatprep.subr.mxu0 0.0
    %773 = vmatpush1.msra.mxu0 %v104
    %774 = vmatprep.subr.mxu0 0.0
    %775 = vmatpush1.msra.mxu0 %v105
    %776 = vmatprep.mubr.f32.mxu0 %v611
    %777 = vmatmul.mubr.f32.gmra.mrb[0].mxu0 %v609
    %v778 = vpop.f32.mrb[0].mxu0
    %v779 = vadd.f32 %v694, %v778
    %v780 = vpop.f32.mrb[0].mxu0
    %781 = vmatprep.mubr.f32.mxu0 %v615
    %782 = vmatmul.mubr.f32.gmra.mrb[0].mxu0 %v613
    %v783 = vpop.f32.mrb[0].mxu0
    %v784 = vadd.f32 %v699, %v783
    %v785 = vpop.f32.mrb[0].mxu0
    %786 = vmatprep.mubr.f32.mxu0 %v621
    %787 = vmatmul.mubr.f32.gmra.mrb[0].mxu0 %v619
    %v788 = vpop.f32.mrb[0].mxu0
    %v789 = vadd.f32 %v704, %v788
    %v790 = vpop.f32.mrb[0].mxu0
    %791 = vmatprep.mubr.f32.mxu0 %v625
    %792 = vmatmul.mubr.f32.gmra.mrb[0].mxu0 %v623
    %v793 = vpop.f32.mrb[0].mxu0
    %v794 = vadd.f32 %v709, %v793
    %v795 = vpop.f32.mrb[0].mxu0
    %796 = vdwg.mxu0
    %v797 = vmul.f32 %v556, %v556
    %v798 = vmul.f32 %v558, %v558
    %v799 = vmul.f32 %v609, %v609
    %v800 = vmul.f32 %v611, %v611
    %v801 = vmul.f32 %v560, %v560
    %v802 = vmul.f32 %v562, %v562
    %v803 = vmul.f32 %v613, %v613
    %v804 = vmul.f32 %v615, %v615
    %v805 = vmul.f32 %v566, %v566
    %v806 = vmul.f32 %v568, %v568
    %v807 = vmul.f32 %v619, %v619
    %v808 = vmul.f32 %v621, %v621
    %v809 = vmul.f32 %v570, %v570
    %v810 = vmul.f32 %v572, %v572
    %v811 = vmul.f32 %v623, %v623
    %v812 = vmul.f32 %v625, %v625
    %813 = vmatprep.subr.mxu0 0.0
    %814 = vmatpush1.msra.mxu0 %v42
    %815 = vmatprep.subr.mxu0 0.0
    %816 = vmatpush1.msra.mxu0 %v43
    %817 = vmatprep.subr.mxu0 0.0
    %818 = vmatpush1.msra.mxu0 %v44
    %819 = vmatprep.subr.mxu0 0.0
    %820 = vmatpush1.msra.mxu0 %v45
    %821 = vmatprep.subr.mxu0 0.0
    %822 = vmatpush1.msra.mxu0 %v46
    %823 = vmatprep.subr.mxu0 0.0
    %824 = vmatpush1.msra.mxu0 %v47
    %825 = vmatprep.subr.mxu0 0.0
    %826 = vmatpush1.msra.mxu0 %v48
    %827 = vmatprep.subr.mxu0 0.0
    %828 = vmatpush1.msra.mxu0 %v49
    %829 = vmatprep.subr.mxu0 0.0
    %830 = vmatpush1.msra.mxu0 %v50
    %831 = vmatprep.subr.mxu0 0.0
    %832 = vmatpush1.msra.mxu0 %v51
    %833 = vmatprep.subr.mxu0 0.0
    %834 = vmatpush1.msra.mxu0 %v52
    %835 = vmatprep.subr.mxu0 0.0
    %836 = vmatpush1.msra.mxu0 %v53
    %837 = vmatprep.subr.mxu0 0.0
    %838 = vmatpush1.msra.mxu0 %v54
    %839 = vmatprep.subr.mxu0 0.0
    %840 = vmatpush1.msra.mxu0 %v55
    %841 = vmatprep.subr.mxu0 0.0
    %842 = vmatpush1.msra.mxu0 %v56
    %843 = vmatprep.subr.mxu0 0.0
    %844 = vmatpush1.msra.mxu0 %v57
    %845 = vmatprep.subr.mxu0 0.0
    %846 = vmatpush1.msra.mxu0 %v58
    %847 = vmatprep.subr.mxu0 0.0
    %848 = vmatpush1.msra.mxu0 %v59
    %849 = vmatprep.subr.mxu0 0.0
    %850 = vmatpush1.msra.mxu0 %v60
    %851 = vmatprep.subr.mxu0 0.0
    %852 = vmatpush1.msra.mxu0 %v61
    %853 = vmatprep.subr.mxu0 0.0
    %854 = vmatpush1.msra.mxu0 %v62
    %855 = vmatprep.subr.mxu0 0.0
    %856 = vmatpush1.msra.mxu0 %v63
    %857 = vmatprep.subr.mxu0 0.0
    %858 = vmatpush1.msra.mxu0 %v64
    %859 = vmatprep.subr.mxu0 0.0
    %860 = vmatpush1.msra.mxu0 %v65
    %861 = vmatprep.subr.mxu0 0.0
    %862 = vmatpush1.msra.mxu0 %v66
    %863 = vmatprep.subr.mxu0 0.0
    %864 = vmatpush1.msra.mxu0 %v67
    %865 = vmatprep.subr.mxu0 0.0
    %866 = vmatpush1.msra.mxu0 %v68
    %867 = vmatprep.subr.mxu0 0.0
    %868 = vmatpush1.msra.mxu0 %v69
    %869 = vmatprep.subr.mxu0 0.0
    %870 = vmatpush1.msra.mxu0 %v70
    %871 = vmatprep.subr.mxu0 0.0
    %872 = vmatpush1.msra.mxu0 %v71
    %873 = vmatprep.subr.mxu0 0.0
    %874 = vmatpush1.msra.mxu0 %v72
    %875 = vmatprep.subr.mxu0 0.0
    %876 = vmatpush1.msra.mxu0 %v73
    %877 = vmatprep.mubr.f32.mxu0 %v798
    %878 = vmatmul.mubr.f32.gmra.mrb[0].mxu0 %v797
    %v879 = vpop.f32.mrb[0].mxu0
    %v880 = vadd.f32 0.0, %v879
    %v881 = vpop.f32.mrb[0].mxu0
    %882 = vmatprep.mubr.f32.mxu0 %v802
    %883 = vmatmul.mubr.f32.gmra.mrb[0].mxu0 %v801
    %v884 = vpop.f32.mrb[0].mxu0
    %v885 = vadd.f32 0.0, %v884
    %v886 = vpop.f32.mrb[0].mxu0
    %887 = vmatprep.mubr.f32.mxu0 %v806
    %888 = vmatmul.mubr.f32.gmra.mrb[0].mxu0 %v805
    %v889 = vpop.f32.mrb[0].mxu0
    %v890 = vadd.f32 0.0, %v889
    %v891 = vpop.f32.mrb[0].mxu0
    %892 = vmatprep.mubr.f32.mxu0 %v810
    %893 = vmatmul.mubr.f32.gmra.mrb[0].mxu0 %v809
    %v894 = vpop.f32.mrb[0].mxu0
    %v895 = vadd.f32 0.0, %v894
    %v896 = vpop.f32.mrb[0].mxu0
    %897 = vdwg.mxu0
    %898 = vmatprep.subr.mxu0 0.0
    %899 = vmatpush1.msra.mxu0 %v74
    %900 = vmatprep.subr.mxu0 0.0
    %901 = vmatpush1.msra.mxu0 %v75
    %902 = vmatprep.subr.mxu0 0.0
    %903 = vmatpush1.msra.mxu0 %v76
    %904 = vmatprep.subr.mxu0 0.0
    %905 = vmatpush1.msra.mxu0 %v77
    %906 = vmatprep.subr.mxu0 0.0
    %907 = vmatpush1.msra.mxu0 %v78
    %908 = vmatprep.subr.mxu0 0.0
    %909 = vmatpush1.msra.mxu0 %v79
    %910 = vmatprep.subr.mxu0 0.0
    %911 = vmatpush1.msra.mxu0 %v80
    %912 = vmatprep.subr.mxu0 0.0
    %913 = vmatpush1.msra.mxu0 %v81
    %914 = vmatprep.subr.mxu0 0.0
    %915 = vmatpush1.msra.mxu0 %v82
    %916 = vmatprep.subr.mxu0 0.0
    %917 = vmatpush1.msra.mxu0 %v83
    %918 = vmatprep.subr.mxu0 0.0
    %919 = vmatpush1.msra.mxu0 %v84
    %920 = vmatprep.subr.mxu0 0.0
    %921 = vmatpush1.msra.mxu0 %v85
    %922 = vmatprep.subr.mxu0 0.0
    %923 = vmatpush1.msra.mxu0 %v86
    %924 = vmatprep.subr.mxu0 0.0
    %925 = vmatpush1.msra.mxu0 %v87
    %926 = vmatprep.subr.mxu0 0.0
    %927 = vmatpush1.msra.mxu0 %v88
    %928 = vmatprep.subr.mxu0 0.0
    %929 = vmatpush1.msra.mxu0 %v89
    %930 = vmatprep.subr.mxu0 0.0
    %931 = vmatpush1.msra.mxu0 %v90
    %932 = vmatprep.subr.mxu0 0.0
    %933 = vmatpush1.msra.mxu0 %v91
    %934 = vmatprep.subr.mxu0 0.0
    %935 = vmatpush1.msra.mxu0 %v92
    %936 = vmatprep.subr.mxu0 0.0
    %937 = vmatpush1.msra.mxu0 %v93
    %938 = vmatprep.subr.mxu0 0.0
    %939 = vmatpush1.msra.mxu0 %v94
    %940 = vmatprep.subr.mxu0 0.0
    %941 = vmatpush1.msra.mxu0 %v95
    %942 = vmatprep.subr.mxu0 0.0
    %943 = vmatpush1.msra.mxu0 %v96
    %944 = vmatprep.subr.mxu0 0.0
    %945 = vmatpush1.msra.mxu0 %v97
    %946 = vmatprep.subr.mxu0 0.0
    %947 = vmatpush1.msra.mxu0 %v98
    %948 = vmatprep.subr.mxu0 0.0
    %949 = vmatpush1.msra.mxu0 %v99
    %950 = vmatprep.subr.mxu0 0.0
    %951 = vmatpush1.msra.mxu0 %v100
    %952 = vmatprep.subr.mxu0 0.0
    %953 = vmatpush1.msra.mxu0 %v101
    %954 = vmatprep.subr.mxu0 0.0
    %955 = vmatpush1.msra.mxu0 %v102
    %956 = vmatprep.subr.mxu0 0.0
    %957 = vmatpush1.msra.mxu0 %v103
    %958 = vmatprep.subr.mxu0 0.0
    %959 = vmatpush1.msra.mxu0 %v104
    %960 = vmatprep.subr.mxu0 0.0
    %961 = vmatpush1.msra.mxu0 %v105
    %962 = vmatprep.mubr.f32.mxu0 %v800
    %963 = vmatmul.mubr.f32.gmra.mrb[0].mxu0 %v799
    %v964 = vpop.f32.mrb[0].mxu0
    %v965 = vadd.f32 %v880, %v964
    %v966 = vpop.f32.mrb[0].mxu0
    %967 = vmatprep.mubr.f32.mxu0 %v804
    %968 = vmatmul.mubr.f32.gmra.mrb[0].mxu0 %v803
    %v969 = vpop.f32.mrb[0].mxu0
    %v970 = vadd.f32 %v885, %v969
    %v971 = vpop.f32.mrb[0].mxu0
    %972 = vmatprep.mubr.f32.mxu0 %v808
    %973 = vmatmul.mubr.f32.gmra.mrb[0].mxu0 %v807
    %v974 = vpop.f32.mrb[0].mxu0
    %v975 = vadd.f32 %v890, %v974
    %v976 = vpop.f32.mrb[0].mxu0
    %977 = vmatprep.mubr.f32.mxu0 %v812
    %978 = vmatmul.mubr.f32.gmra.mrb[0].mxu0 %v811
    %v979 = vpop.f32.mrb[0].mxu0
    %v980 = vadd.f32 %v895, %v979
    %v981 = vpop.f32.mrb[0].mxu0
    %982 = vdwg.mxu0
    %vm983 = vcmask 261120
    %v985 = vsel %vm983, %v107, 0
    %v988 = vsel %vm983, %v108, 0
    %v991 = vsel %vm983, %v109, 0
    %v994 = vsel %vm983, %v110, 0
    %996 = vmatprep.subr.mxu0 0.0
    %997 = vmatpush1.msra.mxu0 %v779
    %998 = vmatprep.subr.mxu0 0.0
    %999 = vmatpush1.msra.mxu0 %v784
    %1000 = vmatprep.subr.mxu0 0.0
    %1001 = vmatpush1.msra.mxu0 %v789
    %1002 = vmatprep.subr.mxu0 0.0
    %1003 = vmatpush1.msra.mxu0 %v794
    %1004 = vmatprep.subr.mxu0 0.0
    %1005 = vmatpush1.msra.mxu0 0.0
    %1006 = vmatprep.subr.mxu0 0.0
    %1007 = vmatpush1.msra.mxu0 0.0
    %1008 = vmatprep.subr.mxu0 0.0
    %1009 = vmatpush1.msra.mxu0 0.0
    %1010 = vmatprep.subr.mxu0 0.0
    %1011 = vmatpush1.msra.mxu0 0.0
    %1012 = vmatprep.subr.mxu0 0.0
    %1013 = vmatpush1.msra.mxu0 0.0
    %1014 = vmatprep.subr.mxu0 0.0
    %1015 = vmatpush1.msra.mxu0 0.0
    %1016 = vmatprep.subr.mxu0 0.0
    %1017 = vmatpush1.msra.mxu0 0.0
    %1018 = vmatprep.subr.mxu0 0.0
    %1019 = vmatpush1.msra.mxu0 0.0
    %1020 = vmatprep.subr.mxu0 0.0
    %1021 = vmatpush1.msra.mxu0 0.0
    %1022 = vmatprep.subr.mxu0 0.0
    %1023 = vmatpush1.msra.mxu0 0.0
    %1024 = vmatprep.subr.mxu0 0.0
    %1025 = vmatpush1.msra.mxu0 0.0
    %1026 = vmatprep.subr.mxu0 0.0
    %1027 = vmatpush1.msra.mxu0 0.0
    %1028 = vmatprep.subr.mxu0 0.0
    %1029 = vmatpush1.msra.mxu0 0.0
    %1030 = vmatprep.subr.mxu0 0.0
    %1031 = vmatpush1.msra.mxu0 0.0
    %1032 = vmatprep.subr.mxu0 0.0
    %1033 = vmatpush1.msra.mxu0 0.0
    %1034 = vmatprep.subr.mxu0 0.0
    %1035 = vmatpush1.msra.mxu0 0.0
    %1036 = vmatprep.subr.mxu0 0.0
    %1037 = vmatpush1.msra.mxu0 0.0
    %1038 = vmatprep.subr.mxu0 0.0
    %1039 = vmatpush1.msra.mxu0 0.0
    %1040 = vmatprep.subr.mxu0 0.0
    %1041 = vmatpush1.msra.mxu0 0.0
    %1042 = vmatprep.subr.mxu0 0.0
    %1043 = vmatpush1.msra.mxu0 0.0
    %1044 = vmatprep.subr.mxu0 0.0
    %1045 = vmatpush1.msra.mxu0 0.0
    %1046 = vmatprep.subr.mxu0 0.0
    %1047 = vmatpush1.msra.mxu0 0.0
    %1048 = vmatprep.subr.mxu0 0.0
    %1049 = vmatpush1.msra.mxu0 0.0
    %1050 = vmatprep.subr.mxu0 0.0
    %1051 = vmatpush1.msra.mxu0 0.0
    %1052 = vmatprep.subr.mxu0 0.0
    %1053 = vmatpush1.msra.mxu0 0.0
    %1054 = vmatprep.subr.mxu0 0.0
    %1055 = vmatpush1.msra.mxu0 0.0
    %1056 = vmatprep.subr.mxu0 0.0
    %1057 = vmatpush1.msra.mxu0 0.0
    %1058 = vmatprep.subr.mxu0 0.0
    %1059 = vmatpush1.msra.mxu0 0.0
    %1060 = vmatprep.mubr.f32.mxu0 0.0
    %1061 = vmatmul.mubr.f32.gmra.mrb[0].mxu0 %v985
    %v1062 = vpop.f32.mrb[0].mxu0
    %v1063 = vadd.f32 0.0, %v1062
    %v1064 = vpop.f32.mrb[0].mxu0
    %1065 = vmatprep.mubr.f32.mxu0 0.0
    %1066 = vmatmul.mubr.f32.gmra.mrb[0].mxu0 %v988
    %v1067 = vpop.f32.mrb[0].mxu0
    %v1068 = vadd.f32 0.0, %v1067
    %v1069 = vpop.f32.mrb[0].mxu0
    %1070 = vmatprep.mubr.f32.mxu0 0.0
    %1071 = vmatmul.mubr.f32.gmra.mrb[0].mxu0 %v991
    %v1072 = vpop.f32.mrb[0].mxu0
    %v1073 = vadd.f32 0.0, %v1072
    %v1074 = vpop.f32.mrb[0].mxu0
    %1075 = vmatprep.mubr.f32.mxu0 0.0
    %1076 = vmatmul.mubr.f32.gmra.mrb[0].mxu0 %v994
    %v1077 = vpop.f32.mrb[0].mxu0
    %v1078 = vadd.f32 0.0, %v1077
    %v1079 = vpop.f32.mrb[0].mxu0
    %1080 = vdwg.mxu0
    %1081 = vmatprep.subr.mxu0 0.0
    %1082 = vmatpush1.msra.mxu0 %v965
    %1083 = vmatprep.subr.mxu0 0.0
    %1084 = vmatpush1.msra.mxu0 %v970
    %1085 = vmatprep.subr.mxu0 0.0
    %1086 = vmatpush1.msra.mxu0 %v975
    %1087 = vmatprep.subr.mxu0 0.0
    %1088 = vmatpush1.msra.mxu0 %v980
    %1089 = vmatprep.subr.mxu0 0.0
    %1090 = vmatpush1.msra.mxu0 0.0
    %1091 = vmatprep.subr.mxu0 0.0
    %1092 = vmatpush1.msra.mxu0 0.0
    %1093 = vmatprep.subr.mxu0 0.0
    %1094 = vmatpush1.msra.mxu0 0.0
    %1095 = vmatprep.subr.mxu0 0.0
    %1096 = vmatpush1.msra.mxu0 0.0
    %1097 = vmatprep.subr.mxu0 0.0
    %1098 = vmatpush1.msra.mxu0 0.0
    %1099 = vmatprep.subr.mxu0 0.0
    %1100 = vmatpush1.msra.mxu0 0.0
    %1101 = vmatprep.subr.mxu0 0.0
    %1102 = vmatpush1.msra.mxu0 0.0
    %1103 = vmatprep.subr.mxu0 0.0
    %1104 = vmatpush1.msra.mxu0 0.0
    %1105 = vmatprep.subr.mxu0 0.0
    %1106 = vmatpush1.msra.mxu0 0.0
    %1107 = vmatprep.subr.mxu0 0.0
    %1108 = vmatpush1.msra.mxu0 0.0
    %1109 = vmatprep.subr.mxu0 0.0
    %1110 = vmatpush1.msra.mxu0 0.0
    %1111 = vmatprep.subr.mxu0 0.0
    %1112 = vmatpush1.msra.mxu0 0.0
    %1113 = vmatprep.subr.mxu0 0.0
    %1114 = vmatpush1.msra.mxu0 0.0
    %1115 = vmatprep.subr.mxu0 0.0
    %1116 = vmatpush1.msra.mxu0 0.0
    %1117 = vmatprep.subr.mxu0 0.0
    %1118 = vmatpush1.msra.mxu0 0.0
    %1119 = vmatprep.subr.mxu0 0.0
    %1120 = vmatpush1.msra.mxu0 0.0
    %1121 = vmatprep.subr.mxu0 0.0
    %1122 = vmatpush1.msra.mxu0 0.0
    %1123 = vmatprep.subr.mxu0 0.0
    %1124 = vmatpush1.msra.mxu0 0.0
    %1125 = vmatprep.subr.mxu0 0.0
    %1126 = vmatpush1.msra.mxu0 0.0
    %1127 = vmatprep.subr.mxu0 0.0
    %1128 = vmatpush1.msra.mxu0 0.0
    %1129 = vmatprep.subr.mxu0 0.0
    %1130 = vmatpush1.msra.mxu0 0.0
    %1131 = vmatprep.subr.mxu0 0.0
    %1132 = vmatpush1.msra.mxu0 0.0
    %1133 = vmatprep.subr.mxu0 0.0
    %1134 = vmatpush1.msra.mxu0 0.0
    %1135 = vmatprep.subr.mxu0 0.0
    %1136 = vmatpush1.msra.mxu0 0.0
    %1137 = vmatprep.subr.mxu0 0.0
    %1138 = vmatpush1.msra.mxu0 0.0
    %1139 = vmatprep.subr.mxu0 0.0
    %1140 = vmatpush1.msra.mxu0 0.0
    %1141 = vmatprep.subr.mxu0 0.0
    %1142 = vmatpush1.msra.mxu0 0.0
    %1143 = vmatprep.subr.mxu0 0.0
    %1144 = vmatpush1.msra.mxu0 0.0
    %1145 = vmatprep.mubr.f32.mxu0 0.0
    %1146 = vmatmul.mubr.f32.gmra.mrb[0].mxu0 %v985
    %v1147 = vpop.f32.mrb[0].mxu0
    %v1148 = vadd.f32 0.0, %v1147
    %v1149 = vpop.f32.mrb[0].mxu0
    %1150 = vmatprep.mubr.f32.mxu0 0.0
    %1151 = vmatmul.mubr.f32.gmra.mrb[0].mxu0 %v988
    %v1152 = vpop.f32.mrb[0].mxu0
    %v1153 = vadd.f32 0.0, %v1152
    %v1154 = vpop.f32.mrb[0].mxu0
    %1155 = vmatprep.mubr.f32.mxu0 0.0
    %1156 = vmatmul.mubr.f32.gmra.mrb[0].mxu0 %v991
    %v1157 = vpop.f32.mrb[0].mxu0
    %v1158 = vadd.f32 0.0, %v1157
    %v1159 = vpop.f32.mrb[0].mxu0
    %1160 = vmatprep.mubr.f32.mxu0 0.0
    %1161 = vmatmul.mubr.f32.gmra.mrb[0].mxu0 %v994
    %v1162 = vpop.f32.mrb[0].mxu0
    %v1163 = vadd.f32 0.0, %v1162
    %v1164 = vpop.f32.mrb[0].mxu0
    %1165 = vdwg.mxu0
    %v1166 = vmul.f32 %v1063, %v1063
    %v1167 = vmul.f32 %v1068, %v1068
    %v1168 = vmul.f32 %v1073, %v1073
    %v1169 = vmul.f32 %v1078, %v1078
    %v1170 = vsub.f32 %v1148, %v1166
    %v1171 = vsub.f32 %v1153, %v1167
    %v1172 = vsub.f32 %v1158, %v1168
    %v1173 = vsub.f32 %v1163, %v1169
    %v1174 = vadd.f32 %v1170, 1e-05
    %v1175 = vadd.f32 %v1171, 1e-05
    %v1176 = vadd.f32 %v1172, 1e-05
    %v1177 = vadd.f32 %v1173, 1e-05
    %v1178 = vrsqrt.pop %v1174
    %v1179 = vrsqrt.pop %v1175
    %v1180 = vrsqrt.pop %v1176
    %v1181 = vrsqrt.pop %v1177
    %1182 = vset.pattern.permute.xlu0 1
    %1183 = vperm.xlu0 %1182, %v111
    %v1184 = vpop.permute.xlu0 %1183
    %1186 = vset.pattern.permute.xlu0 1
    %1187 = vperm.xlu0 %1186, %v112
    %v1188 = vpop.permute.xlu0 %1187
    %1190 = vset.pattern.permute.xlu0 1
    %1191 = vperm.xlu0 %1190, %v113
    %v1192 = vpop.permute.xlu0 %1191
    %1194 = vset.pattern.permute.xlu0 1
    %1195 = vperm.xlu0 %1194, %v114
    %v1196 = vpop.permute.xlu0 %1195
    %v1198 = vmul.f32 %v1178, %v1184
    %v1199 = vmul.f32 %v1179, %v1188
    %v1200 = vmul.f32 %v1180, %v1192
    %v1201 = vmul.f32 %v1181, %v1196
    %v1202 = vmul.f32 %v1063, %v1198
    %v1203 = vmul.f32 %v1068, %v1199
    %v1204 = vmul.f32 %v1073, %v1200
    %v1205 = vmul.f32 %v1078, %v1201
    %1206 = vset.pattern.permute.xlu0 2
    %1207 = vperm.xlu0 %1206, %v111
    %v1208 = vpop.permute.xlu0 %1207
    %1210 = vset.pattern.permute.xlu0 2
    %1211 = vperm.xlu0 %1210, %v112
    %v1212 = vpop.permute.xlu0 %1211
    %1214 = vset.pattern.permute.xlu0 2
    %1215 = vperm.xlu0 %1214, %v113
    %v1216 = vpop.permute.xlu0 %1215
    %1218 = vset.pattern.permute.xlu0 2
    %1219 = vperm.xlu0 %1218, %v114
    %v1220 = vpop.permute.xlu0 %1219
    %v1222 = vsub.f32 %v1208, %v1202
    %v1223 = vsub.f32 %v1212, %v1203
    %v1224 = vsub.f32 %v1216, %v1204
    %v1225 = vsub.f32 %v1220, %v1205
    %v1227 = vcombine.high %v106, %v106
    %v1229 = vunpack.c.l.s4 1983009808
    %v1230 = vunpack.c.0.s8 %v1229
    %v1231 = vlaneseq
    %v1232 = vshrl.u32 %v1231, 7
    %v1233 = vsub.s32 %v1230, %v1232
    %v1234 = vrot.slane %v106, %v1233
    %v1236 = vunpack.c.l.s4 1983009808
    %v1237 = vunpack.c.0.s8 %v1236
    %v1238 = vlaneseq
    %v1239 = vshrl.u32 %v1238, 7
    %v1240 = vsub.s32 %v1237, %v1239
    %v1241 = vrot.slane %v1227, %v1240
    %v1242 = vcombine.high %v1234, %v1234
    %v1243 = vcombine.high %v1241, %v1241
    %vm1244 = vcmask 15360
    %v1246 = vsel %vm1244, %v1198, 0
    %v1249 = vsel %vm1244, %v1199, 0
    %v1252 = vsel %vm1244, %v1200, 0
    %v1255 = vsel %vm1244, %v1201, 0
    %v1257 = vsel %vm508, %v1234, 0
    %v1259 = vsel %vm508, %v1242, 0
    %v1261 = vsel %vm508, %v1241, 0
    %v1263 = vsel %vm508, %v1243, 0
    %1265 = vmatprep.subr.mxu0 %v1259
    %1266 = vmatpush1.msra.mxu0 %v1257
    %1267 = vmatprep.subr.mxu0 0.0
    %1268 = vmatpush1.msra.mxu0 0.0
    %1269 = vmatprep.subr.mxu0 0.0
    %1270 = vmatpush1.msra.mxu0 0.0
    %1271 = vmatprep.subr.mxu0 0.0
    %1272 = vmatpush1.msra.mxu0 0.0
    %1273 = vmatprep.subr.mxu0 0.0
    %1274 = vmatpush1.msra.mxu0 0.0
    %1275 = vmatprep.subr.mxu0 0.0
    %1276 = vmatpush1.msra.mxu0 0.0
    %1277 = vmatprep.subr.mxu0 0.0
    %1278 = vmatpush1.msra.mxu0 0.0
    %1279 = vmatprep.subr.mxu0 0.0
    %1280 = vmatpush1.msra.mxu0 0.0
    %1281 = vmatprep.subr.mxu0 0.0
    %1282 = vmatpush1.msra.mxu0 0.0
    %1283 = vmatprep.subr.mxu0 0.0
    %1284 = vmatpush1.msra.mxu0 0.0
    %1285 = vmatprep.subr.mxu0 0.0
    %1286 = vmatpush1.msra.mxu0 0.0
    %1287 = vmatprep.subr.mxu0 0.0
    %1288 = vmatpush1.msra.mxu0 0.0
    %1289 = vmatprep.subr.mxu0 0.0
    %1290 = vmatpush1.msra.mxu0 0.0
    %1291 = vmatprep.subr.mxu0 0.0
    %1292 = vmatpush1.msra.mxu0 0.0
    %1293 = vmatprep.subr.mxu0 0.0
    %1294 = vmatpush1.msra.mxu0 0.0
    %1295 = vmatprep.subr.mxu0 0.0
    %1296 = vmatpush1.msra.mxu0 0.0
    %1297 = vmatprep.subr.mxu0 0.0
    %1298 = vmatpush1.msra.mxu0 0.0
    %1299 = vmatprep.subr.mxu0 0.0
    %1300 = vmatpush1.msra.mxu0 0.0
    %1301 = vmatprep.subr.mxu0 0.0
    %1302 = vmatpush1.msra.mxu0 0.0
    %1303 = vmatprep.subr.mxu0 0.0
    %1304 = vmatpush1.msra.mxu0 0.0
    %1305 = vmatprep.subr.mxu0 0.0
    %1306 = vmatpush1.msra.mxu0 0.0
    %1307 = vmatprep.subr.mxu0 0.0
    %1308 = vmatpush1.msra.mxu0 0.0
    %1309 = vmatprep.subr.mxu0 0.0
    %1310 = vmatpush1.msra.mxu0 0.0
    %1311 = vmatprep.subr.mxu0 0.0
    %1312 = vmatpush1.msra.mxu0 0.0
    %1313 = vmatprep.subr.mxu0 0.0
    %1314 = vmatpush1.msra.mxu0 0.0
    %1315 = vmatprep.subr.mxu0 0.0
    %1316 = vmatpush1.msra.mxu0 0.0
    %1317 = vmatprep.subr.mxu0 0.0
    %1318 = vmatpush1.msra.mxu0 0.0
    %1319 = vmatprep.subr.mxu0 0.0
    %1320 = vmatpush1.msra.mxu0 0.0
    %1321 = vmatprep.subr.mxu0 0.0
    %1322 = vmatpush1.msra.mxu0 0.0
    %1323 = vmatprep.subr.mxu0 0.0
    %1324 = vmatpush1.msra.mxu0 0.0
    %1325 = vmatprep.subr.mxu0 0.0
    %1326 = vmatpush1.msra.mxu0 0.0
    %1327 = vmatprep.subr.mxu0 0.0
    %1328 = vmatpush1.msra.mxu0 0.0
    %1329 = vmatprep.mubr.f32.mxu0 0.0
    %1330 = vmatmul.mubr.f32.gmra.mrb[0].mxu0 %v1246
    %v1331 = vpop.f32.mrb[0].mxu0
    %v1332 = vadd.f32 0.0, %v1331
    %v1333 = vpop.f32.mrb[0].mxu0
    %v1334 = vadd.f32 0.0, %v1333
    %1335 = vmatprep.mubr.f32.mxu0 0.0
    %1336 = vmatmul.mubr.f32.gmra.mrb[0].mxu0 %v1249
    %v1337 = vpop.f32.mrb[0].mxu0
    %v1338 = vadd.f32 0.0, %v1337
    %v1339 = vpop.f32.mrb[0].mxu0
    %v1340 = vadd.f32 0.0, %v1339
    %1341 = vmatprep.mubr.f32.mxu0 0.0
    %1342 = vmatmul.mubr.f32.gmra.mrb[0].mxu0 %v1252
    %v1343 = vpop.f32.mrb[0].mxu0
    %v1344 = vadd.f32 0.0, %v1343
    %v1345 = vpop.f32.mrb[0].mxu0
    %v1346 = vadd.f32 0.0, %v1345
    %1347 = vmatprep.mubr.f32.mxu0 0.0
    %1348 = vmatmul.mubr.f32.gmra.mrb[0].mxu0 %v1255
    %v1349 = vpop.f32.mrb[0].mxu0
    %v1350 = vadd.f32 0.0, %v1349
    %v1351 = vpop.f32.mrb[0].mxu0
    %v1352 = vadd.f32 0.0, %v1351
    %1353 = vdwg.mxu0
    %1354 = vmatprep.subr.mxu0 %v1263
    %1355 = vmatpush1.msra.mxu0 %v1261
    %1356 = vmatprep.subr.mxu0 0.0
    %1357 = vmatpush1.msra.mxu0 0.0
    %1358 = vmatprep.subr.mxu0 0.0
    %1359 = vmatpush1.msra.mxu0 0.0
    %1360 = vmatprep.subr.mxu0 0.0
    %1361 = vmatpush1.msra.mxu0 0.0
    %1362 = vmatprep.subr.mxu0 0.0
    %1363 = vmatpush1.msra.mxu0 0.0
    %1364 = vmatprep.subr.mxu0 0.0
    %1365 = vmatpush1.msra.mxu0 0.0
    %1366 = vmatprep.subr.mxu0 0.0
    %1367 = vmatpush1.msra.mxu0 0.0
    %1368 = vmatprep.subr.mxu0 0.0
    %1369 = vmatpush1.msra.mxu0 0.0
    %1370 = vmatprep.subr.mxu0 0.0
    %1371 = vmatpush1.msra.mxu0 0.0
    %1372 = vmatprep.subr.mxu0 0.0
    %1373 = vmatpush1.msra.mxu0 0.0
    %1374 = vmatprep.subr.mxu0 0.0
    %1375 = vmatpush1.msra.mxu0 0.0
    %1376 = vmatprep.subr.mxu0 0.0
    %1377 = vmatpush1.msra.mxu0 0.0
    %1378 = vmatprep.subr.mxu0 0.0
    %1379 = vmatpush1.msra.mxu0 0.0
    %1380 = vmatprep.subr.mxu0 0.0
    %1381 = vmatpush1.msra.mxu0 0.0
    %1382 = vmatprep.subr.mxu0 0.0
    %1383 = vmatpush1.msra.mxu0 0.0
    %1384 = vmatprep.subr.mxu0 0.0
    %1385 = vmatpush1.msra.mxu0 0.0
    %1386 = vmatprep.subr.mxu0 0.0
    %1387 = vmatpush1.msra.mxu0 0.0
    %1388 = vmatprep.subr.mxu0 0.0
    %1389 = vmatpush1.msra.mxu0 0.0
    %1390 = vmatprep.subr.mxu0 0.0
    %1391 = vmatpush1.msra.mxu0 0.0
    %1392 = vmatprep.subr.mxu0 0.0
    %1393 = vmatpush1.msra.mxu0 0.0
    %1394 = vmatprep.subr.mxu0 0.0
    %1395 = vmatpush1.msra.mxu0 0.0
    %1396 = vmatprep.subr.mxu0 0.0
    %1397 = vmatpush1.msra.mxu0 0.0
    %1398 = vmatprep.subr.mxu0 0.0
    %1399 = vmatpush1.msra.mxu0 0.0
    %1400 = vmatprep.subr.mxu0 0.0
    %1401 = vmatpush1.msra.mxu0 0.0
    %1402 = vmatprep.subr.mxu0 0.0
    %1403 = vmatpush1.msra.mxu0 0.0
    %1404 = vmatprep.subr.mxu0 0.0
    %1405 = vmatpush1.msra.mxu0 0.0
    %1406 = vmatprep.subr.mxu0 0.0
    %1407 = vmatpush1.msra.mxu0 0.0
    %1408 = vmatprep.subr.mxu0 0.0
    %1409 = vmatpush1.msra.mxu0 0.0
    %1410 = vmatprep.subr.mxu0 0.0
    %1411 = vmatpush1.msra.mxu0 0.0
    %1412 = vmatprep.subr.mxu0 0.0
    %1413 = vmatpush1.msra.mxu0 0.0
    %1414 = vmatprep.subr.mxu0 0.0
    %1415 = vmatpush1.msra.mxu0 0.0
    %1416 = vmatprep.subr.mxu0 0.0
    %1417 = vmatpush1.msra.mxu0 0.0
    %1418 = vmatprep.mubr.f32.mxu0 0.0
    %1419 = vmatmul.mubr.f32.gmra.mrb[0].mxu0 %v1246
    %v1420 = vpop.f32.mrb[0].mxu0
    %v1421 = vadd.f32 0.0, %v1420
    %v1422 = vpop.f32.mrb[0].mxu0
    %v1423 = vadd.f32 0.0, %v1422
    %1424 = vmatprep.mubr.f32.mxu0 0.0
    %1425 = vmatmul.mubr.f32.gmra.mrb[0].mxu0 %v1249
    %v1426 = vpop.f32.mrb[0].mxu0
    %v1427 = vadd.f32 0.0, %v1426
    %v1428 = vpop.f32.mrb[0].mxu0
    %v1429 = vadd.f32 0.0, %v1428
    %1430 = vmatprep.mubr.f32.mxu0 0.0
    %1431 = vmatmul.mubr.f32.gmra.mrb[0].mxu0 %v1252
    %v1432 = vpop.f32.mrb[0].mxu0
    %v1433 = vadd.f32 0.0, %v1432
    %v1434 = vpop.f32.mrb[0].mxu0
    %v1435 = vadd.f32 0.0, %v1434
    %1436 = vmatprep.mubr.f32.mxu0 0.0
    %1437 = vmatmul.mubr.f32.gmra.mrb[0].mxu0 %v1255
    %v1438 = vpop.f32.mrb[0].mxu0
    %v1439 = vadd.f32 0.0, %v1438
    %v1440 = vpop.f32.mrb[0].mxu0
    %v1441 = vadd.f32 0.0, %v1440
    %1442 = vdwg.mxu0
    %v1444 = vsel %vm1244, %v1222, 0
    %v1447 = vsel %vm1244, %v1223, 0
    %v1450 = vsel %vm1244, %v1224, 0
    %v1453 = vsel %vm1244, %v1225, 0
    %1455 = vmatprep.subr.mxu0 %v1259
    %1456 = vmatpush1.msra.mxu0 %v1257
    %1457 = vmatprep.subr.mxu0 0.0
    %1458 = vmatpush1.msra.mxu0 0.0
    %1459 = vmatprep.subr.mxu0 0.0
    %1460 = vmatpush1.msra.mxu0 0.0
    %1461 = vmatprep.subr.mxu0 0.0
    %1462 = vmatpush1.msra.mxu0 0.0
    %1463 = vmatprep.subr.mxu0 0.0
    %1464 = vmatpush1.msra.mxu0 0.0
    %1465 = vmatprep.subr.mxu0 0.0
    %1466 = vmatpush1.msra.mxu0 0.0
    %1467 = vmatprep.subr.mxu0 0.0
    %1468 = vmatpush1.msra.mxu0 0.0
    %1469 = vmatprep.subr.mxu0 0.0
    %1470 = vmatpush1.msra.mxu0 0.0
    %1471 = vmatprep.subr.mxu0 0.0
    %1472 = vmatpush1.msra.mxu0 0.0
    %1473 = vmatprep.subr.mxu0 0.0
    %1474 = vmatpush1.msra.mxu0 0.0
    %1475 = vmatprep.subr.mxu0 0.0
    %1476 = vmatpush1.msra.mxu0 0.0
    %1477 = vmatprep.subr.mxu0 0.0
    %1478 = vmatpush1.msra.mxu0 0.0
    %1479 = vmatprep.subr.mxu0 0.0
    %1480 = vmatpush1.msra.mxu0 0.0
    %1481 = vmatprep.subr.mxu0 0.0
    %1482 = vmatpush1.msra.mxu0 0.0
    %1483 = vmatprep.subr.mxu0 0.0
    %1484 = vmatpush1.msra.mxu0 0.0
    %1485 = vmatprep.subr.mxu0 0.0
    %1486 = vmatpush1.msra.mxu0 0.0
    %1487 = vmatprep.subr.mxu0 0.0
    %1488 = vmatpush1.msra.mxu0 0.0
    %1489 = vmatprep.subr.mxu0 0.0
    %1490 = vmatpush1.msra.mxu0 0.0
    %1491 = vmatprep.subr.mxu0 0.0
    %1492 = vmatpush1.msra.mxu0 0.0
    %1493 = vmatprep.subr.mxu0 0.0
    %1494 = vmatpush1.msra.mxu0 0.0
    %1495 = vmatprep.subr.mxu0 0.0
    %1496 = vmatpush1.msra.mxu0 0.0
    %1497 = vmatprep.subr.mxu0 0.0
    %1498 = vmatpush1.msra.mxu0 0.0
    %1499 = vmatprep.subr.mxu0 0.0
    %1500 = vmatpush1.msra.mxu0 0.0
    %1501 = vmatprep.subr.mxu0 0.0
    %1502 = vmatpush1.msra.mxu0 0.0
    %1503 = vmatprep.subr.mxu0 0.0
    %1504 = vmatpush1.msra.mxu0 0.0
    %1505 = vmatprep.subr.mxu0 0.0
    %1506 = vmatpush1.msra.mxu0 0.0
    %1507 = vmatprep.subr.mxu0 0.0
    %1508 = vmatpush1.msra.mxu0 0.0
    %1509 = vmatprep.subr.mxu0 0.0
    %1510 = vmatpush1.msra.mxu0 0.0
    %1511 = vmatprep.subr.mxu0 0.0
    %1512 = vmatpush1.msra.mxu0 0.0
    %1513 = vmatprep.subr.mxu0 0.0
    %1514 = vmatpush1.msra.mxu0 0.0
    %1515 = vmatprep.subr.mxu0 0.0
    %1516 = vmatpush1.msra.mxu0 0.0
    %1517 = vmatprep.subr.mxu0 0.0
    %1518 = vmatpush1.msra.mxu0 0.0
    %1519 = vmatprep.mubr.f32.mxu0 0.0
    %1520 = vmatmul.mubr.f32.gmra.mrb[0].mxu0 %v1444
    %v1521 = vpop.f32.mrb[0].mxu0
    %v1522 = vadd.f32 0.0, %v1521
    %v1523 = vpop.f32.mrb[0].mxu0
    %v1524 = vadd.f32 0.0, %v1523
    %1525 = vmatprep.mubr.f32.mxu0 0.0
    %1526 = vmatmul.mubr.f32.gmra.mrb[0].mxu0 %v1447
    %v1527 = vpop.f32.mrb[0].mxu0
    %v1528 = vadd.f32 0.0, %v1527
    %v1529 = vpop.f32.mrb[0].mxu0
    %v1530 = vadd.f32 0.0, %v1529
    %1531 = vmatprep.mubr.f32.mxu0 0.0
    %1532 = vmatmul.mubr.f32.gmra.mrb[0].mxu0 %v1450
    %v1533 = vpop.f32.mrb[0].mxu0
    %v1534 = vadd.f32 0.0, %v1533
    %v1535 = vpop.f32.mrb[0].mxu0
    %v1536 = vadd.f32 0.0, %v1535
    %1537 = vmatprep.mubr.f32.mxu0 0.0
    %1538 = vmatmul.mubr.f32.gmra.mrb[0].mxu0 %v1453
    %v1539 = vpop.f32.mrb[0].mxu0
    %v1540 = vadd.f32 0.0, %v1539
    %v1541 = vpop.f32.mrb[0].mxu0
    %v1542 = vadd.f32 0.0, %v1541
    %1543 = vdwg.mxu0
    %1544 = vmatprep.subr.mxu0 %v1263
    %1545 = vmatpush1.msra.mxu0 %v1261
    %1546 = vmatprep.subr.mxu0 0.0
    %1547 = vmatpush1.msra.mxu0 0.0
    %1548 = vmatprep.subr.mxu0 0.0
    %1549 = vmatpush1.msra.mxu0 0.0
    %1550 = vmatprep.subr.mxu0 0.0
    %1551 = vmatpush1.msra.mxu0 0.0
    %1552 = vmatprep.subr.mxu0 0.0
    %1553 = vmatpush1.msra.mxu0 0.0
    %1554 = vmatprep.subr.mxu0 0.0
    %1555 = vmatpush1.msra.mxu0 0.0
    %1556 = vmatprep.subr.mxu0 0.0
    %1557 = vmatpush1.msra.mxu0 0.0
    %1558 = vmatprep.subr.mxu0 0.0
    %1559 = vmatpush1.msra.mxu0 0.0
    %1560 = vmatprep.subr.mxu0 0.0
    %1561 = vmatpush1.msra.mxu0 0.0
    %1562 = vmatprep.subr.mxu0 0.0
    %1563 = vmatpush1.msra.mxu0 0.0
    %1564 = vmatprep.subr.mxu0 0.0
    %1565 = vmatpush1.msra.mxu0 0.0
    %1566 = vmatprep.subr.mxu0 0.0
    %1567 = vmatpush1.msra.mxu0 0.0
    %1568 = vmatprep.subr.mxu0 0.0
    %1569 = vmatpush1.msra.mxu0 0.0
    %1570 = vmatprep.subr.mxu0 0.0
    %1571 = vmatpush1.msra.mxu0 0.0
    %1572 = vmatprep.subr.mxu0 0.0
    %1573 = vmatpush1.msra.mxu0 0.0
    %1574 = vmatprep.subr.mxu0 0.0
    %1575 = vmatpush1.msra.mxu0 0.0
    %1576 = vmatprep.subr.mxu0 0.0
    %1577 = vmatpush1.msra.mxu0 0.0
    %1578 = vmatprep.subr.mxu0 0.0
    %1579 = vmatpush1.msra.mxu0 0.0
    %1580 = vmatprep.subr.mxu0 0.0
    %1581 = vmatpush1.msra.mxu0 0.0
    %1582 = vmatprep.subr.mxu0 0.0
    %1583 = vmatpush1.msra.mxu0 0.0
    %1584 = vmatprep.subr.mxu0 0.0
    %1585 = vmatpush1.msra.mxu0 0.0
    %1586 = vmatprep.subr.mxu0 0.0
    %1587 = vmatpush1.msra.mxu0 0.0
    %1588 = vmatprep.subr.mxu0 0.0
    %1589 = vmatpush1.msra.mxu0 0.0
    %1590 = vmatprep.subr.mxu0 0.0
    %1591 = vmatpush1.msra.mxu0 0.0
    %1592 = vmatprep.subr.mxu0 0.0
    %1593 = vmatpush1.msra.mxu0 0.0
    %1594 = vmatprep.subr.mxu0 0.0
    %1595 = vmatpush1.msra.mxu0 0.0
    %1596 = vmatprep.subr.mxu0 0.0
    %1597 = vmatpush1.msra.mxu0 0.0
    %1598 = vmatprep.subr.mxu0 0.0
    %1599 = vmatpush1.msra.mxu0 0.0
    %1600 = vmatprep.subr.mxu0 0.0
    %1601 = vmatpush1.msra.mxu0 0.0
    %1602 = vmatprep.subr.mxu0 0.0
    %1603 = vmatpush1.msra.mxu0 0.0
    %1604 = vmatprep.subr.mxu0 0.0
    %1605 = vmatpush1.msra.mxu0 0.0
    %1606 = vmatprep.subr.mxu0 0.0
    %1607 = vmatpush1.msra.mxu0 0.0
    %1608 = vmatprep.mubr.f32.mxu0 0.0
    %1609 = vmatmul.mubr.f32.gmra.mrb[0].mxu0 %v1444
    %v1610 = vpop.f32.mrb[0].mxu0
    %v1611 = vadd.f32 0.0, %v1610
    %v1612 = vpop.f32.mrb[0].mxu0
    %v1613 = vadd.f32 0.0, %v1612
    %1614 = vmatprep.mubr.f32.mxu0 0.0
    %1615 = vmatmul.mubr.f32.gmra.mrb[0].mxu0 %v1447
    %v1616 = vpop.f32.mrb[0].mxu0
    %v1617 = vadd.f32 0.0, %v1616
    %v1618 = vpop.f32.mrb[0].mxu0
    %v1619 = vadd.f32 0.0, %v1618
    %1620 = vmatprep.mubr.f32.mxu0 0.0
    %1621 = vmatmul.mubr.f32.gmra.mrb[0].mxu0 %v1450
    %v1622 = vpop.f32.mrb[0].mxu0
    %v1623 = vadd.f32 0.0, %v1622
    %v1624 = vpop.f32.mrb[0].mxu0
    %v1625 = vadd.f32 0.0, %v1624
    %1626 = vmatprep.mubr.f32.mxu0 0.0
    %1627 = vmatmul.mubr.f32.gmra.mrb[0].mxu0 %v1453
    %v1628 = vpop.f32.mrb[0].mxu0
    %v1629 = vadd.f32 0.0, %v1628
    %v1630 = vpop.f32.mrb[0].mxu0
    %v1631 = vadd.f32 0.0, %v1630
    %1632 = vdwg.mxu0
    %v1633 = vmul.f32 %v556, %v1332
    %v1634 = vmul.f32 %v558, %v1334
    %v1635 = vmul.f32 %v609, %v1421
    %v1636 = vmul.f32 %v611, %v1423
    %v1637 = vmul.f32 %v560, %v1338
    %v1638 = vmul.f32 %v562, %v1340
    %v1639 = vmul.f32 %v613, %v1427
    %v1640 = vmul.f32 %v615, %v1429
    %v1641 = vmul.f32 %v566, %v1344
    %v1642 = vmul.f32 %v568, %v1346
    %v1643 = vmul.f32 %v619, %v1433
    %v1644 = vmul.f32 %v621, %v1435
    %v1645 = vmul.f32 %v570, %v1350
    %v1646 = vmul.f32 %v572, %v1352
    %v1647 = vmul.f32 %v623, %v1439
    %v1648 = vmul.f32 %v625, %v1441
    %v1649 = vadd.f32 %v1633, %v1522
    %v1650 = vadd.f32 %v1634, %v1524
    %v1651 = vadd.f32 %v1635, %v1611
    %v1652 = vadd.f32 %v1636, %v1613
    %v1653 = vadd.f32 %v1637, %v1528
    %v1654 = vadd.f32 %v1638, %v1530
    %v1655 = vadd.f32 %v1639, %v1617
    %v1656 = vadd.f32 %v1640, %v1619
    %v1657 = vadd.f32 %v1641, %v1534
    %v1658 = vadd.f32 %v1642, %v1536
    %v1659 = vadd.f32 %v1643, %v1623
    %v1660 = vadd.f32 %v1644, %v1625
    %v1661 = vadd.f32 %v1645, %v1540
    %v1662 = vadd.f32 %v1646, %v1542
    %v1663 = vadd.f32 %v1647, %v1629
    %v1664 = vadd.f32 %v1648, %v1631
    %v1665 = vmax.f32 %v1649, 0.0
    %v1666 = vmax.f32 %v1650, 0.0
    %v1667 = vmax.f32 %v1651, 0.0
    %v1668 = vmax.f32 %v1652, 0.0
    %v1669 = vmax.f32 %v1653, 0.0
    %v1670 = vmax.f32 %v1654, 0.0
    %v1671 = vmax.f32 %v1655, 0.0
    %v1672 = vmax.f32 %v1656, 0.0
    %v1673 = vmax.f32 %v1657, 0.0
    %v1674 = vmax.f32 %v1658, 0.0
    %v1675 = vmax.f32 %v1659, 0.0
    %v1676 = vmax.f32 %v1660, 0.0
    %v1677 = vmax.f32 %v1661, 0.0
    %v1678 = vmax.f32 %v1662, 0.0
    %v1679 = vmax.f32 %v1663, 0.0
    %v1680 = vmax.f32 %v1664, 0.0
    %v1681 = vld [vmem:[%s2] sm:$0xff]
    %v1682 = vld [vmem:[%s2 + $0x8] sm:$0xf]
    %v1683 = vld [vmem:[%s2 + $0xc] sm:$0xff]
    %v1684 = vld [vmem:[%s2 + $0x14] sm:$0xf]
    %v1685 = vld [vmem:[%s2 + $0x18] sm:$0xff]
    %v1686 = vld [vmem:[%s2 + $0x20] sm:$0xf]
    %v1687 = vld [vmem:[%s2 + $0x24] sm:$0xff]
    %v1688 = vld [vmem:[%s2 + $0x2c] sm:$0xf]
    %1689 = vrot.lane.b32.xlu0 %v1665, 17
    %v1690 = vpop.permute.xlu0 %1689
    %1691 = vrot.lane.b32.xlu0 %v1669, 17
    %v1692 = vpop.permute.xlu0 %1691
    %1693 = vrot.lane.b32.xlu0 %v1673, 17
    %v1694 = vpop.permute.xlu0 %1693
    %1695 = vrot.lane.b32.xlu0 %v1677, 17
    %v1696 = vpop.permute.xlu0 %1695
    %1697 = vrot.lane.b32.xlu0 %v1666, 17
    %v1698 = vpop.permute.xlu0 %1697
    %1699 = vrot.lane.b32.xlu0 %v1670, 17
    %v1700 = vpop.permute.xlu0 %1699
    %1701 = vrot.lane.b32.xlu0 %v1674, 17
    %v1702 = vpop.permute.xlu0 %1701
    %1703 = vrot.lane.b32.xlu0 %v1678, 17
    %v1704 = vpop.permute.xlu0 %1703
    %1705 = vrot.lane.b32.xlu0 %v1667, 17
    %v1706 = vpop.permute.xlu0 %1705
    %1707 = vrot.lane.b32.xlu0 %v1671, 17
    %v1708 = vpop.permute.xlu0 %1707
    %1709 = vrot.lane.b32.xlu0 %v1675, 17
    %v1710 = vpop.permute.xlu0 %1709
    %1711 = vrot.lane.b32.xlu0 %v1679, 17
    %v1712 = vpop.permute.xlu0 %1711
    %1713 = vrot.lane.b32.xlu0 %v1668, 17
    %v1714 = vpop.permute.xlu0 %1713
    %1715 = vrot.lane.b32.xlu0 %v1672, 17
    %v1716 = vpop.permute.xlu0 %1715
    %1717 = vrot.lane.b32.xlu0 %v1676, 17
    %v1718 = vpop.permute.xlu0 %1717
    %1719 = vrot.lane.b32.xlu0 %v1680, 17
    %v1720 = vpop.permute.xlu0 %1719
    %v1721 = vsel %vm138, %v1706, %v1714
    %v1722 = vsel %vm138, %v1708, %v1716
    %v1723 = vsel %vm138, %v1710, %v1718
    %v1724 = vsel %vm138, %v1712, %v1720
    %v1725 = vsel %vm138, %v1698, %v1706
    %v1726 = vsel %vm138, %v1700, %v1708
    %v1727 = vsel %vm138, %v1702, %v1710
    %v1728 = vsel %vm138, %v1704, %v1712
    %v1729 = vsel %vm138, %v1690, %v1698
    %v1730 = vsel %vm138, %v1692, %v1700
    %v1731 = vsel %vm138, %v1694, %v1702
    %v1732 = vsel %vm138, %v1696, %v1704
    %v1733 = vsel %vm138, %v1714, %v1690
    %v1734 = vsel %vm138, %v1716, %v1692
    %v1735 = vsel %vm138, %v1718, %v1694
    %v1736 = vsel %vm138, %v1720, %v1696
    %v1737 = vmul.f32 %v1733, %v146
    %v1738 = vmul.f32 %v1729, %v150
    %v1739 = vmul.f32 %v1725, %v154
    %v1740 = vmul.f32 %v1721, %v158
    %v1741 = vmul.f32 %v1734, %v146
    %v1742 = vmul.f32 %v1730, %v150
    %v1743 = vmul.f32 %v1726, %v154
    %v1744 = vmul.f32 %v1722, %v158
    %v1745 = vmul.f32 %v1735, %v146
    %v1746 = vmul.f32 %v1731, %v150
    %v1747 = vmul.f32 %v1727, %v154
    %v1748 = vmul.f32 %v1723, %v158
    %v1749 = vmul.f32 %v1736, %v146
    %v1750 = vmul.f32 %v1732, %v150
    %v1751 = vmul.f32 %v1728, %v154
    %v1752 = vmul.f32 %v1724, %v158
    %1753 = vrot.lane.b32.xlu0 %v1665, 16
    %v1754 = vpop.permute.xlu0 %1753
    %1755 = vrot.lane.b32.xlu0 %v1669, 16
    %v1756 = vpop.permute.xlu0 %1755
    %1757 = vrot.lane.b32.xlu0 %v1673, 16
    %v1758 = vpop.permute.xlu0 %1757
    %1759 = vrot.lane.b32.xlu0 %v1677, 16
    %v1760 = vpop.permute.xlu0 %1759
    %1761 = vrot.lane.b32.xlu0 %v1666, 16
    %v1762 = vpop.permute.xlu0 %1761
    %1763 = vrot.lane.b32.xlu0 %v1670, 16
    %v1764 = vpop.permute.xlu0 %1763
    %1765 = vrot.lane.b32.xlu0 %v1674, 16
    %v1766 = vpop.permute.xlu0 %1765
    %1767 = vrot.lane.b32.xlu0 %v1678, 16
    %v1768 = vpop.permute.xlu0 %1767
    %1769 = vrot.lane.b32.xlu0 %v1667, 16
    %v1770 = vpop.permute.xlu0 %1769
    %1771 = vrot.lane.b32.xlu0 %v1671, 16
    %v1772 = vpop.permute.xlu0 %1771
    %1773 = vrot.lane.b32.xlu0 %v1675, 16
    %v1774 = vpop.permute.xlu0 %1773
    %1775 = vrot.lane.b32.xlu0 %v1679, 16
    %v1776 = vpop.permute.xlu0 %1775
    %1777 = vrot.lane.b32.xlu0 %v1668, 16
    %v1778 = vpop.permute.xlu0 %1777
    %1779 = vrot.lane.b32.xlu0 %v1672, 16
    %v1780 = vpop.permute.xlu0 %1779
    %1781 = vrot.lane.b32.xlu0 %v1676, 16
    %v1782 = vpop.permute.xlu0 %1781
    %1783 = vrot.lane.b32.xlu0 %v1680, 16
    %v1784 = vpop.permute.xlu0 %1783
    %v1785 = vsel %vm171, %v1770, %v1778
    %v1786 = vsel %vm171, %v1772, %v1780
    %v1787 = vsel %vm171, %v1774, %v1782
    %v1788 = vsel %vm171, %v1776, %v1784
    %v1789 = vsel %vm171, %v1762, %v1770
    %v1790 = vsel %vm171, %v1764, %v1772
    %v1791 = vsel %vm171, %v1766, %v1774
    %v1792 = vsel %vm171, %v1768, %v1776
    %v1793 = vsel %vm171, %v1754, %v1762
    %v1794 = vsel %vm171, %v1756, %v1764
    %v1795 = vsel %vm171, %v1758, %v1766
    %v1796 = vsel %vm171, %v1760, %v1768
    %v1797 = vsel %vm171, %v1778, %v1754
    %v1798 = vsel %vm171, %v1780, %v1756
    %v1799 = vsel %vm171, %v1782, %v1758
    %v1800 = vsel %vm171, %v1784, %v1760
    %v1801 = vmul.f32 %v1797, %v179
    %v1802 = vmul.f32 %v1793, %v183
    %v1803 = vmul.f32 %v1789, %v187
    %v1804 = vmul.f32 %v1785, %v191
    %v1805 = vmul.f32 %v1798, %v179
    %v1806 = vmul.f32 %v1794, %v183
    %v1807 = vmul.f32 %v1790, %v187
    %v1808 = vmul.f32 %v1786, %v191
    %v1809 = vmul.f32 %v1799, %v179
    %v1810 = vmul.f32 %v1795, %v183
    %v1811 = vmul.f32 %v1791, %v187
    %v1812 = vmul.f32 %v1787, %v191
    %v1813 = vmul.f32 %v1800, %v179
    %v1814 = vmul.f32 %v1796, %v183
    %v1815 = vmul.f32 %v1792, %v187
    %v1816 = vmul.f32 %v1788, %v191
    %1817 = vrot.lane.b32.xlu0 %v1665, 15
    %v1818 = vpop.permute.xlu0 %1817
    %1819 = vrot.lane.b32.xlu0 %v1669, 15
    %v1820 = vpop.permute.xlu0 %1819
    %1821 = vrot.lane.b32.xlu0 %v1673, 15
    %v1822 = vpop.permute.xlu0 %1821
    %1823 = vrot.lane.b32.xlu0 %v1677, 15
    %v1824 = vpop.permute.xlu0 %1823
    %1825 = vrot.lane.b32.xlu0 %v1666, 15
    %v1826 = vpop.permute.xlu0 %1825
    %1827 = vrot.lane.b32.xlu0 %v1670, 15
    %v1828 = vpop.permute.xlu0 %1827
    %1829 = vrot.lane.b32.xlu0 %v1674, 15
    %v1830 = vpop.permute.xlu0 %1829
    %1831 = vrot.lane.b32.xlu0 %v1678, 15
    %v1832 = vpop.permute.xlu0 %1831
    %1833 = vrot.lane.b32.xlu0 %v1667, 15
    %v1834 = vpop.permute.xlu0 %1833
    %1835 = vrot.lane.b32.xlu0 %v1671, 15
    %v1836 = vpop.permute.xlu0 %1835
    %1837 = vrot.lane.b32.xlu0 %v1675, 15
    %v1838 = vpop.permute.xlu0 %1837
    %1839 = vrot.lane.b32.xlu0 %v1679, 15
    %v1840 = vpop.permute.xlu0 %1839
    %1841 = vrot.lane.b32.xlu0 %v1668, 15
    %v1842 = vpop.permute.xlu0 %1841
    %1843 = vrot.lane.b32.xlu0 %v1672, 15
    %v1844 = vpop.permute.xlu0 %1843
    %1845 = vrot.lane.b32.xlu0 %v1676, 15
    %v1846 = vpop.permute.xlu0 %1845
    %1847 = vrot.lane.b32.xlu0 %v1680, 15
    %v1848 = vpop.permute.xlu0 %1847
    %v1849 = vsel %vm204, %v1834, %v1842
    %v1850 = vsel %vm204, %v1836, %v1844
    %v1851 = vsel %vm204, %v1838, %v1846
    %v1852 = vsel %vm204, %v1840, %v1848
    %v1853 = vsel %vm204, %v1826, %v1834
    %v1854 = vsel %vm204, %v1828, %v1836
    %v1855 = vsel %vm204, %v1830, %v1838
    %v1856 = vsel %vm204, %v1832, %v1840
    %v1857 = vsel %vm204, %v1818, %v1826
    %v1858 = vsel %vm204, %v1820, %v1828
    %v1859 = vsel %vm204, %v1822, %v1830
    %v1860 = vsel %vm204, %v1824, %v1832
    %v1861 = vsel %vm204, %v1842, %v1818
    %v1862 = vsel %vm204, %v1844, %v1820
    %v1863 = vsel %vm204, %v1846, %v1822
    %v1864 = vsel %vm204, %v1848, %v1824
    %v1865 = vmul.f32 %v1861, %v212
    %v1866 = vmul.f32 %v1857, %v216
    %v1867 = vmul.f32 %v1853, %v220
    %v1868 = vmul.f32 %v1849, %v224
    %v1869 = vmul.f32 %v1862, %v212
    %v1870 = vmul.f32 %v1858, %v216
    %v1871 = vmul.f32 %v1854, %v220
    %v1872 = vmul.f32 %v1850, %v224
    %v1873 = vmul.f32 %v1863, %v212
    %v1874 = vmul.f32 %v1859, %v216
    %v1875 = vmul.f32 %v1855, %v220
    %v1876 = vmul.f32 %v1851, %v224
    %v1877 = vmul.f32 %v1864, %v212
    %v1878 = vmul.f32 %v1860, %v216
    %v1879 = vmul.f32 %v1856, %v220
    %v1880 = vmul.f32 %v1852, %v224
    %1881 = vrot.lane.b32.xlu0 %v1665, 1
    %v1882 = vpop.permute.xlu0 %1881
    %1883 = vrot.lane.b32.xlu0 %v1669, 1
    %v1884 = vpop.permute.xlu0 %1883
    %1885 = vrot.lane.b32.xlu0 %v1673, 1
    %v1886 = vpop.permute.xlu0 %1885
    %1887 = vrot.lane.b32.xlu0 %v1677, 1
    %v1888 = vpop.permute.xlu0 %1887
    %1889 = vrot.lane.b32.xlu0 %v1666, 1
    %v1890 = vpop.permute.xlu0 %1889
    %1891 = vrot.lane.b32.xlu0 %v1670, 1
    %v1892 = vpop.permute.xlu0 %1891
    %1893 = vrot.lane.b32.xlu0 %v1674, 1
    %v1894 = vpop.permute.xlu0 %1893
    %1895 = vrot.lane.b32.xlu0 %v1678, 1
    %v1896 = vpop.permute.xlu0 %1895
    %1897 = vrot.lane.b32.xlu0 %v1667, 1
    %v1898 = vpop.permute.xlu0 %1897
    %1899 = vrot.lane.b32.xlu0 %v1671, 1
    %v1900 = vpop.permute.xlu0 %1899
    %1901 = vrot.lane.b32.xlu0 %v1675, 1
    %v1902 = vpop.permute.xlu0 %1901
    %1903 = vrot.lane.b32.xlu0 %v1679, 1
    %v1904 = vpop.permute.xlu0 %1903
    %1905 = vrot.lane.b32.xlu0 %v1668, 1
    %v1906 = vpop.permute.xlu0 %1905
    %1907 = vrot.lane.b32.xlu0 %v1672, 1
    %v1908 = vpop.permute.xlu0 %1907
    %1909 = vrot.lane.b32.xlu0 %v1676, 1
    %v1910 = vpop.permute.xlu0 %1909
    %1911 = vrot.lane.b32.xlu0 %v1680, 1
    %v1912 = vpop.permute.xlu0 %1911
    %v1913 = vsel %vm237, %v1898, %v1906
    %v1914 = vsel %vm237, %v1900, %v1908
    %v1915 = vsel %vm237, %v1902, %v1910
    %v1916 = vsel %vm237, %v1904, %v1912
    %v1917 = vsel %vm237, %v1890, %v1898
    %v1918 = vsel %vm237, %v1892, %v1900
    %v1919 = vsel %vm237, %v1894, %v1902
    %v1920 = vsel %vm237, %v1896, %v1904
    %v1921 = vsel %vm237, %v1882, %v1890
    %v1922 = vsel %vm237, %v1884, %v1892
    %v1923 = vsel %vm237, %v1886, %v1894
    %v1924 = vsel %vm237, %v1888, %v1896
    %v1925 = vsel %vm237, %v1906, %v1882
    %v1926 = vsel %vm237, %v1908, %v1884
    %v1927 = vsel %vm237, %v1910, %v1886
    %v1928 = vsel %vm237, %v1912, %v1888
    %v1929 = vmul.f32 %v1925, %v245
    %v1930 = vmul.f32 %v1921, %v249
    %v1931 = vmul.f32 %v1917, %v253
    %v1932 = vmul.f32 %v1913, %v257
    %v1933 = vmul.f32 %v1926, %v245
    %v1934 = vmul.f32 %v1922, %v249
    %v1935 = vmul.f32 %v1918, %v253
    %v1936 = vmul.f32 %v1914, %v257
    %v1937 = vmul.f32 %v1927, %v245
    %v1938 = vmul.f32 %v1923, %v249
    %v1939 = vmul.f32 %v1919, %v253
    %v1940 = vmul.f32 %v1915, %v257
    %v1941 = vmul.f32 %v1928, %v245
    %v1942 = vmul.f32 %v1924, %v249
    %v1943 = vmul.f32 %v1920, %v253
    %v1944 = vmul.f32 %v1916, %v257
    %1945 = vrot.lane.b32.xlu0 %v1665, 127
    %v1946 = vpop.permute.xlu0 %1945
    %1947 = vrot.lane.b32.xlu0 %v1669, 127
    %v1948 = vpop.permute.xlu0 %1947
    %1949 = vrot.lane.b32.xlu0 %v1673, 127
    %v1950 = vpop.permute.xlu0 %1949
    %1951 = vrot.lane.b32.xlu0 %v1677, 127
    %v1952 = vpop.permute.xlu0 %1951
    %1953 = vrot.lane.b32.xlu0 %v1666, 127
    %v1954 = vpop.permute.xlu0 %1953
    %1955 = vrot.lane.b32.xlu0 %v1670, 127
    %v1956 = vpop.permute.xlu0 %1955
    %1957 = vrot.lane.b32.xlu0 %v1674, 127
    %v1958 = vpop.permute.xlu0 %1957
    %1959 = vrot.lane.b32.xlu0 %v1678, 127
    %v1960 = vpop.permute.xlu0 %1959
    %1961 = vrot.lane.b32.xlu0 %v1667, 127
    %v1962 = vpop.permute.xlu0 %1961
    %1963 = vrot.lane.b32.xlu0 %v1671, 127
    %v1964 = vpop.permute.xlu0 %1963
    %1965 = vrot.lane.b32.xlu0 %v1675, 127
    %v1966 = vpop.permute.xlu0 %1965
    %1967 = vrot.lane.b32.xlu0 %v1679, 127
    %v1968 = vpop.permute.xlu0 %1967
    %1969 = vrot.lane.b32.xlu0 %v1668, 127
    %v1970 = vpop.permute.xlu0 %1969
    %1971 = vrot.lane.b32.xlu0 %v1672, 127
    %v1972 = vpop.permute.xlu0 %1971
    %1973 = vrot.lane.b32.xlu0 %v1676, 127
    %v1974 = vpop.permute.xlu0 %1973
    %1975 = vrot.lane.b32.xlu0 %v1680, 127
    %v1976 = vpop.permute.xlu0 %1975
    %v1977 = vsel %vm270, %v1962, %v1970
    %v1978 = vsel %vm270, %v1964, %v1972
    %v1979 = vsel %vm270, %v1966, %v1974
    %v1980 = vsel %vm270, %v1968, %v1976
    %v1981 = vsel %vm270, %v1954, %v1962
    %v1982 = vsel %vm270, %v1956, %v1964
    %v1983 = vsel %vm270, %v1958, %v1966
    %v1984 = vsel %vm270, %v1960, %v1968
    %v1985 = vsel %vm270, %v1946, %v1954
    %v1986 = vsel %vm270, %v1948, %v1956
    %v1987 = vsel %vm270, %v1950, %v1958
    %v1988 = vsel %vm270, %v1952, %v1960
    %v1989 = vsel %vm270, %v1970, %v1946
    %v1990 = vsel %vm270, %v1972, %v1948
    %v1991 = vsel %vm270, %v1974, %v1950
    %v1992 = vsel %vm270, %v1976, %v1952
    %v1993 = vmul.f32 %v1985, %v278
    %v1994 = vmul.f32 %v1981, %v282
    %v1995 = vmul.f32 %v1977, %v286
    %v1996 = vmul.f32 %v1989, %v290
    %v1997 = vmul.f32 %v1986, %v278
    %v1998 = vmul.f32 %v1982, %v282
    %v1999 = vmul.f32 %v1978, %v286
    %v2000 = vmul.f32 %v1990, %v290
    %v2001 = vmul.f32 %v1987, %v278
    %v2002 = vmul.f32 %v1983, %v282
    %v2003 = vmul.f32 %v1979, %v286
    %v2004 = vmul.f32 %v1991, %v290
    %v2005 = vmul.f32 %v1988, %v278
    %v2006 = vmul.f32 %v1984, %v282
    %v2007 = vmul.f32 %v1980, %v286
    %v2008 = vmul.f32 %v1992, %v290
    %2009 = vrot.lane.b32.xlu0 %v1665, 113
    %v2010 = vpop.permute.xlu0 %2009
    %2011 = vrot.lane.b32.xlu0 %v1669, 113
    %v2012 = vpop.permute.xlu0 %2011
    %2013 = vrot.lane.b32.xlu0 %v1673, 113
    %v2014 = vpop.permute.xlu0 %2013
    %2015 = vrot.lane.b32.xlu0 %v1677, 113
    %v2016 = vpop.permute.xlu0 %2015
    %2017 = vrot.lane.b32.xlu0 %v1666, 113
    %v2018 = vpop.permute.xlu0 %2017
    %2019 = vrot.lane.b32.xlu0 %v1670, 113
    %v2020 = vpop.permute.xlu0 %2019
    %2021 = vrot.lane.b32.xlu0 %v1674, 113
    %v2022 = vpop.permute.xlu0 %2021
    %2023 = vrot.lane.b32.xlu0 %v1678, 113
    %v2024 = vpop.permute.xlu0 %2023
    %2025 = vrot.lane.b32.xlu0 %v1667, 113
    %v2026 = vpop.permute.xlu0 %2025
    %2027 = vrot.lane.b32.xlu0 %v1671, 113
    %v2028 = vpop.permute.xlu0 %2027
    %2029 = vrot.lane.b32.xlu0 %v1675, 113
    %v2030 = vpop.permute.xlu0 %2029
    %2031 = vrot.lane.b32.xlu0 %v1679, 113
    %v2032 = vpop.permute.xlu0 %2031
    %2033 = vrot.lane.b32.xlu0 %v1668, 113
    %v2034 = vpop.permute.xlu0 %2033
    %2035 = vrot.lane.b32.xlu0 %v1672, 113
    %v2036 = vpop.permute.xlu0 %2035
    %2037 = vrot.lane.b32.xlu0 %v1676, 113
    %v2038 = vpop.permute.xlu0 %2037
    %2039 = vrot.lane.b32.xlu0 %v1680, 113
    %v2040 = vpop.permute.xlu0 %2039
    %v2041 = vsel %vm303, %v2026, %v2034
    %v2042 = vsel %vm303, %v2028, %v2036
    %v2043 = vsel %vm303, %v2030, %v2038
    %v2044 = vsel %vm303, %v2032, %v2040
    %v2045 = vsel %vm303, %v2018, %v2026
    %v2046 = vsel %vm303, %v2020, %v2028
    %v2047 = vsel %vm303, %v2022, %v2030
    %v2048 = vsel %vm303, %v2024, %v2032
    %v2049 = vsel %vm303, %v2010, %v2018
    %v2050 = vsel %vm303, %v2012, %v2020
    %v2051 = vsel %vm303, %v2014, %v2022
    %v2052 = vsel %vm303, %v2016, %v2024
    %v2053 = vsel %vm303, %v2034, %v2010
    %v2054 = vsel %vm303, %v2036, %v2012
    %v2055 = vsel %vm303, %v2038, %v2014
    %v2056 = vsel %vm303, %v2040, %v2016
    %v2057 = vmul.f32 %v2049, %v311
    %v2058 = vmul.f32 %v2045, %v315
    %v2059 = vmul.f32 %v2041, %v319
    %v2060 = vmul.f32 %v2053, %v323
    %v2061 = vmul.f32 %v2050, %v311
    %v2062 = vmul.f32 %v2046, %v315
    %v2063 = vmul.f32 %v2042, %v319
    %v2064 = vmul.f32 %v2054, %v323
    %v2065 = vmul.f32 %v2051, %v311
    %v2066 = vmul.f32 %v2047, %v315
    %v2067 = vmul.f32 %v2043, %v319
    %v2068 = vmul.f32 %v2055, %v323
    %v2069 = vmul.f32 %v2052, %v311
    %v2070 = vmul.f32 %v2048, %v315
    %v2071 = vmul.f32 %v2044, %v319
    %v2072 = vmul.f32 %v2056, %v323
    %2073 = vrot.lane.b32.xlu0 %v1665, 112
    %v2074 = vpop.permute.xlu0 %2073
    %2075 = vrot.lane.b32.xlu0 %v1669, 112
    %v2076 = vpop.permute.xlu0 %2075
    %2077 = vrot.lane.b32.xlu0 %v1673, 112
    %v2078 = vpop.permute.xlu0 %2077
    %2079 = vrot.lane.b32.xlu0 %v1677, 112
    %v2080 = vpop.permute.xlu0 %2079
    %2081 = vrot.lane.b32.xlu0 %v1666, 112
    %v2082 = vpop.permute.xlu0 %2081
    %2083 = vrot.lane.b32.xlu0 %v1670, 112
    %v2084 = vpop.permute.xlu0 %2083
    %2085 = vrot.lane.b32.xlu0 %v1674, 112
    %v2086 = vpop.permute.xlu0 %2085
    %2087 = vrot.lane.b32.xlu0 %v1678, 112
    %v2088 = vpop.permute.xlu0 %2087
    %2089 = vrot.lane.b32.xlu0 %v1667, 112
    %v2090 = vpop.permute.xlu0 %2089
    %2091 = vrot.lane.b32.xlu0 %v1671, 112
    %v2092 = vpop.permute.xlu0 %2091
    %2093 = vrot.lane.b32.xlu0 %v1675, 112
    %v2094 = vpop.permute.xlu0 %2093
    %2095 = vrot.lane.b32.xlu0 %v1679, 112
    %v2096 = vpop.permute.xlu0 %2095
    %2097 = vrot.lane.b32.xlu0 %v1668, 112
    %v2098 = vpop.permute.xlu0 %2097
    %2099 = vrot.lane.b32.xlu0 %v1672, 112
    %v2100 = vpop.permute.xlu0 %2099
    %2101 = vrot.lane.b32.xlu0 %v1676, 112
    %v2102 = vpop.permute.xlu0 %2101
    %2103 = vrot.lane.b32.xlu0 %v1680, 112
    %v2104 = vpop.permute.xlu0 %2103
    %v2105 = vsel %vm336, %v2090, %v2098
    %v2106 = vsel %vm336, %v2092, %v2100
    %v2107 = vsel %vm336, %v2094, %v2102
    %v2108 = vsel %vm336, %v2096, %v2104
    %v2109 = vsel %vm336, %v2082, %v2090
    %v2110 = vsel %vm336, %v2084, %v2092
    %v2111 = vsel %vm336, %v2086, %v2094
    %v2112 = vsel %vm336, %v2088, %v2096
    %v2113 = vsel %vm336, %v2074, %v2082
    %v2114 = vsel %vm336, %v2076, %v2084
    %v2115 = vsel %vm336, %v2078, %v2086
    %v2116 = vsel %vm336, %v2080, %v2088
    %v2117 = vsel %vm336, %v2098, %v2074
    %v2118 = vsel %vm336, %v2100, %v2076
    %v2119 = vsel %vm336, %v2102, %v2078
    %v2120 = vsel %vm336, %v2104, %v2080
    %v2121 = vmul.f32 %v2113, %v344
    %v2122 = vmul.f32 %v2109, %v348
    %v2123 = vmul.f32 %v2105, %v352
    %v2124 = vmul.f32 %v2117, %v356
    %v2125 = vmul.f32 %v2114, %v344
    %v2126 = vmul.f32 %v2110, %v348
    %v2127 = vmul.f32 %v2106, %v352
    %v2128 = vmul.f32 %v2118, %v356
    %v2129 = vmul.f32 %v2115, %v344
    %v2130 = vmul.f32 %v2111, %v348
    %v2131 = vmul.f32 %v2107, %v352
    %v2132 = vmul.f32 %v2119, %v356
    %v2133 = vmul.f32 %v2116, %v344
    %v2134 = vmul.f32 %v2112, %v348
    %v2135 = vmul.f32 %v2108, %v352
    %v2136 = vmul.f32 %v2120, %v356
    %2137 = vrot.lane.b32.xlu0 %v1665, 111
    %v2138 = vpop.permute.xlu0 %2137
    %2139 = vrot.lane.b32.xlu0 %v1669, 111
    %v2140 = vpop.permute.xlu0 %2139
    %2141 = vrot.lane.b32.xlu0 %v1673, 111
    %v2142 = vpop.permute.xlu0 %2141
    %2143 = vrot.lane.b32.xlu0 %v1677, 111
    %v2144 = vpop.permute.xlu0 %2143
    %2145 = vrot.lane.b32.xlu0 %v1666, 111
    %v2146 = vpop.permute.xlu0 %2145
    %2147 = vrot.lane.b32.xlu0 %v1670, 111
    %v2148 = vpop.permute.xlu0 %2147
    %2149 = vrot.lane.b32.xlu0 %v1674, 111
    %v2150 = vpop.permute.xlu0 %2149
    %2151 = vrot.lane.b32.xlu0 %v1678, 111
    %v2152 = vpop.permute.xlu0 %2151
    %2153 = vrot.lane.b32.xlu0 %v1667, 111
    %v2154 = vpop.permute.xlu0 %2153
    %2155 = vrot.lane.b32.xlu0 %v1671, 111
    %v2156 = vpop.permute.xlu0 %2155
    %2157 = vrot.lane.b32.xlu0 %v1675, 111
    %v2158 = vpop.permute.xlu0 %2157
    %2159 = vrot.lane.b32.xlu0 %v1679, 111
    %v2160 = vpop.permute.xlu0 %2159
    %2161 = vrot.lane.b32.xlu0 %v1668, 111
    %v2162 = vpop.permute.xlu0 %2161
    %2163 = vrot.lane.b32.xlu0 %v1672, 111
    %v2164 = vpop.permute.xlu0 %2163
    %2165 = vrot.lane.b32.xlu0 %v1676, 111
    %v2166 = vpop.permute.xlu0 %2165
    %2167 = vrot.lane.b32.xlu0 %v1680, 111
    %v2168 = vpop.permute.xlu0 %2167
    %v2169 = vsel %vm369, %v2154, %v2162
    %v2170 = vsel %vm369, %v2156, %v2164
    %v2171 = vsel %vm369, %v2158, %v2166
    %v2172 = vsel %vm369, %v2160, %v2168
    %v2173 = vsel %vm369, %v2146, %v2154
    %v2174 = vsel %vm369, %v2148, %v2156
    %v2175 = vsel %vm369, %v2150, %v2158
    %v2176 = vsel %vm369, %v2152, %v2160
    %v2177 = vsel %vm369, %v2138, %v2146
    %v2178 = vsel %vm369, %v2140, %v2148
    %v2179 = vsel %vm369, %v2142, %v2150
    %v2180 = vsel %vm369, %v2144, %v2152
    %v2181 = vsel %vm369, %v2162, %v2138
    %v2182 = vsel %vm369, %v2164, %v2140
    %v2183 = vsel %vm369, %v2166, %v2142
    %v2184 = vsel %vm369, %v2168, %v2144
    %v2185 = vmul.f32 %v2177, %v377
    %v2186 = vmul.f32 %v2173, %v381
    %v2187 = vmul.f32 %v2169, %v385
    %v2188 = vmul.f32 %v2181, %v389
    %v2189 = vmul.f32 %v2178, %v377
    %v2190 = vmul.f32 %v2174, %v381
    %v2191 = vmul.f32 %v2170, %v385
    %v2192 = vmul.f32 %v2182, %v389
    %v2193 = vmul.f32 %v2179, %v377
    %v2194 = vmul.f32 %v2175, %v381
    %v2195 = vmul.f32 %v2171, %v385
    %v2196 = vmul.f32 %v2183, %v389
    %v2197 = vmul.f32 %v2180, %v377
    %v2198 = vmul.f32 %v2176, %v381
    %v2199 = vmul.f32 %v2172, %v385
    %v2200 = vmul.f32 %v2184, %v389
    %v2201 = vpack.c.bf16 %v1741, %v1737
    %v2202 = vpack.c.bf16 %v1742, %v1738
    %v2203 = vpack.c.bf16 %v1743, %v1739
    %v2204 = vpack.c.bf16 %v1744, %v1740
    %v2205 = vpack.c.bf16 %v1749, %v1745
    %v2206 = vpack.c.bf16 %v1750, %v1746
    %v2207 = vpack.c.bf16 %v1751, %v1747
    %v2208 = vpack.c.bf16 %v1752, %v1748
    %v2209 = vpack.c.bf16 %v1805, %v1801
    %v2210 = vpack.c.bf16 %v1806, %v1802
    %v2211 = vpack.c.bf16 %v1807, %v1803
    %v2212 = vpack.c.bf16 %v1808, %v1804
    %v2213 = vpack.c.bf16 %v1813, %v1809
    %v2214 = vpack.c.bf16 %v1814, %v1810
    %v2215 = vpack.c.bf16 %v1815, %v1811
    %v2216 = vpack.c.bf16 %v1816, %v1812
    %v2217 = vpack.c.bf16 %v1869, %v1865
    %v2218 = vpack.c.bf16 %v1870, %v1866
    %v2219 = vpack.c.bf16 %v1871, %v1867
    %v2220 = vpack.c.bf16 %v1872, %v1868
    %v2221 = vpack.c.bf16 %v1877, %v1873
    %v2222 = vpack.c.bf16 %v1878, %v1874
    %v2223 = vpack.c.bf16 %v1879, %v1875
    %v2224 = vpack.c.bf16 %v1880, %v1876
    %v2225 = vpack.c.bf16 %v1933, %v1929
    %v2226 = vpack.c.bf16 %v1934, %v1930
    %v2227 = vpack.c.bf16 %v1935, %v1931
    %v2228 = vpack.c.bf16 %v1936, %v1932
    %v2229 = vpack.c.bf16 %v1941, %v1937
    %v2230 = vpack.c.bf16 %v1942, %v1938
    %v2231 = vpack.c.bf16 %v1943, %v1939
    %v2232 = vpack.c.bf16 %v1944, %v1940
    %v2233 = vpack.c.bf16 %v1669, %v1665
    %v2234 = vpack.c.bf16 %v1670, %v1666
    %v2235 = vpack.c.bf16 %v1671, %v1667
    %v2236 = vpack.c.bf16 %v1672, %v1668
    %v2237 = vpack.c.bf16 %v1677, %v1673
    %v2238 = vpack.c.bf16 %v1678, %v1674
    %v2239 = vpack.c.bf16 %v1679, %v1675
    %v2240 = vpack.c.bf16 %v1680, %v1676
    %v2241 = vpack.c.bf16 %v1997, %v1993
    %v2242 = vpack.c.bf16 %v1998, %v1994
    %v2243 = vpack.c.bf16 %v1999, %v1995
    %v2244 = vpack.c.bf16 %v2000, %v1996
    %v2245 = vpack.c.bf16 %v2005, %v2001
    %v2246 = vpack.c.bf16 %v2006, %v2002
    %v2247 = vpack.c.bf16 %v2007, %v2003
    %v2248 = vpack.c.bf16 %v2008, %v2004
    %v2249 = vpack.c.bf16 %v2061, %v2057
    %v2250 = vpack.c.bf16 %v2062, %v2058
    %v2251 = vpack.c.bf16 %v2063, %v2059
    %v2252 = vpack.c.bf16 %v2064, %v2060
    %v2253 = vpack.c.bf16 %v2069, %v2065
    %v2254 = vpack.c.bf16 %v2070, %v2066
    %v2255 = vpack.c.bf16 %v2071, %v2067
    %v2256 = vpack.c.bf16 %v2072, %v2068
    %v2257 = vpack.c.bf16 %v2125, %v2121
    %v2258 = vpack.c.bf16 %v2126, %v2122
    %v2259 = vpack.c.bf16 %v2127, %v2123
    %v2260 = vpack.c.bf16 %v2128, %v2124
    %v2261 = vpack.c.bf16 %v2133, %v2129
    %v2262 = vpack.c.bf16 %v2134, %v2130
    %v2263 = vpack.c.bf16 %v2135, %v2131
    %v2264 = vpack.c.bf16 %v2136, %v2132
    %v2265 = vpack.c.bf16 %v2189, %v2185
    %v2266 = vpack.c.bf16 %v2190, %v2186
    %v2267 = vpack.c.bf16 %v2191, %v2187
    %v2268 = vpack.c.bf16 %v2192, %v2188
    %v2269 = vpack.c.bf16 %v2197, %v2193
    %v2270 = vpack.c.bf16 %v2198, %v2194
    %v2271 = vpack.c.bf16 %v2199, %v2195
    %v2272 = vpack.c.bf16 %v2200, %v2196
    %2273 = vset.pattern.permute.xlu0 3
    %2274 = vperm.xlu0 %2273, %v111
    %v2275 = vpop.permute.xlu0 %2274
    %2277 = vset.pattern.permute.xlu0 3
    %2278 = vperm.xlu0 %2277, %v112
    %v2279 = vpop.permute.xlu0 %2278
    %2281 = vset.pattern.permute.xlu0 3
    %2282 = vperm.xlu0 %2281, %v113
    %v2283 = vpop.permute.xlu0 %2282
    %2285 = vset.pattern.permute.xlu0 3
    %2286 = vperm.xlu0 %2285, %v114
    %v2287 = vpop.permute.xlu0 %2286
    %v2297 = vunpack.c.l.b16 %v1681
    %v2298 = vunpack.c.h.b16 %v1681
    %v2299 = vunpack.c.l.b16 %v1682
    %v2300 = vunpack.c.l.b16 %v1683
    %v2301 = vunpack.c.h.b16 %v1683
    %v2302 = vunpack.c.l.b16 %v1684
    %v2303 = vunpack.c.l.b16 %v1685
    %v2304 = vunpack.c.h.b16 %v1685
    %v2305 = vunpack.c.l.b16 %v1686
    %v2306 = vunpack.c.l.b16 %v1687
    %v2307 = vunpack.c.h.b16 %v1687
    %v2308 = vunpack.c.l.b16 %v1688
    %v2309 = vpack.c.b16 %v2300, %v2297
    %v2310 = vpack.c.b16 %v2301, %v2298
    %v2311 = vpack.c.b16 %v2302, %v2299
    %v2312 = vpack.c.b16 %v2306, %v2303
    %v2313 = vpack.c.b16 %v2307, %v2304
    %v2314 = vpack.c.b16 %v2308, %v2305
    %v2320 = vsel %vm983, %v2311, 0
    %v2323 = vsel %vm983, %v2314, 0
    %2325 = vmatprep.subr.bf16.mxu0 %v2202
    %2326 = vmatpush1.bf16.msra.mxu0 %v2201
    %2327 = vmatprep.subr.bf16.mxu0 %v2206
    %2328 = vmatpush1.bf16.msra.mxu0 %v2205
    %2329 = vmatprep.subr.bf16.mxu0 %v2210
    %2330 = vmatpush1.bf16.msra.mxu0 %v2209
    %2331 = vmatprep.subr.bf16.mxu0 %v2214
    %2332 = vmatpush1.bf16.msra.mxu0 %v2213
    %2333 = vmatprep.subr.bf16.mxu0 %v2218
    %2334 = vmatpush1.bf16.msra.mxu0 %v2217
    %2335 = vmatprep.subr.bf16.mxu0 %v2222
    %2336 = vmatpush1.bf16.msra.mxu0 %v2221
    %2337 = vmatprep.subr.bf16.mxu0 %v2226
    %2338 = vmatpush1.bf16.msra.mxu0 %v2225
    %2339 = vmatprep.subr.bf16.mxu0 %v2230
    %2340 = vmatpush1.bf16.msra.mxu0 %v2229
    %2341 = vmatprep.subr.bf16.mxu0 %v2234
    %2342 = vmatpush1.bf16.msra.mxu0 %v2233
    %2343 = vmatprep.subr.bf16.mxu0 %v2238
    %2344 = vmatpush1.bf16.msra.mxu0 %v2237
    %2345 = vmatprep.subr.bf16.mxu0 %v2242
    %2346 = vmatpush1.bf16.msra.mxu0 %v2241
    %2347 = vmatprep.subr.bf16.mxu0 %v2246
    %2348 = vmatpush1.bf16.msra.mxu0 %v2245
    %2349 = vmatprep.subr.bf16.mxu0 %v2250
    %2350 = vmatpush1.bf16.msra.mxu0 %v2249
    %2351 = vmatprep.subr.bf16.mxu0 %v2254
    %2352 = vmatpush1.bf16.msra.mxu0 %v2253
    %2353 = vmatprep.subr.bf16.mxu0 %v2258
    %2354 = vmatpush1.bf16.msra.mxu0 %v2257
    %2355 = vmatprep.subr.bf16.mxu0 %v2262
    %2356 = vmatpush1.bf16.msra.mxu0 %v2261
    %2357 = vmatprep.mubr.bf16.mxu0 %v2310
    %2358 = vmatmul.mubr.bf16.gmra.mrb[0].mxu0 %v2309
    %v2359 = vpop.f32.mrb[0].mxu0
    %v2360 = vadd.f32 %v2275, %v2359
    %v2361 = vpop.f32.mrb[0].mxu0
    %v2362 = vadd.f32 %v2275, %v2361
    %v2363 = vpop.f32.mrb[0].mxu0
    %v2364 = vadd.f32 %v2279, %v2363
    %v2365 = vpop.f32.mrb[0].mxu0
    %v2366 = vadd.f32 %v2279, %v2365
    %2367 = vmatprep.mubr.bf16.mxu0 %v2313
    %2368 = vmatmul.mubr.bf16.gmra.mrb[0].mxu0 %v2312
    %v2369 = vpop.f32.mrb[0].mxu0
    %v2370 = vadd.f32 %v2283, %v2369
    %v2371 = vpop.f32.mrb[0].mxu0
    %v2372 = vadd.f32 %v2283, %v2371
    %v2373 = vpop.f32.mrb[0].mxu0
    %v2374 = vadd.f32 %v2287, %v2373
    %v2375 = vpop.f32.mrb[0].mxu0
    %v2376 = vadd.f32 %v2287, %v2375
    %2377 = vdwg.mxu0
    %2378 = vmatprep.subr.bf16.mxu0 %v2266
    %2379 = vmatpush1.bf16.msra.mxu0 %v2265
    %2380 = vmatprep.subr.bf16.mxu0 %v2270
    %2381 = vmatpush1.bf16.msra.mxu0 %v2269
    %2382 = vmatprep.subr.bf16.mxu0 0
    %2383 = vmatpush1.bf16.msra.mxu0 0
    %2384 = vmatprep.subr.bf16.mxu0 0
    %2385 = vmatpush1.bf16.msra.mxu0 0
    %2386 = vmatprep.subr.bf16.mxu0 0
    %2387 = vmatpush1.bf16.msra.mxu0 0
    %2388 = vmatprep.subr.bf16.mxu0 0
    %2389 = vmatpush1.bf16.msra.mxu0 0
    %2390 = vmatprep.subr.bf16.mxu0 0
    %2391 = vmatpush1.bf16.msra.mxu0 0
    %2392 = vmatprep.subr.bf16.mxu0 0
    %2393 = vmatpush1.bf16.msra.mxu0 0
    %2394 = vmatprep.subr.bf16.mxu0 0
    %2395 = vmatpush1.bf16.msra.mxu0 0
    %2396 = vmatprep.subr.bf16.mxu0 0
    %2397 = vmatpush1.bf16.msra.mxu0 0
    %2398 = vmatprep.subr.bf16.mxu0 0
    %2399 = vmatpush1.bf16.msra.mxu0 0
    %2400 = vmatprep.subr.bf16.mxu0 0
    %2401 = vmatpush1.bf16.msra.mxu0 0
    %2402 = vmatprep.subr.bf16.mxu0 0
    %2403 = vmatpush1.bf16.msra.mxu0 0
    %2404 = vmatprep.subr.bf16.mxu0 0
    %2405 = vmatpush1.bf16.msra.mxu0 0
    %2406 = vmatprep.subr.bf16.mxu0 0
    %2407 = vmatpush1.bf16.msra.mxu0 0
    %2408 = vmatprep.subr.bf16.mxu0 0
    %2409 = vmatpush1.bf16.msra.mxu0 0
    %2410 = vmatprep.mubr.bf16.mxu0 0
    %2411 = vmatmul.mubr.bf16.gmra.mrb[0].mxu0 %v2320
    %v2412 = vpop.f32.mrb[0].mxu0
    %v2413 = vadd.f32 %v2360, %v2412
    %v2414 = vpop.f32.mrb[0].mxu0
    %v2415 = vadd.f32 %v2362, %v2414
    %v2416 = vpop.f32.mrb[0].mxu0
    %v2417 = vadd.f32 %v2364, %v2416
    %v2418 = vpop.f32.mrb[0].mxu0
    %v2419 = vadd.f32 %v2366, %v2418
    %2420 = vmatprep.mubr.bf16.mxu0 0
    %2421 = vmatmul.mubr.bf16.gmra.mrb[0].mxu0 %v2323
    %v2422 = vpop.f32.mrb[0].mxu0
    %v2423 = vadd.f32 %v2370, %v2422
    %v2424 = vpop.f32.mrb[0].mxu0
    %v2425 = vadd.f32 %v2372, %v2424
    %v2426 = vpop.f32.mrb[0].mxu0
    %v2427 = vadd.f32 %v2374, %v2426
    %v2428 = vpop.f32.mrb[0].mxu0
    %v2429 = vadd.f32 %v2376, %v2428
    %2430 = vdwg.mxu0
    %2431 = vmatprep.subr.bf16.mxu0 %v2204
    %2432 = vmatpush1.bf16.msra.mxu0 %v2203
    %2433 = vmatprep.subr.bf16.mxu0 %v2208
    %2434 = vmatpush1.bf16.msra.mxu0 %v2207
    %2435 = vmatprep.subr.bf16.mxu0 %v2212
    %2436 = vmatpush1.bf16.msra.mxu0 %v2211
    %2437 = vmatprep.subr.bf16.mxu0 %v2216
    %2438 = vmatpush1.bf16.msra.mxu0 %v2215
    %2439 = vmatprep.subr.bf16.mxu0 %v2220
    %2440 = vmatpush1.bf16.msra.mxu0 %v2219
    %2441 = vmatprep.subr.bf16.mxu0 %v2224
    %2442 = vmatpush1.bf16.msra.mxu0 %v2223
    %2443 = vmatprep.subr.bf16.mxu0 %v2228
    %2444 = vmatpush1.bf16.msra.mxu0 %v2227
    %2445 = vmatprep.subr.bf16.mxu0 %v2232
    %2446 = vmatpush1.bf16.msra.mxu0 %v2231
    %2447 = vmatprep.subr.bf16.mxu0 %v2236
    %2448 = vmatpush1.bf16.msra.mxu0 %v2235
    %2449 = vmatprep.subr.bf16.mxu0 %v2240
    %2450 = vmatpush1.bf16.msra.mxu0 %v2239
    %2451 = vmatprep.subr.bf16.mxu0 %v2244
    %2452 = vmatpush1.bf16.msra.mxu0 %v2243
    %2453 = vmatprep.subr.bf16.mxu0 %v2248
    %2454 = vmatpush1.bf16.msra.mxu0 %v2247
    %2455 = vmatprep.subr.bf16.mxu0 %v2252
    %2456 = vmatpush1.bf16.msra.mxu0 %v2251
    %2457 = vmatprep.subr.bf16.mxu0 %v2256
    %2458 = vmatpush1.bf16.msra.mxu0 %v2255
    %2459 = vmatprep.subr.bf16.mxu0 %v2260
    %2460 = vmatpush1.bf16.msra.mxu0 %v2259
    %2461 = vmatprep.subr.bf16.mxu0 %v2264
    %2462 = vmatpush1.bf16.msra.mxu0 %v2263
    %2463 = vmatprep.mubr.bf16.mxu0 %v2310
    %2464 = vmatmul.mubr.bf16.gmra.mrb[0].mxu0 %v2309
    %v2465 = vpop.f32.mrb[0].mxu0
    %v2466 = vadd.f32 %v2275, %v2465
    %v2467 = vpop.f32.mrb[0].mxu0
    %v2468 = vadd.f32 %v2275, %v2467
    %v2469 = vpop.f32.mrb[0].mxu0
    %v2470 = vadd.f32 %v2279, %v2469
    %v2471 = vpop.f32.mrb[0].mxu0
    %v2472 = vadd.f32 %v2279, %v2471
    %2473 = vmatprep.mubr.bf16.mxu0 %v2313
    %2474 = vmatmul.mubr.bf16.gmra.mrb[0].mxu0 %v2312
    %v2475 = vpop.f32.mrb[0].mxu0
    %v2476 = vadd.f32 %v2283, %v2475
    %v2477 = vpop.f32.mrb[0].mxu0
    %v2478 = vadd.f32 %v2283, %v2477
    %v2479 = vpop.f32.mrb[0].mxu0
    %v2480 = vadd.f32 %v2287, %v2479
    %v2481 = vpop.f32.mrb[0].mxu0
    %v2482 = vadd.f32 %v2287, %v2481
    %2483 = vdwg.mxu0
    %2484 = vmatprep.subr.bf16.mxu0 %v2268
    %2485 = vmatpush1.bf16.msra.mxu0 %v2267
    %2486 = vmatprep.subr.bf16.mxu0 %v2272
    %2487 = vmatpush1.bf16.msra.mxu0 %v2271
    %2488 = vmatprep.subr.bf16.mxu0 0
    %2489 = vmatpush1.bf16.msra.mxu0 0
    %2490 = vmatprep.subr.bf16.mxu0 0
    %2491 = vmatpush1.bf16.msra.mxu0 0
    %2492 = vmatprep.subr.bf16.mxu0 0
    %2493 = vmatpush1.bf16.msra.mxu0 0
    %2494 = vmatprep.subr.bf16.mxu0 0
    %2495 = vmatpush1.bf16.msra.mxu0 0
    %2496 = vmatprep.subr.bf16.mxu0 0
    %2497 = vmatpush1.bf16.msra.mxu0 0
    %2498 = vmatprep.subr.bf16.mxu0 0
    %2499 = vmatpush1.bf16.msra.mxu0 0
    %2500 = vmatprep.subr.bf16.mxu0 0
    %2501 = vmatpush1.bf16.msra.mxu0 0
    %2502 = vmatprep.subr.bf16.mxu0 0
    %2503 = vmatpush1.bf16.msra.mxu0 0
    %2504 = vmatprep.subr.bf16.mxu0 0
    %2505 = vmatpush1.bf16.msra.mxu0 0
    %2506 = vmatprep.subr.bf16.mxu0 0
    %2507 = vmatpush1.bf16.msra.mxu0 0
    %2508 = vmatprep.subr.bf16.mxu0 0
    %2509 = vmatpush1.bf16.msra.mxu0 0
    %2510 = vmatprep.subr.bf16.mxu0 0
    %2511 = vmatpush1.bf16.msra.mxu0 0
    %2512 = vmatprep.subr.bf16.mxu0 0
    %2513 = vmatpush1.bf16.msra.mxu0 0
    %2514 = vmatprep.subr.bf16.mxu0 0
    %2515 = vmatpush1.bf16.msra.mxu0 0
    %2516 = vmatprep.mubr.bf16.mxu0 0
    %2517 = vmatmul.mubr.bf16.gmra.mrb[0].mxu0 %v2320
    %v2518 = vpop.f32.mrb[0].mxu0
    %v2519 = vadd.f32 %v2466, %v2518
    %v2520 = vpop.f32.mrb[0].mxu0
    %v2521 = vadd.f32 %v2468, %v2520
    %v2522 = vpop.f32.mrb[0].mxu0
    %v2523 = vadd.f32 %v2470, %v2522
    %v2524 = vpop.f32.mrb[0].mxu0
    %v2525 = vadd.f32 %v2472, %v2524
    %2526 = vmatprep.mubr.bf16.mxu0 0
    %2527 = vmatmul.mubr.bf16.gmra.mrb[0].mxu0 %v2323
    %v2528 = vpop.f32.mrb[0].mxu0
    %v2529 = vadd.f32 %v2476, %v2528
    %v2530 = vpop.f32.mrb[0].mxu0
    %v2531 = vadd.f32 %v2478, %v2530
    %v2532 = vpop.f32.mrb[0].mxu0
    %v2533 = vadd.f32 %v2480, %v2532
    %v2534 = vpop.f32.mrb[0].mxu0
    %v2535 = vadd.f32 %v2482, %v2534
    %2536 = vdwg.mxu0
    %2537 = vmatprep.subr.mxu0 0.0
    %2538 = vmatpush1.msra.mxu0 %v42
    %2539 = vmatprep.subr.mxu0 0.0
    %2540 = vmatpush1.msra.mxu0 %v43
    %2541 = vmatprep.subr.mxu0 0.0
    %2542 = vmatpush1.msra.mxu0 %v44
    %2543 = vmatprep.subr.mxu0 0.0
    %2544 = vmatpush1.msra.mxu0 %v45
    %2545 = vmatprep.subr.mxu0 0.0
    %2546 = vmatpush1.msra.mxu0 %v46
    %2547 = vmatprep.subr.mxu0 0.0
    %2548 = vmatpush1.msra.mxu0 %v47
    %2549 = vmatprep.subr.mxu0 0.0
    %2550 = vmatpush1.msra.mxu0 %v48
    %2551 = vmatprep.subr.mxu0 0.0
    %2552 = vmatpush1.msra.mxu0 %v49
    %2553 = vmatprep.subr.mxu0 0.0
    %2554 = vmatpush1.msra.mxu0 %v50
    %2555 = vmatprep.subr.mxu0 0.0
    %2556 = vmatpush1.msra.mxu0 %v51
    %2557 = vmatprep.subr.mxu0 0.0
    %2558 = vmatpush1.msra.mxu0 %v52
    %2559 = vmatprep.subr.mxu0 0.0
    %2560 = vmatpush1.msra.mxu0 %v53
    %2561 = vmatprep.subr.mxu0 0.0
    %2562 = vmatpush1.msra.mxu0 %v54
    %2563 = vmatprep.subr.mxu0 0.0
    %2564 = vmatpush1.msra.mxu0 %v55
    %2565 = vmatprep.subr.mxu0 0.0
    %2566 = vmatpush1.msra.mxu0 %v56
    %2567 = vmatprep.subr.mxu0 0.0
    %2568 = vmatpush1.msra.mxu0 %v57
    %2569 = vmatprep.subr.mxu0 0.0
    %2570 = vmatpush1.msra.mxu0 %v58
    %2571 = vmatprep.subr.mxu0 0.0
    %2572 = vmatpush1.msra.mxu0 %v59
    %2573 = vmatprep.subr.mxu0 0.0
    %2574 = vmatpush1.msra.mxu0 %v60
    %2575 = vmatprep.subr.mxu0 0.0
    %2576 = vmatpush1.msra.mxu0 %v61
    %2577 = vmatprep.subr.mxu0 0.0
    %2578 = vmatpush1.msra.mxu0 %v62
    %2579 = vmatprep.subr.mxu0 0.0
    %2580 = vmatpush1.msra.mxu0 %v63
    %2581 = vmatprep.subr.mxu0 0.0
    %2582 = vmatpush1.msra.mxu0 %v64
    %2583 = vmatprep.subr.mxu0 0.0
    %2584 = vmatpush1.msra.mxu0 %v65
    %2585 = vmatprep.subr.mxu0 0.0
    %2586 = vmatpush1.msra.mxu0 %v66
    %2587 = vmatprep.subr.mxu0 0.0
    %2588 = vmatpush1.msra.mxu0 %v67
    %2589 = vmatprep.subr.mxu0 0.0
    %2590 = vmatpush1.msra.mxu0 %v68
    %2591 = vmatprep.subr.mxu0 0.0
    %2592 = vmatpush1.msra.mxu0 %v69
    %2593 = vmatprep.subr.mxu0 0.0
    %2594 = vmatpush1.msra.mxu0 %v70
    %2595 = vmatprep.subr.mxu0 0.0
    %2596 = vmatpush1.msra.mxu0 %v71
    %2597 = vmatprep.subr.mxu0 0.0
    %2598 = vmatpush1.msra.mxu0 %v72
    %2599 = vmatprep.subr.mxu0 0.0
    %2600 = vmatpush1.msra.mxu0 %v73
    %2601 = vmatprep.mubr.f32.mxu0 %v2415
    %2602 = vmatmul.mubr.f32.gmra.mrb[0].mxu0 %v2413
    %v2603 = vpop.f32.mrb[0].mxu0
    %v2604 = vadd.f32 0.0, %v2603
    %v2605 = vpop.f32.mrb[0].mxu0
    %2606 = vmatprep.mubr.f32.mxu0 %v2419
    %2607 = vmatmul.mubr.f32.gmra.mrb[0].mxu0 %v2417
    %v2608 = vpop.f32.mrb[0].mxu0
    %v2609 = vadd.f32 0.0, %v2608
    %v2610 = vpop.f32.mrb[0].mxu0
    %2611 = vmatprep.mubr.f32.mxu0 %v2425
    %2612 = vmatmul.mubr.f32.gmra.mrb[0].mxu0 %v2423
    %v2613 = vpop.f32.mrb[0].mxu0
    %v2614 = vadd.f32 0.0, %v2613
    %v2615 = vpop.f32.mrb[0].mxu0
    %2616 = vmatprep.mubr.f32.mxu0 %v2429
    %2617 = vmatmul.mubr.f32.gmra.mrb[0].mxu0 %v2427
    %v2618 = vpop.f32.mrb[0].mxu0
    %v2619 = vadd.f32 0.0, %v2618
    %v2620 = vpop.f32.mrb[0].mxu0
    %2621 = vdwg.mxu0
    %2622 = vmatprep.subr.mxu0 0.0
    %2623 = vmatpush1.msra.mxu0 %v74
    %2624 = vmatprep.subr.mxu0 0.0
    %2625 = vmatpush1.msra.mxu0 %v75
    %2626 = vmatprep.subr.mxu0 0.0
    %2627 = vmatpush1.msra.mxu0 %v76
    %2628 = vmatprep.subr.mxu0 0.0
    %2629 = vmatpush1.msra.mxu0 %v77
    %2630 = vmatprep.subr.mxu0 0.0
    %2631 = vmatpush1.msra.mxu0 %v78
    %2632 = vmatprep.subr.mxu0 0.0
    %2633 = vmatpush1.msra.mxu0 %v79
    %2634 = vmatprep.subr.mxu0 0.0
    %2635 = vmatpush1.msra.mxu0 %v80
    %2636 = vmatprep.subr.mxu0 0.0
    %2637 = vmatpush1.msra.mxu0 %v81
    %2638 = vmatprep.subr.mxu0 0.0
    %2639 = vmatpush1.msra.mxu0 %v82
    %2640 = vmatprep.subr.mxu0 0.0
    %2641 = vmatpush1.msra.mxu0 %v83
    %2642 = vmatprep.subr.mxu0 0.0
    %2643 = vmatpush1.msra.mxu0 %v84
    %2644 = vmatprep.subr.mxu0 0.0
    %2645 = vmatpush1.msra.mxu0 %v85
    %2646 = vmatprep.subr.mxu0 0.0
    %2647 = vmatpush1.msra.mxu0 %v86
    %2648 = vmatprep.subr.mxu0 0.0
    %2649 = vmatpush1.msra.mxu0 %v87
    %2650 = vmatprep.subr.mxu0 0.0
    %2651 = vmatpush1.msra.mxu0 %v88
    %2652 = vmatprep.subr.mxu0 0.0
    %2653 = vmatpush1.msra.mxu0 %v89
    %2654 = vmatprep.subr.mxu0 0.0
    %2655 = vmatpush1.msra.mxu0 %v90
    %2656 = vmatprep.subr.mxu0 0.0
    %2657 = vmatpush1.msra.mxu0 %v91
    %2658 = vmatprep.subr.mxu0 0.0
    %2659 = vmatpush1.msra.mxu0 %v92
    %2660 = vmatprep.subr.mxu0 0.0
    %2661 = vmatpush1.msra.mxu0 %v93
    %2662 = vmatprep.subr.mxu0 0.0
    %2663 = vmatpush1.msra.mxu0 %v94
    %2664 = vmatprep.subr.mxu0 0.0
    %2665 = vmatpush1.msra.mxu0 %v95
    %2666 = vmatprep.subr.mxu0 0.0
    %2667 = vmatpush1.msra.mxu0 %v96
    %2668 = vmatprep.subr.mxu0 0.0
    %2669 = vmatpush1.msra.mxu0 %v97
    %2670 = vmatprep.subr.mxu0 0.0
    %2671 = vmatpush1.msra.mxu0 %v98
    %2672 = vmatprep.subr.mxu0 0.0
    %2673 = vmatpush1.msra.mxu0 %v99
    %2674 = vmatprep.subr.mxu0 0.0
    %2675 = vmatpush1.msra.mxu0 %v100
    %2676 = vmatprep.subr.mxu0 0.0
    %2677 = vmatpush1.msra.mxu0 %v101
    %2678 = vmatprep.subr.mxu0 0.0
    %2679 = vmatpush1.msra.mxu0 %v102
    %2680 = vmatprep.subr.mxu0 0.0
    %2681 = vmatpush1.msra.mxu0 %v103
    %2682 = vmatprep.subr.mxu0 0.0
    %2683 = vmatpush1.msra.mxu0 %v104
    %2684 = vmatprep.subr.mxu0 0.0
    %2685 = vmatpush1.msra.mxu0 %v105
    %2686 = vmatprep.mubr.f32.mxu0 %v2521
    %2687 = vmatmul.mubr.f32.gmra.mrb[0].mxu0 %v2519
    %v2688 = vpop.f32.mrb[0].mxu0
    %v2689 = vadd.f32 %v2604, %v2688
    %v2690 = vpop.f32.mrb[0].mxu0
    %2691 = vmatprep.mubr.f32.mxu0 %v2525
    %2692 = vmatmul.mubr.f32.gmra.mrb[0].mxu0 %v2523
    %v2693 = vpop.f32.mrb[0].mxu0
    %v2694 = vadd.f32 %v2609, %v2693
    %v2695 = vpop.f32.mrb[0].mxu0
    %2696 = vmatprep.mubr.f32.mxu0 %v2531
    %2697 = vmatmul.mubr.f32.gmra.mrb[0].mxu0 %v2529
    %v2698 = vpop.f32.mrb[0].mxu0
    %v2699 = vadd.f32 %v2614, %v2698
    %v2700 = vpop.f32.mrb[0].mxu0
    %2701 = vmatprep.mubr.f32.mxu0 %v2535
    %2702 = vmatmul.mubr.f32.gmra.mrb[0].mxu0 %v2533
    %v2703 = vpop.f32.mrb[0].mxu0
    %v2704 = vadd.f32 %v2619, %v2703
    %v2705 = vpop.f32.mrb[0].mxu0
    %2706 = vdwg.mxu0
    %v2707 = vmul.f32 %v2413, %v2413
    %v2708 = vmul.f32 %v2415, %v2415
    %v2709 = vmul.f32 %v2519, %v2519
    %v2710 = vmul.f32 %v2521, %v2521
    %v2711 = vmul.f32 %v2417, %v2417
    %v2712 = vmul.f32 %v2419, %v2419
    %v2713 = vmul.f32 %v2523, %v2523
    %v2714 = vmul.f32 %v2525, %v2525
    %v2715 = vmul.f32 %v2423, %v2423
    %v2716 = vmul.f32 %v2425, %v2425
    %v2717 = vmul.f32 %v2529, %v2529
    %v2718 = vmul.f32 %v2531, %v2531
    %v2719 = vmul.f32 %v2427, %v2427
    %v2720 = vmul.f32 %v2429, %v2429
    %v2721 = vmul.f32 %v2533, %v2533
    %v2722 = vmul.f32 %v2535, %v2535
    %2723 = vmatprep.subr.mxu0 0.0
    %2724 = vmatpush1.msra.mxu0 %v42
    %2725 = vmatprep.subr.mxu0 0.0
    %2726 = vmatpush1.msra.mxu0 %v43
    %2727 = vmatprep.subr.mxu0 0.0
    %2728 = vmatpush1.msra.mxu0 %v44
    %2729 = vmatprep.subr.mxu0 0.0
    %2730 = vmatpush1.msra.mxu0 %v45
    %2731 = vmatprep.subr.mxu0 0.0
    %2732 = vmatpush1.msra.mxu0 %v46
    %2733 = vmatprep.subr.mxu0 0.0
    %2734 = vmatpush1.msra.mxu0 %v47
    %2735 = vmatprep.subr.mxu0 0.0
    %2736 = vmatpush1.msra.mxu0 %v48
    %2737 = vmatprep.subr.mxu0 0.0
    %2738 = vmatpush1.msra.mxu0 %v49
    %2739 = vmatprep.subr.mxu0 0.0
    %2740 = vmatpush1.msra.mxu0 %v50
    %2741 = vmatprep.subr.mxu0 0.0
    %2742 = vmatpush1.msra.mxu0 %v51
    %2743 = vmatprep.subr.mxu0 0.0
    %2744 = vmatpush1.msra.mxu0 %v52
    %2745 = vmatprep.subr.mxu0 0.0
    %2746 = vmatpush1.msra.mxu0 %v53
    %2747 = vmatprep.subr.mxu0 0.0
    %2748 = vmatpush1.msra.mxu0 %v54
    %2749 = vmatprep.subr.mxu0 0.0
    %2750 = vmatpush1.msra.mxu0 %v55
    %2751 = vmatprep.subr.mxu0 0.0
    %2752 = vmatpush1.msra.mxu0 %v56
    %2753 = vmatprep.subr.mxu0 0.0
    %2754 = vmatpush1.msra.mxu0 %v57
    %2755 = vmatprep.subr.mxu0 0.0
    %2756 = vmatpush1.msra.mxu0 %v58
    %2757 = vmatprep.subr.mxu0 0.0
    %2758 = vmatpush1.msra.mxu0 %v59
    %2759 = vmatprep.subr.mxu0 0.0
    %2760 = vmatpush1.msra.mxu0 %v60
    %2761 = vmatprep.subr.mxu0 0.0
    %2762 = vmatpush1.msra.mxu0 %v61
    %2763 = vmatprep.subr.mxu0 0.0
    %2764 = vmatpush1.msra.mxu0 %v62
    %2765 = vmatprep.subr.mxu0 0.0
    %2766 = vmatpush1.msra.mxu0 %v63
    %2767 = vmatprep.subr.mxu0 0.0
    %2768 = vmatpush1.msra.mxu0 %v64
    %2769 = vmatprep.subr.mxu0 0.0
    %2770 = vmatpush1.msra.mxu0 %v65
    %2771 = vmatprep.subr.mxu0 0.0
    %2772 = vmatpush1.msra.mxu0 %v66
    %2773 = vmatprep.subr.mxu0 0.0
    %2774 = vmatpush1.msra.mxu0 %v67
    %2775 = vmatprep.subr.mxu0 0.0
    %2776 = vmatpush1.msra.mxu0 %v68
    %2777 = vmatprep.subr.mxu0 0.0
    %2778 = vmatpush1.msra.mxu0 %v69
    %2779 = vmatprep.subr.mxu0 0.0
    %2780 = vmatpush1.msra.mxu0 %v70
    %2781 = vmatprep.subr.mxu0 0.0
    %2782 = vmatpush1.msra.mxu0 %v71
    %2783 = vmatprep.subr.mxu0 0.0
    %2784 = vmatpush1.msra.mxu0 %v72
    %2785 = vmatprep.subr.mxu0 0.0
    %2786 = vmatpush1.msra.mxu0 %v73
    %2787 = vmatprep.mubr.f32.mxu0 %v2708
    %2788 = vmatmul.mubr.f32.gmra.mrb[0].mxu0 %v2707
    %v2789 = vpop.f32.mrb[0].mxu0
    %v2790 = vadd.f32 0.0, %v2789
    %v2791 = vpop.f32.mrb[0].mxu0
    %2792 = vmatprep.mubr.f32.mxu0 %v2712
    %2793 = vmatmul.mubr.f32.gmra.mrb[0].mxu0 %v2711
    %v2794 = vpop.f32.mrb[0].mxu0
    %v2795 = vadd.f32 0.0, %v2794
    %v2796 = vpop.f32.mrb[0].mxu0
    %2797 = vmatprep.mubr.f32.mxu0 %v2716
    %2798 = vmatmul.mubr.f32.gmra.mrb[0].mxu0 %v2715
    %v2799 = vpop.f32.mrb[0].mxu0
    %v2800 = vadd.f32 0.0, %v2799
    %v2801 = vpop.f32.mrb[0].mxu0
    %2802 = vmatprep.mubr.f32.mxu0 %v2720
    %2803 = vmatmul.mubr.f32.gmra.mrb[0].mxu0 %v2719
    %v2804 = vpop.f32.mrb[0].mxu0
    %v2805 = vadd.f32 0.0, %v2804
    %v2806 = vpop.f32.mrb[0].mxu0
    %2807 = vdwg.mxu0
    %2808 = vmatprep.subr.mxu0 0.0
    %2809 = vmatpush1.msra.mxu0 %v74
    %2810 = vmatprep.subr.mxu0 0.0
    %2811 = vmatpush1.msra.mxu0 %v75
    %2812 = vmatprep.subr.mxu0 0.0
    %2813 = vmatpush1.msra.mxu0 %v76
    %2814 = vmatprep.subr.mxu0 0.0
    %2815 = vmatpush1.msra.mxu0 %v77
    %2816 = vmatprep.subr.mxu0 0.0
    %2817 = vmatpush1.msra.mxu0 %v78
    %2818 = vmatprep.subr.mxu0 0.0
    %2819 = vmatpush1.msra.mxu0 %v79
    %2820 = vmatprep.subr.mxu0 0.0
    %2821 = vmatpush1.msra.mxu0 %v80
    %2822 = vmatprep.subr.mxu0 0.0
    %2823 = vmatpush1.msra.mxu0 %v81
    %2824 = vmatprep.subr.mxu0 0.0
    %2825 = vmatpush1.msra.mxu0 %v82
    %2826 = vmatprep.subr.mxu0 0.0
    %2827 = vmatpush1.msra.mxu0 %v83
    %2828 = vmatprep.subr.mxu0 0.0
    %2829 = vmatpush1.msra.mxu0 %v84
    %2830 = vmatprep.subr.mxu0 0.0
    %2831 = vmatpush1.msra.mxu0 %v85
    %2832 = vmatprep.subr.mxu0 0.0
    %2833 = vmatpush1.msra.mxu0 %v86
    %2834 = vmatprep.subr.mxu0 0.0
    %2835 = vmatpush1.msra.mxu0 %v87
    %2836 = vmatprep.subr.mxu0 0.0
    %2837 = vmatpush1.msra.mxu0 %v88
    %2838 = vmatprep.subr.mxu0 0.0
    %2839 = vmatpush1.msra.mxu0 %v89
    %2840 = vmatprep.subr.mxu0 0.0
    %2841 = vmatpush1.msra.mxu0 %v90
    %2842 = vmatprep.subr.mxu0 0.0
    %2843 = vmatpush1.msra.mxu0 %v91
    %2844 = vmatprep.subr.mxu0 0.0
    %2845 = vmatpush1.msra.mxu0 %v92
    %2846 = vmatprep.subr.mxu0 0.0
    %2847 = vmatpush1.msra.mxu0 %v93
    %2848 = vmatprep.subr.mxu0 0.0
    %2849 = vmatpush1.msra.mxu0 %v94
    %2850 = vmatprep.subr.mxu0 0.0
    %2851 = vmatpush1.msra.mxu0 %v95
    %2852 = vmatprep.subr.mxu0 0.0
    %2853 = vmatpush1.msra.mxu0 %v96
    %2854 = vmatprep.subr.mxu0 0.0
    %2855 = vmatpush1.msra.mxu0 %v97
    %2856 = vmatprep.subr.mxu0 0.0
    %2857 = vmatpush1.msra.mxu0 %v98
    %2858 = vmatprep.subr.mxu0 0.0
    %2859 = vmatpush1.msra.mxu0 %v99
    %2860 = vmatprep.subr.mxu0 0.0
    %2861 = vmatpush1.msra.mxu0 %v100
    %2862 = vmatprep.subr.mxu0 0.0
    %2863 = vmatpush1.msra.mxu0 %v101
    %2864 = vmatprep.subr.mxu0 0.0
    %2865 = vmatpush1.msra.mxu0 %v102
    %2866 = vmatprep.subr.mxu0 0.0
    %2867 = vmatpush1.msra.mxu0 %v103
    %2868 = vmatprep.subr.mxu0 0.0
    %2869 = vmatpush1.msra.mxu0 %v104
    %2870 = vmatprep.subr.mxu0 0.0
    %2871 = vmatpush1.msra.mxu0 %v105
    %2872 = vmatprep.mubr.f32.mxu0 %v2710
    %2873 = vmatmul.mubr.f32.gmra.mrb[0].mxu0 %v2709
    %v2874 = vpop.f32.mrb[0].mxu0
    %v2875 = vadd.f32 %v2790, %v2874
    %v2876 = vpop.f32.mrb[0].mxu0
    %2877 = vmatprep.mubr.f32.mxu0 %v2714
    %2878 = vmatmul.mubr.f32.gmra.mrb[0].mxu0 %v2713
    %v2879 = vpop.f32.mrb[0].mxu0
    %v2880 = vadd.f32 %v2795, %v2879
    %v2881 = vpop.f32.mrb[0].mxu0
    %2882 = vmatprep.mubr.f32.mxu0 %v2718
    %2883 = vmatmul.mubr.f32.gmra.mrb[0].mxu0 %v2717
    %v2884 = vpop.f32.mrb[0].mxu0
    %v2885 = vadd.f32 %v2800, %v2884
    %v2886 = vpop.f32.mrb[0].mxu0
    %2887 = vmatprep.mubr.f32.mxu0 %v2722
    %2888 = vmatmul.mubr.f32.gmra.mrb[0].mxu0 %v2721
    %v2889 = vpop.f32.mrb[0].mxu0
    %v2890 = vadd.f32 %v2805, %v2889
    %v2891 = vpop.f32.mrb[0].mxu0
    %2892 = vdwg.mxu0
    %2893 = vmatprep.subr.mxu0 0.0
    %2894 = vmatpush1.msra.mxu0 %v2689
    %2895 = vmatprep.subr.mxu0 0.0
    %2896 = vmatpush1.msra.mxu0 %v2694
    %2897 = vmatprep.subr.mxu0 0.0
    %2898 = vmatpush1.msra.mxu0 %v2699
    %2899 = vmatprep.subr.mxu0 0.0
    %2900 = vmatpush1.msra.mxu0 %v2704
    %2901 = vmatprep.subr.mxu0 0.0
    %2902 = vmatpush1.msra.mxu0 0.0
    %2903 = vmatprep.subr.mxu0 0.0
    %2904 = vmatpush1.msra.mxu0 0.0
    %2905 = vmatprep.subr.mxu0 0.0
    %2906 = vmatpush1.msra.mxu0 0.0
    %2907 = vmatprep.subr.mxu0 0.0
    %2908 = vmatpush1.msra.mxu0 0.0
    %2909 = vmatprep.subr.mxu0 0.0
    %2910 = vmatpush1.msra.mxu0 0.0
    %2911 = vmatprep.subr.mxu0 0.0
    %2912 = vmatpush1.msra.mxu0 0.0
    %2913 = vmatprep.subr.mxu0 0.0
    %2914 = vmatpush1.msra.mxu0 0.0
    %2915 = vmatprep.subr.mxu0 0.0
    %2916 = vmatpush1.msra.mxu0 0.0
    %2917 = vmatprep.subr.mxu0 0.0
    %2918 = vmatpush1.msra.mxu0 0.0
    %2919 = vmatprep.subr.mxu0 0.0
    %2920 = vmatpush1.msra.mxu0 0.0
    %2921 = vmatprep.subr.mxu0 0.0
    %2922 = vmatpush1.msra.mxu0 0.0
    %2923 = vmatprep.subr.mxu0 0.0
    %2924 = vmatpush1.msra.mxu0 0.0
    %2925 = vmatprep.subr.mxu0 0.0
    %2926 = vmatpush1.msra.mxu0 0.0
    %2927 = vmatprep.subr.mxu0 0.0
    %2928 = vmatpush1.msra.mxu0 0.0
    %2929 = vmatprep.subr.mxu0 0.0
    %2930 = vmatpush1.msra.mxu0 0.0
    %2931 = vmatprep.subr.mxu0 0.0
    %2932 = vmatpush1.msra.mxu0 0.0
    %2933 = vmatprep.subr.mxu0 0.0
    %2934 = vmatpush1.msra.mxu0 0.0
    %2935 = vmatprep.subr.mxu0 0.0
    %2936 = vmatpush1.msra.mxu0 0.0
    %2937 = vmatprep.subr.mxu0 0.0
    %2938 = vmatpush1.msra.mxu0 0.0
    %2939 = vmatprep.subr.mxu0 0.0
    %2940 = vmatpush1.msra.mxu0 0.0
    %2941 = vmatprep.subr.mxu0 0.0
    %2942 = vmatpush1.msra.mxu0 0.0
    %2943 = vmatprep.subr.mxu0 0.0
    %2944 = vmatpush1.msra.mxu0 0.0
    %2945 = vmatprep.subr.mxu0 0.0
    %2946 = vmatpush1.msra.mxu0 0.0
    %2947 = vmatprep.subr.mxu0 0.0
    %2948 = vmatpush1.msra.mxu0 0.0
    %2949 = vmatprep.subr.mxu0 0.0
    %2950 = vmatpush1.msra.mxu0 0.0
    %2951 = vmatprep.subr.mxu0 0.0
    %2952 = vmatpush1.msra.mxu0 0.0
    %2953 = vmatprep.subr.mxu0 0.0
    %2954 = vmatpush1.msra.mxu0 0.0
    %2955 = vmatprep.subr.mxu0 0.0
    %2956 = vmatpush1.msra.mxu0 0.0
    %2957 = vmatprep.mubr.f32.mxu0 0.0
    %2958 = vmatmul.mubr.f32.gmra.mrb[0].mxu0 %v985
    %v2959 = vpop.f32.mrb[0].mxu0
    %v2960 = vadd.f32 0.0, %v2959
    %v2961 = vpop.f32.mrb[0].mxu0
    %2962 = vmatprep.mubr.f32.mxu0 0.0
    %2963 = vmatmul.mubr.f32.gmra.mrb[0].mxu0 %v988
    %v2964 = vpop.f32.mrb[0].mxu0
    %v2965 = vadd.f32 0.0, %v2964
    %v2966 = vpop.f32.mrb[0].mxu0
    %2967 = vmatprep.mubr.f32.mxu0 0.0
    %2968 = vmatmul.mubr.f32.gmra.mrb[0].mxu0 %v991
    %v2969 = vpop.f32.mrb[0].mxu0
    %v2970 = vadd.f32 0.0, %v2969
    %v2971 = vpop.f32.mrb[0].mxu0
    %2972 = vmatprep.mubr.f32.mxu0 0.0
    %2973 = vmatmul.mubr.f32.gmra.mrb[0].mxu0 %v994
    %v2974 = vpop.f32.mrb[0].mxu0
    %v2975 = vadd.f32 0.0, %v2974
    %v2976 = vpop.f32.mrb[0].mxu0
    %2977 = vdwg.mxu0
    %2978 = vmatprep.subr.mxu0 0.0
    %2979 = vmatpush1.msra.mxu0 %v2875
    %2980 = vmatprep.subr.mxu0 0.0
    %2981 = vmatpush1.msra.mxu0 %v2880
    %2982 = vmatprep.subr.mxu0 0.0
    %2983 = vmatpush1.msra.mxu0 %v2885
    %2984 = vmatprep.subr.mxu0 0.0
    %2985 = vmatpush1.msra.mxu0 %v2890
    %2986 = vmatprep.subr.mxu0 0.0
    %2987 = vmatpush1.msra.mxu0 0.0
    %2988 = vmatprep.subr.mxu0 0.0
    %2989 = vmatpush1.msra.mxu0 0.0
    %2990 = vmatprep.subr.mxu0 0.0
    %2991 = vmatpush1.msra.mxu0 0.0
    %2992 = vmatprep.subr.mxu0 0.0
    %2993 = vmatpush1.msra.mxu0 0.0
    %2994 = vmatprep.subr.mxu0 0.0
    %2995 = vmatpush1.msra.mxu0 0.0
    %2996 = vmatprep.subr.mxu0 0.0
    %2997 = vmatpush1.msra.mxu0 0.0
    %2998 = vmatprep.subr.mxu0 0.0
    %2999 = vmatpush1.msra.mxu0 0.0
    %3000 = vmatprep.subr.mxu0 0.0
    %3001 = vmatpush1.msra.mxu0 0.0
    %3002 = vmatprep.subr.mxu0 0.0
    %3003 = vmatpush1.msra.mxu0 0.0
    %3004 = vmatprep.subr.mxu0 0.0
    %3005 = vmatpush1.msra.mxu0 0.0
    %3006 = vmatprep.subr.mxu0 0.0
    %3007 = vmatpush1.msra.mxu0 0.0
    %3008 = vmatprep.subr.mxu0 0.0
    %3009 = vmatpush1.msra.mxu0 0.0
    %3010 = vmatprep.subr.mxu0 0.0
    %3011 = vmatpush1.msra.mxu0 0.0
    %3012 = vmatprep.subr.mxu0 0.0
    %3013 = vmatpush1.msra.mxu0 0.0
    %3014 = vmatprep.subr.mxu0 0.0
    %3015 = vmatpush1.msra.mxu0 0.0
    %3016 = vmatprep.subr.mxu0 0.0
    %3017 = vmatpush1.msra.mxu0 0.0
    %3018 = vmatprep.subr.mxu0 0.0
    %3019 = vmatpush1.msra.mxu0 0.0
    %3020 = vmatprep.subr.mxu0 0.0
    %3021 = vmatpush1.msra.mxu0 0.0
    %3022 = vmatprep.subr.mxu0 0.0
    %3023 = vmatpush1.msra.mxu0 0.0
    %3024 = vmatprep.subr.mxu0 0.0
    %3025 = vmatpush1.msra.mxu0 0.0
    %3026 = vmatprep.subr.mxu0 0.0
    %3027 = vmatpush1.msra.mxu0 0.0
    %3028 = vmatprep.subr.mxu0 0.0
    %3029 = vmatpush1.msra.mxu0 0.0
    %3030 = vmatprep.subr.mxu0 0.0
    %3031 = vmatpush1.msra.mxu0 0.0
    %3032 = vmatprep.subr.mxu0 0.0
    %3033 = vmatpush1.msra.mxu0 0.0
    %3034 = vmatprep.subr.mxu0 0.0
    %3035 = vmatpush1.msra.mxu0 0.0
    %3036 = vmatprep.subr.mxu0 0.0
    %3037 = vmatpush1.msra.mxu0 0.0
    %3038 = vmatprep.subr.mxu0 0.0
    %3039 = vmatpush1.msra.mxu0 0.0
    %3040 = vmatprep.subr.mxu0 0.0
    %3041 = vmatpush1.msra.mxu0 0.0
    %3042 = vmatprep.mubr.f32.mxu0 0.0
    %3043 = vmatmul.mubr.f32.gmra.mrb[0].mxu0 %v985
    %v3044 = vpop.f32.mrb[0].mxu0
    %v3045 = vadd.f32 0.0, %v3044
    %v3046 = vpop.f32.mrb[0].mxu0
    %3047 = vmatprep.mubr.f32.mxu0 0.0
    %3048 = vmatmul.mubr.f32.gmra.mrb[0].mxu0 %v988
    %v3049 = vpop.f32.mrb[0].mxu0
    %v3050 = vadd.f32 0.0, %v3049
    %v3051 = vpop.f32.mrb[0].mxu0
    %3052 = vmatprep.mubr.f32.mxu0 0.0
    %3053 = vmatmul.mubr.f32.gmra.mrb[0].mxu0 %v991
    %v3054 = vpop.f32.mrb[0].mxu0
    %v3055 = vadd.f32 0.0, %v3054
    %v3056 = vpop.f32.mrb[0].mxu0
    %3057 = vmatprep.mubr.f32.mxu0 0.0
    %3058 = vmatmul.mubr.f32.gmra.mrb[0].mxu0 %v994
    %v3059 = vpop.f32.mrb[0].mxu0
    %v3060 = vadd.f32 0.0, %v3059
    %v3061 = vpop.f32.mrb[0].mxu0
    %3062 = vdwg.mxu0
    %v3063 = vmul.f32 %v2960, %v2960
    %v3064 = vmul.f32 %v2965, %v2965
    %v3065 = vmul.f32 %v2970, %v2970
    %v3066 = vmul.f32 %v2975, %v2975
    %v3067 = vsub.f32 %v3045, %v3063
    %v3068 = vsub.f32 %v3050, %v3064
    %v3069 = vsub.f32 %v3055, %v3065
    %v3070 = vsub.f32 %v3060, %v3066
    %v3071 = vadd.f32 %v3067, 1e-05
    %v3072 = vadd.f32 %v3068, 1e-05
    %v3073 = vadd.f32 %v3069, 1e-05
    %v3074 = vadd.f32 %v3070, 1e-05
    %v3075 = vrsqrt.pop %v3071
    %v3076 = vrsqrt.pop %v3072
    %v3077 = vrsqrt.pop %v3073
    %v3078 = vrsqrt.pop %v3074
    %3079 = vset.pattern.permute.xlu0 4
    %3080 = vperm.xlu0 %3079, %v111
    %v3081 = vpop.permute.xlu0 %3080
    %3083 = vset.pattern.permute.xlu0 4
    %3084 = vperm.xlu0 %3083, %v112
    %v3085 = vpop.permute.xlu0 %3084
    %3087 = vset.pattern.permute.xlu0 4
    %3088 = vperm.xlu0 %3087, %v113
    %v3089 = vpop.permute.xlu0 %3088
    %3091 = vset.pattern.permute.xlu0 4
    %3092 = vperm.xlu0 %3091, %v114
    %v3093 = vpop.permute.xlu0 %3092
    %v3095 = vmul.f32 %v3075, %v3081
    %v3096 = vmul.f32 %v3076, %v3085
    %v3097 = vmul.f32 %v3077, %v3089
    %v3098 = vmul.f32 %v3078, %v3093
    %v3099 = vmul.f32 %v2960, %v3095
    %v3100 = vmul.f32 %v2965, %v3096
    %v3101 = vmul.f32 %v2970, %v3097
    %v3102 = vmul.f32 %v2975, %v3098
    %3103 = vset.pattern.permute.xlu0 5
    %3104 = vperm.xlu0 %3103, %v111
    %v3105 = vpop.permute.xlu0 %3104
    %3107 = vset.pattern.permute.xlu0 5
    %3108 = vperm.xlu0 %3107, %v112
    %v3109 = vpop.permute.xlu0 %3108
    %3111 = vset.pattern.permute.xlu0 5
    %3112 = vperm.xlu0 %3111, %v113
    %v3113 = vpop.permute.xlu0 %3112
    %3115 = vset.pattern.permute.xlu0 5
    %3116 = vperm.xlu0 %3115, %v114
    %v3117 = vpop.permute.xlu0 %3116
    %v3119 = vsub.f32 %v3105, %v3099
    %v3120 = vsub.f32 %v3109, %v3100
    %v3121 = vsub.f32 %v3113, %v3101
    %v3122 = vsub.f32 %v3117, %v3102
    %v3124 = vsel %vm1244, %v3095, 0
    %v3127 = vsel %vm1244, %v3096, 0
    %v3130 = vsel %vm1244, %v3097, 0
    %v3133 = vsel %vm1244, %v3098, 0
    %3135 = vmatprep.subr.mxu0 %v1259
    %3136 = vmatpush1.msra.mxu0 %v1257
    %3137 = vmatprep.subr.mxu0 0.0
    %3138 = vmatpush1.msra.mxu0 0.0
    %3139 = vmatprep.subr.mxu0 0.0
    %3140 = vmatpush1.msra.mxu0 0.0
    %3141 = vmatprep.subr.mxu0 0.0
    %3142 = vmatpush1.msra.mxu0 0.0
    %3143 = vmatprep.subr.mxu0 0.0
    %3144 = vmatpush1.msra.mxu0 0.0
    %3145 = vmatprep.subr.mxu0 0.0
    %3146 = vmatpush1.msra.mxu0 0.0
    %3147 = vmatprep.subr.mxu0 0.0
    %3148 = vmatpush1.msra.mxu0 0.0
    %3149 = vmatprep.subr.mxu0 0.0
    %3150 = vmatpush1.msra.mxu0 0.0
    %3151 = vmatprep.subr.mxu0 0.0
    %3152 = vmatpush1.msra.mxu0 0.0
    %3153 = vmatprep.subr.mxu0 0.0
    %3154 = vmatpush1.msra.mxu0 0.0
    %3155 = vmatprep.subr.mxu0 0.0
    %3156 = vmatpush1.msra.mxu0 0.0
    %3157 = vmatprep.subr.mxu0 0.0
    %3158 = vmatpush1.msra.mxu0 0.0
    %3159 = vmatprep.subr.mxu0 0.0
    %3160 = vmatpush1.msra.mxu0 0.0
    %3161 = vmatprep.subr.mxu0 0.0
    %3162 = vmatpush1.msra.mxu0 0.0
    %3163 = vmatprep.subr.mxu0 0.0
    %3164 = vmatpush1.msra.mxu0 0.0
    %3165 = vmatprep.subr.mxu0 0.0
    %3166 = vmatpush1.msra.mxu0 0.0
    %3167 = vmatprep.subr.mxu0 0.0
    %3168 = vmatpush1.msra.mxu0 0.0
    %3169 = vmatprep.subr.mxu0 0.0
    %3170 = vmatpush1.msra.mxu0 0.0
    %3171 = vmatprep.subr.mxu0 0.0
    %3172 = vmatpush1.msra.mxu0 0.0
    %3173 = vmatprep.subr.mxu0 0.0
    %3174 = vmatpush1.msra.mxu0 0.0
    %3175 = vmatprep.subr.mxu0 0.0
    %3176 = vmatpush1.msra.mxu0 0.0
    %3177 = vmatprep.subr.mxu0 0.0
    %3178 = vmatpush1.msra.mxu0 0.0
    %3179 = vmatprep.subr.mxu0 0.0
    %3180 = vmatpush1.msra.mxu0 0.0
    %3181 = vmatprep.subr.mxu0 0.0
    %3182 = vmatpush1.msra.mxu0 0.0
    %3183 = vmatprep.subr.mxu0 0.0
    %3184 = vmatpush1.msra.mxu0 0.0
    %3185 = vmatprep.subr.mxu0 0.0
    %3186 = vmatpush1.msra.mxu0 0.0
    %3187 = vmatprep.subr.mxu0 0.0
    %3188 = vmatpush1.msra.mxu0 0.0
    %3189 = vmatprep.subr.mxu0 0.0
    %3190 = vmatpush1.msra.mxu0 0.0
    %3191 = vmatprep.subr.mxu0 0.0
    %3192 = vmatpush1.msra.mxu0 0.0
    %3193 = vmatprep.subr.mxu0 0.0
    %3194 = vmatpush1.msra.mxu0 0.0
    %3195 = vmatprep.subr.mxu0 0.0
    %3196 = vmatpush1.msra.mxu0 0.0
    %3197 = vmatprep.subr.mxu0 0.0
    %3198 = vmatpush1.msra.mxu0 0.0
    %3199 = vmatprep.mubr.f32.mxu0 0.0
    %3200 = vmatmul.mubr.f32.gmra.mrb[0].mxu0 %v3124
    %v3201 = vpop.f32.mrb[0].mxu0
    %v3202 = vadd.f32 0.0, %v3201
    %v3203 = vpop.f32.mrb[0].mxu0
    %v3204 = vadd.f32 0.0, %v3203
    %3205 = vmatprep.mubr.f32.mxu0 0.0
    %3206 = vmatmul.mubr.f32.gmra.mrb[0].mxu0 %v3127
    %v3207 = vpop.f32.mrb[0].mxu0
    %v3208 = vadd.f32 0.0, %v3207
    %v3209 = vpop.f32.mrb[0].mxu0
    %v3210 = vadd.f32 0.0, %v3209
    %3211 = vmatprep.mubr.f32.mxu0 0.0
    %3212 = vmatmul.mubr.f32.gmra.mrb[0].mxu0 %v3130
    %v3213 = vpop.f32.mrb[0].mxu0
    %v3214 = vadd.f32 0.0, %v3213
    %v3215 = vpop.f32.mrb[0].mxu0
    %v3216 = vadd.f32 0.0, %v3215
    %3217 = vmatprep.mubr.f32.mxu0 0.0
    %3218 = vmatmul.mubr.f32.gmra.mrb[0].mxu0 %v3133
    %v3219 = vpop.f32.mrb[0].mxu0
    %v3220 = vadd.f32 0.0, %v3219
    %v3221 = vpop.f32.mrb[0].mxu0
    %v3222 = vadd.f32 0.0, %v3221
    %3223 = vdwg.mxu0
    %3224 = vmatprep.subr.mxu0 %v1263
    %3225 = vmatpush1.msra.mxu0 %v1261
    %3226 = vmatprep.subr.mxu0 0.0
    %3227 = vmatpush1.msra.mxu0 0.0
    %3228 = vmatprep.subr.mxu0 0.0
    %3229 = vmatpush1.msra.mxu0 0.0
    %3230 = vmatprep.subr.mxu0 0.0
    %3231 = vmatpush1.msra.mxu0 0.0
    %3232 = vmatprep.subr.mxu0 0.0
    %3233 = vmatpush1.msra.mxu0 0.0
    %3234 = vmatprep.subr.mxu0 0.0
    %3235 = vmatpush1.msra.mxu0 0.0
    %3236 = vmatprep.subr.mxu0 0.0
    %3237 = vmatpush1.msra.mxu0 0.0
    %3238 = vmatprep.subr.mxu0 0.0
    %3239 = vmatpush1.msra.mxu0 0.0
    %3240 = vmatprep.subr.mxu0 0.0
    %3241 = vmatpush1.msra.mxu0 0.0
    %3242 = vmatprep.subr.mxu0 0.0
    %3243 = vmatpush1.msra.mxu0 0.0
    %3244 = vmatprep.subr.mxu0 0.0
    %3245 = vmatpush1.msra.mxu0 0.0
    %3246 = vmatprep.subr.mxu0 0.0
    %3247 = vmatpush1.msra.mxu0 0.0
    %3248 = vmatprep.subr.mxu0 0.0
    %3249 = vmatpush1.msra.mxu0 0.0
    %3250 = vmatprep.subr.mxu0 0.0
    %3251 = vmatpush1.msra.mxu0 0.0
    %3252 = vmatprep.subr.mxu0 0.0
    %3253 = vmatpush1.msra.mxu0 0.0
    %3254 = vmatprep.subr.mxu0 0.0
    %3255 = vmatpush1.msra.mxu0 0.0
    %3256 = vmatprep.subr.mxu0 0.0
    %3257 = vmatpush1.msra.mxu0 0.0
    %3258 = vmatprep.subr.mxu0 0.0
    %3259 = vmatpush1.msra.mxu0 0.0
    %3260 = vmatprep.subr.mxu0 0.0
    %3261 = vmatpush1.msra.mxu0 0.0
    %3262 = vmatprep.subr.mxu0 0.0
    %3263 = vmatpush1.msra.mxu0 0.0
    %3264 = vmatprep.subr.mxu0 0.0
    %3265 = vmatpush1.msra.mxu0 0.0
    %3266 = vmatprep.subr.mxu0 0.0
    %3267 = vmatpush1.msra.mxu0 0.0
    %3268 = vmatprep.subr.mxu0 0.0
    %3269 = vmatpush1.msra.mxu0 0.0
    %3270 = vmatprep.subr.mxu0 0.0
    %3271 = vmatpush1.msra.mxu0 0.0
    %3272 = vmatprep.subr.mxu0 0.0
    %3273 = vmatpush1.msra.mxu0 0.0
    %3274 = vmatprep.subr.mxu0 0.0
    %3275 = vmatpush1.msra.mxu0 0.0
    %3276 = vmatprep.subr.mxu0 0.0
    %3277 = vmatpush1.msra.mxu0 0.0
    %3278 = vmatprep.subr.mxu0 0.0
    %3279 = vmatpush1.msra.mxu0 0.0
    %3280 = vmatprep.subr.mxu0 0.0
    %3281 = vmatpush1.msra.mxu0 0.0
    %3282 = vmatprep.subr.mxu0 0.0
    %3283 = vmatpush1.msra.mxu0 0.0
    %3284 = vmatprep.subr.mxu0 0.0
    %3285 = vmatpush1.msra.mxu0 0.0
    %3286 = vmatprep.subr.mxu0 0.0
    %3287 = vmatpush1.msra.mxu0 0.0
    %3288 = vmatprep.mubr.f32.mxu0 0.0
    %3289 = vmatmul.mubr.f32.gmra.mrb[0].mxu0 %v3124
    %v3290 = vpop.f32.mrb[0].mxu0
    %v3291 = vadd.f32 0.0, %v3290
    %v3292 = vpop.f32.mrb[0].mxu0
    %v3293 = vadd.f32 0.0, %v3292
    %3294 = vmatprep.mubr.f32.mxu0 0.0
    %3295 = vmatmul.mubr.f32.gmra.mrb[0].mxu0 %v3127
    %v3296 = vpop.f32.mrb[0].mxu0
    %v3297 = vadd.f32 0.0, %v3296
    %v3298 = vpop.f32.mrb[0].mxu0
    %v3299 = vadd.f32 0.0, %v3298
    %3300 = vmatprep.mubr.f32.mxu0 0.0
    %3301 = vmatmul.mubr.f32.gmra.mrb[0].mxu0 %v3130
    %v3302 = vpop.f32.mrb[0].mxu0
    %v3303 = vadd.f32 0.0, %v3302
    %v3304 = vpop.f32.mrb[0].mxu0
    %v3305 = vadd.f32 0.0, %v3304
    %3306 = vmatprep.mubr.f32.mxu0 0.0
    %3307 = vmatmul.mubr.f32.gmra.mrb[0].mxu0 %v3133
    %v3308 = vpop.f32.mrb[0].mxu0
    %v3309 = vadd.f32 0.0, %v3308
    %v3310 = vpop.f32.mrb[0].mxu0
    %v3311 = vadd.f32 0.0, %v3310
    %3312 = vdwg.mxu0
    %v3314 = vsel %vm1244, %v3119, 0
    %v3317 = vsel %vm1244, %v3120, 0
    %v3320 = vsel %vm1244, %v3121, 0
    %v3323 = vsel %vm1244, %v3122, 0
    %3325 = vmatprep.subr.mxu0 %v1259
    %3326 = vmatpush1.msra.mxu0 %v1257
    %3327 = vmatprep.subr.mxu0 0.0
    %3328 = vmatpush1.msra.mxu0 0.0
    %3329 = vmatprep.subr.mxu0 0.0
    %3330 = vmatpush1.msra.mxu0 0.0
    %3331 = vmatprep.subr.mxu0 0.0
    %3332 = vmatpush1.msra.mxu0 0.0
    %3333 = vmatprep.subr.mxu0 0.0
    %3334 = vmatpush1.msra.mxu0 0.0
    %3335 = vmatprep.subr.mxu0 0.0
    %3336 = vmatpush1.msra.mxu0 0.0
    %3337 = vmatprep.subr.mxu0 0.0
    %3338 = vmatpush1.msra.mxu0 0.0
    %3339 = vmatprep.subr.mxu0 0.0
    %3340 = vmatpush1.msra.mxu0 0.0
    %3341 = vmatprep.subr.mxu0 0.0
    %3342 = vmatpush1.msra.mxu0 0.0
    %3343 = vmatprep.subr.mxu0 0.0
    %3344 = vmatpush1.msra.mxu0 0.0
    %3345 = vmatprep.subr.mxu0 0.0
    %3346 = vmatpush1.msra.mxu0 0.0
    %3347 = vmatprep.subr.mxu0 0.0
    %3348 = vmatpush1.msra.mxu0 0.0
    %3349 = vmatprep.subr.mxu0 0.0
    %3350 = vmatpush1.msra.mxu0 0.0
    %3351 = vmatprep.subr.mxu0 0.0
    %3352 = vmatpush1.msra.mxu0 0.0
    %3353 = vmatprep.subr.mxu0 0.0
    %3354 = vmatpush1.msra.mxu0 0.0
    %3355 = vmatprep.subr.mxu0 0.0
    %3356 = vmatpush1.msra.mxu0 0.0
    %3357 = vmatprep.subr.mxu0 0.0
    %3358 = vmatpush1.msra.mxu0 0.0
    %3359 = vmatprep.subr.mxu0 0.0
    %3360 = vmatpush1.msra.mxu0 0.0
    %3361 = vmatprep.subr.mxu0 0.0
    %3362 = vmatpush1.msra.mxu0 0.0
    %3363 = vmatprep.subr.mxu0 0.0
    %3364 = vmatpush1.msra.mxu0 0.0
    %3365 = vmatprep.subr.mxu0 0.0
    %3366 = vmatpush1.msra.mxu0 0.0
    %3367 = vmatprep.subr.mxu0 0.0
    %3368 = vmatpush1.msra.mxu0 0.0
    %3369 = vmatprep.subr.mxu0 0.0
    %3370 = vmatpush1.msra.mxu0 0.0
    %3371 = vmatprep.subr.mxu0 0.0
    %3372 = vmatpush1.msra.mxu0 0.0
    %3373 = vmatprep.subr.mxu0 0.0
    %3374 = vmatpush1.msra.mxu0 0.0
    %3375 = vmatprep.subr.mxu0 0.0
    %3376 = vmatpush1.msra.mxu0 0.0
    %3377 = vmatprep.subr.mxu0 0.0
    %3378 = vmatpush1.msra.mxu0 0.0
    %3379 = vmatprep.subr.mxu0 0.0
    %3380 = vmatpush1.msra.mxu0 0.0
    %3381 = vmatprep.subr.mxu0 0.0
    %3382 = vmatpush1.msra.mxu0 0.0
    %3383 = vmatprep.subr.mxu0 0.0
    %3384 = vmatpush1.msra.mxu0 0.0
    %3385 = vmatprep.subr.mxu0 0.0
    %3386 = vmatpush1.msra.mxu0 0.0
    %3387 = vmatprep.subr.mxu0 0.0
    %3388 = vmatpush1.msra.mxu0 0.0
    %3389 = vmatprep.mubr.f32.mxu0 0.0
    %3390 = vmatmul.mubr.f32.gmra.mrb[0].mxu0 %v3314
    %v3391 = vpop.f32.mrb[0].mxu0
    %v3392 = vadd.f32 0.0, %v3391
    %v3393 = vpop.f32.mrb[0].mxu0
    %v3394 = vadd.f32 0.0, %v3393
    %3395 = vmatprep.mubr.f32.mxu0 0.0
    %3396 = vmatmul.mubr.f32.gmra.mrb[0].mxu0 %v3317
    %v3397 = vpop.f32.mrb[0].mxu0
    %v3398 = vadd.f32 0.0, %v3397
    %v3399 = vpop.f32.mrb[0].mxu0
    %v3400 = vadd.f32 0.0, %v3399
    %3401 = vmatprep.mubr.f32.mxu0 0.0
    %3402 = vmatmul.mubr.f32.gmra.mrb[0].mxu0 %v3320
    %v3403 = vpop.f32.mrb[0].mxu0
    %v3404 = vadd.f32 0.0, %v3403
    %v3405 = vpop.f32.mrb[0].mxu0
    %v3406 = vadd.f32 0.0, %v3405
    %3407 = vmatprep.mubr.f32.mxu0 0.0
    %3408 = vmatmul.mubr.f32.gmra.mrb[0].mxu0 %v3323
    %v3409 = vpop.f32.mrb[0].mxu0
    %v3410 = vadd.f32 0.0, %v3409
    %v3411 = vpop.f32.mrb[0].mxu0
    %v3412 = vadd.f32 0.0, %v3411
    %3413 = vdwg.mxu0
    %3414 = vmatprep.subr.mxu0 %v1263
    %3415 = vmatpush1.msra.mxu0 %v1261
    %3416 = vmatprep.subr.mxu0 0.0
    %3417 = vmatpush1.msra.mxu0 0.0
    %3418 = vmatprep.subr.mxu0 0.0
    %3419 = vmatpush1.msra.mxu0 0.0
    %3420 = vmatprep.subr.mxu0 0.0
    %3421 = vmatpush1.msra.mxu0 0.0
    %3422 = vmatprep.subr.mxu0 0.0
    %3423 = vmatpush1.msra.mxu0 0.0
    %3424 = vmatprep.subr.mxu0 0.0
    %3425 = vmatpush1.msra.mxu0 0.0
    %3426 = vmatprep.subr.mxu0 0.0
    %3427 = vmatpush1.msra.mxu0 0.0
    %3428 = vmatprep.subr.mxu0 0.0
    %3429 = vmatpush1.msra.mxu0 0.0
    %3430 = vmatprep.subr.mxu0 0.0
    %3431 = vmatpush1.msra.mxu0 0.0
    %3432 = vmatprep.subr.mxu0 0.0
    %3433 = vmatpush1.msra.mxu0 0.0
    %3434 = vmatprep.subr.mxu0 0.0
    %3435 = vmatpush1.msra.mxu0 0.0
    %3436 = vmatprep.subr.mxu0 0.0
    %3437 = vmatpush1.msra.mxu0 0.0
    %3438 = vmatprep.subr.mxu0 0.0
    %3439 = vmatpush1.msra.mxu0 0.0
    %3440 = vmatprep.subr.mxu0 0.0
    %3441 = vmatpush1.msra.mxu0 0.0
    %3442 = vmatprep.subr.mxu0 0.0
    %3443 = vmatpush1.msra.mxu0 0.0
    %3444 = vmatprep.subr.mxu0 0.0
    %3445 = vmatpush1.msra.mxu0 0.0
    %3446 = vmatprep.subr.mxu0 0.0
    %3447 = vmatpush1.msra.mxu0 0.0
    %3448 = vmatprep.subr.mxu0 0.0
    %3449 = vmatpush1.msra.mxu0 0.0
    %3450 = vmatprep.subr.mxu0 0.0
    %3451 = vmatpush1.msra.mxu0 0.0
    %3452 = vmatprep.subr.mxu0 0.0
    %3453 = vmatpush1.msra.mxu0 0.0
    %3454 = vmatprep.subr.mxu0 0.0
    %3455 = vmatpush1.msra.mxu0 0.0
    %3456 = vmatprep.subr.mxu0 0.0
    %3457 = vmatpush1.msra.mxu0 0.0
    %3458 = vmatprep.subr.mxu0 0.0
    %3459 = vmatpush1.msra.mxu0 0.0
    %3460 = vmatprep.subr.mxu0 0.0
    %3461 = vmatpush1.msra.mxu0 0.0
    %3462 = vmatprep.subr.mxu0 0.0
    %3463 = vmatpush1.msra.mxu0 0.0
    %3464 = vmatprep.subr.mxu0 0.0
    %3465 = vmatpush1.msra.mxu0 0.0
    %3466 = vmatprep.subr.mxu0 0.0
    %3467 = vmatpush1.msra.mxu0 0.0
    %3468 = vmatprep.subr.mxu0 0.0
    %3469 = vmatpush1.msra.mxu0 0.0
    %3470 = vmatprep.subr.mxu0 0.0
    %3471 = vmatpush1.msra.mxu0 0.0
    %3472 = vmatprep.subr.mxu0 0.0
    %3473 = vmatpush1.msra.mxu0 0.0
    %3474 = vmatprep.subr.mxu0 0.0
    %3475 = vmatpush1.msra.mxu0 0.0
    %3476 = vmatprep.subr.mxu0 0.0
    %3477 = vmatpush1.msra.mxu0 0.0
    %3478 = vmatprep.mubr.f32.mxu0 0.0
    %3479 = vmatmul.mubr.f32.gmra.mrb[0].mxu0 %v3314
    %v3480 = vpop.f32.mrb[0].mxu0
    %v3481 = vadd.f32 0.0, %v3480
    %v3482 = vpop.f32.mrb[0].mxu0
    %v3483 = vadd.f32 0.0, %v3482
    %3484 = vmatprep.mubr.f32.mxu0 0.0
    %3485 = vmatmul.mubr.f32.gmra.mrb[0].mxu0 %v3317
    %v3486 = vpop.f32.mrb[0].mxu0
    %v3487 = vadd.f32 0.0, %v3486
    %v3488 = vpop.f32.mrb[0].mxu0
    %v3489 = vadd.f32 0.0, %v3488
    %3490 = vmatprep.mubr.f32.mxu0 0.0
    %3491 = vmatmul.mubr.f32.gmra.mrb[0].mxu0 %v3320
    %v3492 = vpop.f32.mrb[0].mxu0
    %v3493 = vadd.f32 0.0, %v3492
    %v3494 = vpop.f32.mrb[0].mxu0
    %v3495 = vadd.f32 0.0, %v3494
    %3496 = vmatprep.mubr.f32.mxu0 0.0
    %3497 = vmatmul.mubr.f32.gmra.mrb[0].mxu0 %v3323
    %v3498 = vpop.f32.mrb[0].mxu0
    %v3499 = vadd.f32 0.0, %v3498
    %v3500 = vpop.f32.mrb[0].mxu0
    %v3501 = vadd.f32 0.0, %v3500
    %3502 = vdwg.mxu0
    %v3503 = vmul.f32 %v2413, %v3202
    %v3504 = vmul.f32 %v2415, %v3204
    %v3505 = vmul.f32 %v2519, %v3291
    %v3506 = vmul.f32 %v2521, %v3293
    %v3507 = vmul.f32 %v2417, %v3208
    %v3508 = vmul.f32 %v2419, %v3210
    %v3509 = vmul.f32 %v2523, %v3297
    %v3510 = vmul.f32 %v2525, %v3299
    %v3511 = vmul.f32 %v2423, %v3214
    %v3512 = vmul.f32 %v2425, %v3216
    %v3513 = vmul.f32 %v2529, %v3303
    %v3514 = vmul.f32 %v2531, %v3305
    %v3515 = vmul.f32 %v2427, %v3220
    %v3516 = vmul.f32 %v2429, %v3222
    %v3517 = vmul.f32 %v2533, %v3309
    %v3518 = vmul.f32 %v2535, %v3311
    %v3519 = vadd.f32 %v3503, %v3392
    %v3520 = vadd.f32 %v3504, %v3394
    %v3521 = vadd.f32 %v3505, %v3481
    %v3522 = vadd.f32 %v3506, %v3483
    %v3523 = vadd.f32 %v3507, %v3398
    %v3524 = vadd.f32 %v3508, %v3400
    %v3525 = vadd.f32 %v3509, %v3487
    %v3526 = vadd.f32 %v3510, %v3489
    %v3527 = vadd.f32 %v3511, %v3404
    %v3528 = vadd.f32 %v3512, %v3406
    %v3529 = vadd.f32 %v3513, %v3493
    %v3530 = vadd.f32 %v3514, %v3495
    %v3531 = vadd.f32 %v3515, %v3410
    %v3532 = vadd.f32 %v3516, %v3412
    %v3533 = vadd.f32 %v3517, %v3499
    %v3534 = vadd.f32 %v3518, %v3501
    %v3535 = vmax.f32 %v3519, 0.0
    %v3536 = vmax.f32 %v3520, 0.0
    %v3537 = vmax.f32 %v3521, 0.0
    %v3538 = vmax.f32 %v3522, 0.0
    %v3539 = vmax.f32 %v3523, 0.0
    %v3540 = vmax.f32 %v3524, 0.0
    %v3541 = vmax.f32 %v3525, 0.0
    %v3542 = vmax.f32 %v3526, 0.0
    %v3543 = vmax.f32 %v3527, 0.0
    %v3544 = vmax.f32 %v3528, 0.0
    %v3545 = vmax.f32 %v3529, 0.0
    %v3546 = vmax.f32 %v3530, 0.0
    %v3547 = vmax.f32 %v3531, 0.0
    %v3548 = vmax.f32 %v3532, 0.0
    %v3549 = vmax.f32 %v3533, 0.0
    %v3550 = vmax.f32 %v3534, 0.0
    %3551 = vrot.lane.b32.xlu0 %v3535, 127
    %v3552 = vpop.permute.xlu0 %3551
    %3553 = vrot.lane.b32.xlu0 %v3539, 127
    %v3554 = vpop.permute.xlu0 %3553
    %3555 = vrot.lane.b32.xlu0 %v3543, 127
    %v3556 = vpop.permute.xlu0 %3555
    %3557 = vrot.lane.b32.xlu0 %v3547, 127
    %v3558 = vpop.permute.xlu0 %3557
    %3559 = vrot.lane.b32.xlu0 %v3536, 127
    %v3560 = vpop.permute.xlu0 %3559
    %3561 = vrot.lane.b32.xlu0 %v3540, 127
    %v3562 = vpop.permute.xlu0 %3561
    %3563 = vrot.lane.b32.xlu0 %v3544, 127
    %v3564 = vpop.permute.xlu0 %3563
    %3565 = vrot.lane.b32.xlu0 %v3548, 127
    %v3566 = vpop.permute.xlu0 %3565
    %3567 = vrot.lane.b32.xlu0 %v3537, 127
    %v3568 = vpop.permute.xlu0 %3567
    %3569 = vrot.lane.b32.xlu0 %v3541, 127
    %v3570 = vpop.permute.xlu0 %3569
    %3571 = vrot.lane.b32.xlu0 %v3545, 127
    %v3572 = vpop.permute.xlu0 %3571
    %3573 = vrot.lane.b32.xlu0 %v3549, 127
    %v3574 = vpop.permute.xlu0 %3573
    %3575 = vrot.lane.b32.xlu0 %v3538, 127
    %v3576 = vpop.permute.xlu0 %3575
    %3577 = vrot.lane.b32.xlu0 %v3542, 127
    %v3578 = vpop.permute.xlu0 %3577
    %3579 = vrot.lane.b32.xlu0 %v3546, 127
    %v3580 = vpop.permute.xlu0 %3579
    %3581 = vrot.lane.b32.xlu0 %v3550, 127
    %v3582 = vpop.permute.xlu0 %3581
    %v3583 = vsel %vm270, %v3568, %v3576
    %v3584 = vsel %vm270, %v3570, %v3578
    %v3585 = vsel %vm270, %v3572, %v3580
    %v3586 = vsel %vm270, %v3574, %v3582
    %v3587 = vsel %vm270, %v3560, %v3568
    %v3588 = vsel %vm270, %v3562, %v3570
    %v3589 = vsel %vm270, %v3564, %v3572
    %v3590 = vsel %vm270, %v3566, %v3574
    %v3591 = vsel %vm270, %v3552, %v3560
    %v3592 = vsel %vm270, %v3554, %v3562
    %v3593 = vsel %vm270, %v3556, %v3564
    %v3594 = vsel %vm270, %v3558, %v3566
    %v3595 = vsel %vm270, %v3576, %v3552
    %v3596 = vsel %vm270, %v3578, %v3554
    %v3597 = vsel %vm270, %v3580, %v3556
    %v3598 = vsel %vm270, %v3582, %v3558
    %v3599 = vmax.f32 %v3535, %v3591
    %v3600 = vmax.f32 %v3536, %v3587
    %v3601 = vmax.f32 %v3537, %v3583
    %v3602 = vmax.f32 %v3538, %v3595
    %v3603 = vmax.f32 %v3539, %v3592
    %v3604 = vmax.f32 %v3540, %v3588
    %v3605 = vmax.f32 %v3541, %v3584
    %v3606 = vmax.f32 %v3542, %v3596
    %v3607 = vmax.f32 %v3543, %v3593
    %v3608 = vmax.f32 %v3544, %v3589
    %v3609 = vmax.f32 %v3545, %v3585
    %v3610 = vmax.f32 %v3546, %v3597
    %v3611 = vmax.f32 %v3547, %v3594
    %v3612 = vmax.f32 %v3548, %v3590
    %v3613 = vmax.f32 %v3549, %v3586
    %v3614 = vmax.f32 %v3550, %v3598
    %3615 = vrot.lane.b32.xlu0 %v3599, 112
    %v3616 = vpop.permute.xlu0 %3615
    %3617 = vrot.lane.b32.xlu0 %v3603, 112
    %v3618 = vpop.permute.xlu0 %3617
    %3619 = vrot.lane.b32.xlu0 %v3607, 112
    %v3620 = vpop.permute.xlu0 %3619
    %3621 = vrot.lane.b32.xlu0 %v3611, 112
    %v3622 = vpop.permute.xlu0 %3621
    %3623 = vrot.lane.b32.xlu0 %v3600, 112
    %v3624 = vpop.permute.xlu0 %3623
    %3625 = vrot.lane.b32.xlu0 %v3604, 112
    %v3626 = vpop.permute.xlu0 %3625
    %3627 = vrot.lane.b32.xlu0 %v3608, 112
    %v3628 = vpop.permute.xlu0 %3627
    %3629 = vrot.lane.b32.xlu0 %v3612, 112
    %v3630 = vpop.permute.xlu0 %3629
    %3631 = vrot.lane.b32.xlu0 %v3601, 112
    %v3632 = vpop.permute.xlu0 %3631
    %3633 = vrot.lane.b32.xlu0 %v3605, 112
    %v3634 = vpop.permute.xlu0 %3633
    %3635 = vrot.lane.b32.xlu0 %v3609, 112
    %v3636 = vpop.permute.xlu0 %3635
    %3637 = vrot.lane.b32.xlu0 %v3613, 112
    %v3638 = vpop.permute.xlu0 %3637
    %3639 = vrot.lane.b32.xlu0 %v3602, 112
    %v3640 = vpop.permute.xlu0 %3639
    %3641 = vrot.lane.b32.xlu0 %v3606, 112
    %v3642 = vpop.permute.xlu0 %3641
    %3643 = vrot.lane.b32.xlu0 %v3610, 112
    %v3644 = vpop.permute.xlu0 %3643
    %3645 = vrot.lane.b32.xlu0 %v3614, 112
    %v3646 = vpop.permute.xlu0 %3645
    %v3647 = vsel %vm336, %v3632, %v3640
    %v3648 = vsel %vm336, %v3634, %v3642
    %v3649 = vsel %vm336, %v3636, %v3644
    %v3650 = vsel %vm336, %v3638, %v3646
    %v3651 = vsel %vm336, %v3624, %v3632
    %v3652 = vsel %vm336, %v3626, %v3634
    %v3653 = vsel %vm336, %v3628, %v3636
    %v3654 = vsel %vm336, %v3630, %v3638
    %v3655 = vsel %vm336, %v3616, %v3624
    %v3656 = vsel %vm336, %v3618, %v3626
    %v3657 = vsel %vm336, %v3620, %v3628
    %v3658 = vsel %vm336, %v3622, %v3630
    %v3659 = vsel %vm336, %v3640, %v3616
    %v3660 = vsel %vm336, %v3642, %v3618
    %v3661 = vsel %vm336, %v3644, %v3620
    %v3662 = vsel %vm336, %v3646, %v3622
    %v3663 = vmax.f32 %v3599, %v3655
    %v3664 = vmax.f32 %v3600, %v3651
    %v3665 = vmax.f32 %v3601, %v3647
    %v3666 = vmax.f32 %v3602, %v3659
    %v3667 = vmax.f32 %v3603, %v3656
    %v3668 = vmax.f32 %v3604, %v3652
    %v3669 = vmax.f32 %v3605, %v3648
    %v3670 = vmax.f32 %v3606, %v3660
    %v3671 = vmax.f32 %v3607, %v3657
    %v3672 = vmax.f32 %v3608, %v3653
    %v3673 = vmax.f32 %v3609, %v3649
    %v3674 = vmax.f32 %v3610, %v3661
    %v3675 = vmax.f32 %v3611, %v3658
    %v3676 = vmax.f32 %v3612, %v3654
    %v3677 = vmax.f32 %v3613, %v3650
    %v3678 = vmax.f32 %v3614, %v3662
    %v3679 = vpack.c.bf16 %v3667, %v3663
    %v3680 = vpack.c.bf16 %v3668, %v3664
    %v3681 = vpack.c.bf16 %v3669, %v3665
    %v3682 = vpack.c.bf16 %v3670, %v3666
    %v3683 = vpack.c.bf16 %v3675, %v3671
    %v3684 = vpack.c.bf16 %v3676, %v3672
    %v3685 = vpack.c.bf16 %v3677, %v3673
    %v3686 = vpack.c.bf16 %v3678, %v3674
    %v3687 = vld [vmem:[%s8] sm:$0xf]
    %v3688 = vld [vmem:[%s8 + $0x4] sm:$0xf]
    %v3689 = vld [vmem:[%s8 + $0x8] sm:$0xf]
    %v3690 = vld [vmem:[%s8 + $0xc] sm:$0xf]
    %v3691 = vld [vmem:[%s8 + $0x10] sm:$0xf]
    %v3692 = vld [vmem:[%s8 + $0x14] sm:$0xf]
    %v3693 = vld [vmem:[%s8 + $0x18] sm:$0xf]
    %v3694 = vld [vmem:[%s8 + $0x1c] sm:$0xf]
    %v3695 = vld [vmem:[%s8 + $0x20] sm:$0xf]
    %v3696 = vld [vmem:[%s8 + $0x24] sm:$0xf]
    %v3697 = vld [vmem:[%s8 + $0x28] sm:$0xf]
    %v3698 = vld [vmem:[%s8 + $0x2c] sm:$0xf]
    %v3699 = vld [vmem:[%s8 + $0x30] sm:$0xf]
    %v3700 = vld [vmem:[%s8 + $0x34] sm:$0xf]
    %v3701 = vld [vmem:[%s8 + $0x38] sm:$0xf]
    %v3702 = vld [vmem:[%s8 + $0x3c] sm:$0xf]
    %v3703 = vld [vmem:[%s8 + $0x40] sm:$0xf]
    %v3704 = vld [vmem:[%s8 + $0x44] sm:$0xf]
    %v3705 = vld [vmem:[%s8 + $0x48] sm:$0xf]
    %v3706 = vld [vmem:[%s8 + $0x4c] sm:$0xf]
    %v3707 = vld [vmem:[%s8 + $0x50] sm:$0xf]
    %v3708 = vld [vmem:[%s8 + $0x54] sm:$0xf]
    %v3709 = vld [vmem:[%s8 + $0x58] sm:$0xf]
    %v3710 = vld [vmem:[%s8 + $0x5c] sm:$0xf]
    %v3711 = vld [vmem:[%s8 + $0x60] sm:$0xf]
    %v3712 = vld [vmem:[%s8 + $0x64] sm:$0xf]
    %v3713 = vld [vmem:[%s8 + $0x68] sm:$0xf]
    %v3714 = vld [vmem:[%s8 + $0x6c] sm:$0xf]
    %v3715 = vld [vmem:[%s8 + $0x70] sm:$0xf]
    %v3716 = vld [vmem:[%s8 + $0x74] sm:$0xf]
    %v3717 = vld [vmem:[%s8 + $0x78] sm:$0xf]
    %v3718 = vld [vmem:[%s8 + $0x7c] sm:$0xf]
    %v3751 = vunpack.c.l.b16 %v3687
    %v3752 = vunpack.c.l.b16 %v3688
    %v3753 = vunpack.c.l.b16 %v3689
    %v3754 = vunpack.c.l.b16 %v3690
    %v3755 = vunpack.c.l.b16 %v3691
    %v3756 = vunpack.c.l.b16 %v3692
    %v3757 = vunpack.c.l.b16 %v3693
    %v3758 = vunpack.c.l.b16 %v3694
    %v3759 = vunpack.c.l.b16 %v3695
    %v3760 = vunpack.c.l.b16 %v3696
    %v3761 = vunpack.c.l.b16 %v3697
    %v3762 = vunpack.c.l.b16 %v3698
    %v3763 = vunpack.c.l.b16 %v3699
    %v3764 = vunpack.c.l.b16 %v3700
    %v3765 = vunpack.c.l.b16 %v3701
    %v3766 = vunpack.c.l.b16 %v3702
    %v3767 = vunpack.c.l.b16 %v3703
    %v3768 = vunpack.c.l.b16 %v3704
    %v3769 = vunpack.c.l.b16 %v3705
    %v3770 = vunpack.c.l.b16 %v3706
    %v3771 = vunpack.c.l.b16 %v3707
    %v3772 = vunpack.c.l.b16 %v3708
    %v3773 = vunpack.c.l.b16 %v3709
    %v3774 = vunpack.c.l.b16 %v3710
    %v3775 = vunpack.c.l.b16 %v3711
    %v3776 = vunpack.c.l.b16 %v3712
    %v3777 = vunpack.c.l.b16 %v3713
    %v3778 = vunpack.c.l.b16 %v3714
    %v3779 = vunpack.c.l.b16 %v3715
    %v3780 = vunpack.c.l.b16 %v3716
    %v3781 = vunpack.c.l.b16 %v3717
    %v3782 = vunpack.c.l.b16 %v3718
    %v3783 = vpack.c.b16 %v3752, %v3751
    %v3784 = vpack.c.b16 %v3754, %v3753
    %v3785 = vpack.c.b16 %v3756, %v3755
    %v3786 = vpack.c.b16 %v3758, %v3757
    %v3787 = vpack.c.b16 %v3760, %v3759
    %v3788 = vpack.c.b16 %v3762, %v3761
    %v3789 = vpack.c.b16 %v3764, %v3763
    %v3790 = vpack.c.b16 %v3766, %v3765
    %v3791 = vpack.c.b16 %v3768, %v3767
    %v3792 = vpack.c.b16 %v3770, %v3769
    %v3793 = vpack.c.b16 %v3772, %v3771
    %v3794 = vpack.c.b16 %v3774, %v3773
    %v3795 = vpack.c.b16 %v3776, %v3775
    %v3796 = vpack.c.b16 %v3778, %v3777
    %v3797 = vpack.c.b16 %v3780, %v3779
    %v3798 = vpack.c.b16 %v3782, %v3781
    %3815 = vmatprep.subr.bf16.mxu0 0
    %3816 = vmatpush1.bf16.msra.mxu0 %v3783
    %3817 = vmatprep.subr.bf16.mxu0 0
    %3818 = vmatpush1.bf16.msra.mxu0 %v3784
    %3819 = vmatprep.subr.bf16.mxu0 0
    %3820 = vmatpush1.bf16.msra.mxu0 %v3785
    %3821 = vmatprep.subr.bf16.mxu0 0
    %3822 = vmatpush1.bf16.msra.mxu0 %v3786
    %3823 = vmatprep.subr.bf16.mxu0 0
    %3824 = vmatpush1.bf16.msra.mxu0 %v3787
    %3825 = vmatprep.subr.bf16.mxu0 0
    %3826 = vmatpush1.bf16.msra.mxu0 %v3788
    %3827 = vmatprep.subr.bf16.mxu0 0
    %3828 = vmatpush1.bf16.msra.mxu0 %v3789
    %3829 = vmatprep.subr.bf16.mxu0 0
    %3830 = vmatpush1.bf16.msra.mxu0 %v3790
    %3831 = vmatprep.subr.bf16.mxu0 0
    %3832 = vmatpush1.bf16.msra.mxu0 %v3791
    %3833 = vmatprep.subr.bf16.mxu0 0
    %3834 = vmatpush1.bf16.msra.mxu0 %v3792
    %3835 = vmatprep.subr.bf16.mxu0 0
    %3836 = vmatpush1.bf16.msra.mxu0 %v3793
    %3837 = vmatprep.subr.bf16.mxu0 0
    %3838 = vmatpush1.bf16.msra.mxu0 %v3794
    %3839 = vmatprep.subr.bf16.mxu0 0
    %3840 = vmatpush1.bf16.msra.mxu0 %v3795
    %3841 = vmatprep.subr.bf16.mxu0 0
    %3842 = vmatpush1.bf16.msra.mxu0 %v3796
    %3843 = vmatprep.subr.bf16.mxu0 0
    %3844 = vmatpush1.bf16.msra.mxu0 %v3797
    %3845 = vmatprep.subr.bf16.mxu0 0
    %3846 = vmatpush1.bf16.msra.mxu0 %v3798
    %3847 = vmatprep.mubr.bf16.mxu0 %v3680
    %3848 = vmatmul.mubr.bf16.gmra.mrb[0].mxu0 %v3679
    %v3849 = vpop.f32.mrb[0].mxu0
    %v3850 = vadd.f32 0.0, %v3849
    %v3851 = vpop.f32.mrb[0].mxu0
    %v3852 = vpop.f32.mrb[0].mxu0
    %v3853 = vadd.f32 0.0, %v3852
    %v3854 = vpop.f32.mrb[0].mxu0
    %3855 = vmatprep.mubr.bf16.mxu0 %v3684
    %3856 = vmatmul.mubr.bf16.gmra.mrb[0].mxu0 %v3683
    %v3857 = vpop.f32.mrb[0].mxu0
    %v3858 = vadd.f32 0.0, %v3857
    %v3859 = vpop.f32.mrb[0].mxu0
    %v3860 = vpop.f32.mrb[0].mxu0
    %v3861 = vadd.f32 0.0, %v3860
    %v3862 = vpop.f32.mrb[0].mxu0
    %3863 = vdwg.mxu0
    %3864 = vmatprep.subr.bf16.mxu0 0
    %3865 = vmatpush1.bf16.msra.mxu0 %v3783
    %3866 = vmatprep.subr.bf16.mxu0 0
    %3867 = vmatpush1.bf16.msra.mxu0 %v3784
    %3868 = vmatprep.subr.bf16.mxu0 0
    %3869 = vmatpush1.bf16.msra.mxu0 %v3785
    %3870 = vmatprep.subr.bf16.mxu0 0
    %3871 = vmatpush1.bf16.msra.mxu0 %v3786
    %3872 = vmatprep.subr.bf16.mxu0 0
    %3873 = vmatpush1.bf16.msra.mxu0 %v3787
    %3874 = vmatprep.subr.bf16.mxu0 0
    %3875 = vmatpush1.bf16.msra.mxu0 %v3788
    %3876 = vmatprep.subr.bf16.mxu0 0
    %3877 = vmatpush1.bf16.msra.mxu0 %v3789
    %3878 = vmatprep.subr.bf16.mxu0 0
    %3879 = vmatpush1.bf16.msra.mxu0 %v3790
    %3880 = vmatprep.subr.bf16.mxu0 0
    %3881 = vmatpush1.bf16.msra.mxu0 %v3791
    %3882 = vmatprep.subr.bf16.mxu0 0
    %3883 = vmatpush1.bf16.msra.mxu0 %v3792
    %3884 = vmatprep.subr.bf16.mxu0 0
    %3885 = vmatpush1.bf16.msra.mxu0 %v3793
    %3886 = vmatprep.subr.bf16.mxu0 0
    %3887 = vmatpush1.bf16.msra.mxu0 %v3794
    %3888 = vmatprep.subr.bf16.mxu0 0
    %3889 = vmatpush1.bf16.msra.mxu0 %v3795
    %3890 = vmatprep.subr.bf16.mxu0 0
    %3891 = vmatpush1.bf16.msra.mxu0 %v3796
    %3892 = vmatprep.subr.bf16.mxu0 0
    %3893 = vmatpush1.bf16.msra.mxu0 %v3797
    %3894 = vmatprep.subr.bf16.mxu0 0
    %3895 = vmatpush1.bf16.msra.mxu0 %v3798
    %3896 = vmatprep.mubr.bf16.mxu0 %v3682
    %3897 = vmatmul.mubr.bf16.gmra.mrb[0].mxu0 %v3681
    %v3898 = vpop.f32.mrb[0].mxu0
    %v3899 = vadd.f32 0.0, %v3898
    %v3900 = vpop.f32.mrb[0].mxu0
    %v3901 = vpop.f32.mrb[0].mxu0
    %v3902 = vadd.f32 0.0, %v3901
    %v3903 = vpop.f32.mrb[0].mxu0
    %3904 = vmatprep.mubr.bf16.mxu0 %v3686
    %3905 = vmatmul.mubr.bf16.gmra.mrb[0].mxu0 %v3685
    %v3906 = vpop.f32.mrb[0].mxu0
    %v3907 = vadd.f32 0.0, %v3906
    %v3908 = vpop.f32.mrb[0].mxu0
    %v3909 = vpop.f32.mrb[0].mxu0
    %v3910 = vadd.f32 0.0, %v3909
    %v3911 = vpop.f32.mrb[0].mxu0
    %3912 = vdwg.mxu0
    %3917 = vrot.lane.b32.xlu0 %v3899, 64
    %v3918 = vpop.permute.xlu0 %3917
    %3919 = vrot.lane.b32.xlu0 %v3902, 64
    %v3920 = vpop.permute.xlu0 %3919
    %3921 = vrot.lane.b32.xlu0 %v3907, 64
    %v3922 = vpop.permute.xlu0 %3921
    %3923 = vrot.lane.b32.xlu0 %v3910, 64
    %v3924 = vpop.permute.xlu0 %3923
    %vm3929 = vcmask 523264
    %v3930 = vsel %vm3929, %v3850, %v3918
    %v3931 = vsel %vm3929, %v3853, %v3920
    %v3932 = vsel %vm3929, %v3858, %v3922
    %v3933 = vsel %vm3929, %v3861, %v3924
    %3934 = vst [vmem:[#allocation2] sm:$0xff] %v3930
    %3935 = vst [vmem:[#allocation2 + $0x8] sm:$0xff] %v3931
    %3936 = vst [vmem:[#allocation2 + $0x10] sm:$0xff] %v3932
    %3937 = vst [vmem:[#allocation2 + $0x18] sm:$0xff] %v3933
    // Predicated region
    $region38: #{tpu_custom_call.1} parent=1 // pred_check
      _
    $region39: #{tpu_custom_call.1} parent=1 // pred_check_branch
      %3939 = sbr.rel (0) target = $region41
    $region40: #{tpu_custom_call.1} parent=1 // pred_region
      %s3941 = ssub.s32 512, 512
      %3942 = vsyncadd [#allocation3], %s3941
      %s3943 = sshll.u32 [#allocation2], 4
      %s3944 = int_to_ptr.vmem [resolvable:$true] %s3943
      %3949 = dma.vmem_to_hbm [thread:$0]  %s3944, 512, %s9, [#allocation3], 128, 128, 8
    $region41: #{tpu_custom_call.1} parent=1 // pred_fallthru
      _
    // Predicated region
    $region42: #{tpu_custom_call.1} parent=1 // pred_check
      _
    $region43: #{tpu_custom_call.1} parent=1 // pred_check_branch
      %3951 = sbr.rel (0) target = $region45
    $region44: #{tpu_custom_call.1} parent=1 // pred_region
      %3952 = dma.done [#allocation3], 512
    $region45: #{tpu_custom_call.1} parent=1 // pred_fallthru
      _
    %3953 = vsyncpa [#allocation3], 1

</llo_original>
